<compile_context>
chip_gen: v7x
topology: tpu7x:2x2x1
jax: 0.10.0
libtpu: 0.0.40
codegen_flags: <defaults>
</compile_context>

<pallas_src>
import functools

import jax
import jax.numpy as jnp
from jax.experimental import pallas as pl
from jax.experimental.pallas import tpu as pltpu


def _upsample_conv_kernel(xa_ref, xb_ref, w_ref, b_ref, o_ref):
    """Fused nearest-2x upsample + 3x3 SAME conv (polyphase form).

    xa_ref: (1, tH, W+2, C)    rows [i*tH, (i+1)*tH) of the zero-padded input
    xb_ref: (1, 2,  W+2, C)    2-row halo directly below this block
    w_ref : (4, 4, C, C)       pre-summed polyphase weights [p*2+q, r*2+c]
    b_ref : (1, C)             conv bias (f32)
    o_ref : (1, 2, 2, tH*W, C) parity-planar output rows
    """
    tH = xa_ref.shape[1]
    C = xa_ref.shape[3]
    W = xa_ref.shape[2] - 2

    # (tH+2, W+2, C) window: this block's rows plus the 2-row halo below.
    # (Input was already cast to the matmul dtype in the wrapper's pad pass.)
    window = jnp.concatenate([xa_ref[0], xb_ref[0]], axis=0)
    bias = b_ref[0].astype(jnp.float32)

    # Hoist the 9 distinct shifted views once (each is a single sublane-offset
    # slice + relabel reshape); the 4 parities reuse them (16 tap uses total).
    views = [[window[dr:dr + tH, dc:dc + W, :].reshape(tH * W, C)
              for dc in range(3)] for dr in range(3)]

    for p in range(2):            # output row parity
        for q in range(2):        # output col parity
            acc = None
            for r in range(2):    # 2x2 polyphase taps
                for c in range(2):
                    part = jnp.dot(views[p + r][q + c],
                                   w_ref[p * 2 + q, r * 2 + c],
                                   preferred_element_type=jnp.float32)
                    acc = part if acc is None else acc + part
            o_ref[0, p, q] = (acc + bias).astype(o_ref.dtype)


def _polyphase_weights(w_oihw, dtype):
    """(Cout, Cin, 3, 3) conv weights -> (4, 4, Cin, Cout) polyphase taps.

    Folding the nearest-2x upsample into the 3x3 conv makes each output parity
    a 2x2 conv over the original input whose tap weights are sums of 3x3 taps.
    Index layout: [p*2 + q, r*2 + c, ci, co].
    """
    c_out, c_in = w_oihw.shape[0], w_oihw.shape[1]
    w_hwio = jnp.transpose(w_oihw, (2, 3, 1, 0)).astype(jnp.float32)  # (3,3,Ci,Co)
    # sel[parity, tap, kernel_index]: which 3x3 rows/cols collapse onto each
    # 2x2 polyphase tap (nearest upsample duplicates every input row/col).
    sel = jnp.array([[[1.0, 0.0, 0.0], [0.0, 1.0, 1.0]],
                     [[1.0, 1.0, 0.0], [0.0, 0.0, 1.0]]], dtype=jnp.float32)
    wp = jnp.einsum("prh,qcw,hwio->pqrcio", sel, sel, w_hwio)  # (2,2,2,2,Ci,Co)
    return wp.reshape(4, 4, c_in, c_out).astype(dtype)


def _vmem_capacity_bytes():
    """Per-core VMEM capacity; conservative (v7x = 64 MiB) if unqueryable."""
    try:
        return int(pltpu.get_tpu_info().vmem_capacity_bytes)
    except Exception:  # noqa: BLE001 - fall back to the smallest current part
        return 64 << 20


def _per_step_vmem_bytes(tH, W, C, in_item, out_item):
    blk_in = (tH + 2) * (W + 2) * C * in_item        # xa block + 2-row halo
    blk_out = 4 * tH * W * C * out_item              # 2x2 parity planes
    weights = 16 * C * C * in_item + 4 * C
    window = (tH + 2) * (W + 2) * C * in_item        # concat temp
    views = 9 * tH * W * C * in_item                 # hoisted shifted views
    acc = 2 * tH * W * C * 4                         # f32 accumulator + temp
    # double-buffered pipeline buffers for in/out/weights + in-kernel temps
    return 2 * (blk_in + blk_out + weights) + window + views + acc


def _valid_row_blocks(H, W):
    # tH must divide H, be even (2-row halo block index math), and keep the
    # (tH*W, C) output block layout-legal (second-to-last dim % 8 or full dim).
    return [t for t in range(H, 1, -1)
            if H % t == 0 and t % 2 == 0 and ((t * W) % 8 == 0 or t == H)]


def _pick_row_block(H, W, C, in_item, out_item, budget_bytes):
    cands = _valid_row_blocks(H, W)
    if not cands:
        return H
    for t in cands:                     # descending: biggest that fits wins
        if _per_step_vmem_bytes(t, W, C, in_item, out_item) <= budget_bytes:
            return t
    return cands[-1]


def _vmem_limit_bytes(tH, W, C, in_item, out_item, capacity):
    est = _per_step_vmem_bytes(tH, W, C, in_item, out_item)
    est = int(est * 1.5) + (4 << 20)      # headroom for Mosaic temporaries
    hi = (capacity * 3) // 4              # ~48 MiB on v7x, ~96 MiB on v5e/v6e
    lo = min(32 << 20, hi)
    return max(lo, min(hi, est))


def upsample_conv_nhwc(x_nhwc, w_oihw, bias, *, row_block=None,
                       matmul_dtype=None, out_dtype=None):
    """x_nhwc: (B,H,W,C); w_oihw: (C,C,3,3); bias: (C,) -> (B, 2, 2, H*W, C).

    Output element [b, p, q, h*W + w, c] == conv(upsample(x))[b, c, 2h+p, 2w+q].
    """
    B, H, W, C = x_nhwc.shape
    assert H >= 2 and H % 2 == 0, "kernel requires even H (2-row halo blocks)"

    if matmul_dtype is None:
        # bf16 feeds the v6e/v7x MXU at full rate; only pay the cast (and the
        # looser numerics) when the channel contraction is wide enough for the
        # MXU to matter.  The cast is fused into the pad pass below.
        matmul_dtype = (jnp.bfloat16
                        if (C >= 128 and x_nhwc.dtype == jnp.float32)
                        else x_nhwc.dtype)
    matmul_dtype = jnp.dtype(matmul_dtype)
    out_dtype = jnp.dtype(x_nhwc.dtype if out_dtype is None else out_dtype)

    in_item = matmul_dtype.itemsize
    out_item = out_dtype.itemsize
    capacity = _vmem_capacity_bytes()
    budget = (capacity * 3) // 8          # ~24 MiB on v7x, ~48 MiB on v5e/v6e

    tH = (row_block if row_block is not None
          else _pick_row_block(H, W, C, in_item, out_item, budget))
    assert H % tH == 0 and tH >= 2 and tH % 2 == 0, (H, tH)
    nrb = H // tH

    # Exactly the conv's SAME padding (1 row/col of zeros on every side); the
    # dtype cast for the MXU rides along with this pass for free.
    xpad = jnp.pad(x_nhwc, ((0, 0), (1, 1), (1, 1), (0, 0))).astype(matmul_dtype)

    w_packed = _polyphase_weights(w_oihw, matmul_dtype)      # (4, 4, C, C)
    b2d = bias.reshape(1, C).astype(jnp.float32)

    half_tH = tH // 2

    return pl.pallas_call(
        _upsample_conv_kernel,
        out_shape=jax.ShapeDtypeStruct((B, 2, 2, H * W, C), out_dtype),
        grid_spec=pltpu.PrefetchScalarGridSpec(
            num_scalar_prefetch=0,
            grid=(B, nrb),
            in_specs=[
                # current row block of the padded input
                pl.BlockSpec((1, tH, W + 2, C), lambda b, i: (b, i, 0, 0)),
                # 2-row halo directly below this block (same padded array)
                pl.BlockSpec((1, 2, W + 2, C),
                             lambda b, i: (b, (i + 1) * half_tH, 0, 0)),
                # polyphase weights + bias, resident in VMEM across the grid
                pl.BlockSpec((4, 4, C, C), lambda b, i: (0, 0, 0, 0)),
                pl.BlockSpec((1, C), lambda b, i: (0, 0)),
            ],
            out_specs=pl.BlockSpec((1, 2, 2, tH * W, C),
                                   lambda b, i: (b, 0, 0, i, 0)),
        ),
        compiler_params=pltpu.CompilerParams(
            dimension_semantics=("parallel", "parallel"),
            vmem_limit_bytes=_vmem_limit_bytes(tH, W, C, in_item, out_item,
                                               capacity),
        ),
    )(xpad, xpad, w_packed, b2d)


def upsample_forward_nchw(x_nchw, w_oihw, bias, *, row_block=None,
                          matmul_dtype=None, out_dtype=None):
    """Matches UpSample.forward: NCHW in, NCHW out."""
    B, C, H, W = x_nchw.shape
    x_nhwc = jnp.transpose(x_nchw, (0, 2, 3, 1))
    y = upsample_conv_nhwc(x_nhwc, w_oihw, bias, row_block=row_block,
                           matmul_dtype=matmul_dtype, out_dtype=out_dtype)
    # (B, p, q, H*W, C) -> (B, C, 2H, 2W): interleave the parity planes while
    # doing the layout transpose the NCHW consumer needs anyway.
    y = y.reshape(B, 2, 2, H, W, C)
    y = jnp.transpose(y, (0, 5, 3, 1, 4, 2))      # (B, C, H, p, W, q)
    return y.reshape(B, C, 2 * H, 2 * W)


def _reference_nchw(x_nchw, w_oihw, bias):
    """Pure-JAX reference (nearest upsample + SAME 3x3 conv) for validation."""
    up = jnp.repeat(jnp.repeat(x_nchw, 2, axis=2), 2, axis=3)
    y = jax.lax.conv_general_dilated(
        up, w_oihw, window_strides=(1, 1), padding="SAME",
        dimension_numbers=("NCHW", "OIHW", "NCHW"),
    )
    return y + bias.reshape(1, -1, 1, 1)


if __name__ == "__main__":
    B, C, H, W = 2, 4, 16, 16

    key = jax.random.PRNGKey(0)
    kx, kw, kb = jax.random.split(key, 3)

    x = jax.random.normal(kx, (B, C, H, W), dtype=jnp.float32)
    # Deterministic init mimicking PyTorch Conv2d default (uniform +/- 1/sqrt(fan_in)).
    fan_in = C * 3 * 3
    bound = 1.0 / (fan_in ** 0.5)
    w = jax.random.uniform(kw, (C, C, 3, 3), jnp.float32, -bound, bound)
    b = jax.random.uniform(kb, (C,), jnp.float32, -bound, bound)

    out = upsample_forward_nchw(x, w, b)
    out = jax.block_until_ready(out)

    ref = _reference_nchw(x, w, b)
    assert out.shape == (B, C, 2 * H, 2 * W), out.shape
    # f32 path at this C (< 128); the auto-bf16 path (C >= 128) needs looser
    # tolerances (~1e-2).
    assert jnp.allclose(out, ref, atol=1e-4, rtol=1e-4), "mismatch vs reference"

    print("KERNEL_OK")
</pallas_src>

<mosaic_0001>
module attributes {stable_mosaic.version = 11 : i64} {
  func.func @_upsample_conv_kernel(%arg0: i32, %arg1: i32, %arg2: memref<1x16x18x4xf32, #tpu.memory_space<vmem>>, %arg3: memref<1x2x18x4xf32, #tpu.memory_space<vmem>>, %arg4: memref<4x4x4x4xf32, #tpu.memory_space<vmem>>, %arg5: memref<1x4xf32, #tpu.memory_space<vmem>>, %arg6: memref<1x2x2x256x4xf32, #tpu.memory_space<vmem>>) attributes {dimension_semantics = [#tpu.dimension_semantics<parallel>, #tpu.dimension_semantics<parallel>], iteration_bounds = array<i64: 2, 1>, scalar_prefetch = 0 : i64, scratch_operands = 0 : i64, tpu.core_type = #tpu.core_type<tc>, window_params = [{transform_indices = @transform_0, window_bounds = array<i64: 1, 16, 18, 4>}, {transform_indices = @transform_1, window_bounds = array<i64: 1, 2, 18, 4>}, {pipeline_mode = #tpu.pipeline_mode<synchronous>, transform_indices = @transform_2, window_bounds = array<i64: 4, 4, 4, 4>}, {pipeline_mode = #tpu.pipeline_mode<synchronous>, transform_indices = @transform_3, window_bounds = array<i64: 1, 4>}, {transform_indices = @transform_4, window_bounds = array<i64: 1, 2, 2, 256, 4>}]} {
    %c0 = arith.constant 0 : index
    %c0_0 = arith.constant 0 : index
    %c0_1 = arith.constant 0 : index
    %c0_2 = arith.constant 0 : index
    %0 = vector.load %arg2[%c0, %c0_0, %c0_1, %c0_2] : memref<1x16x18x4xf32, #tpu.memory_space<vmem>>, vector<1x16x18x4xf32>
    %1 = vector.shape_cast %0 : vector<1x16x18x4xf32> to vector<16x18x4xf32>
    %c0_3 = arith.constant 0 : index
    %c0_4 = arith.constant 0 : index
    %c0_5 = arith.constant 0 : index
    %c0_6 = arith.constant 0 : index
    %2 = vector.load %arg3[%c0_3, %c0_4, %c0_5, %c0_6] : memref<1x2x18x4xf32, #tpu.memory_space<vmem>>, vector<1x2x18x4xf32>
    %3 = vector.shape_cast %2 : vector<1x2x18x4xf32> to vector<2x18x4xf32>
    %4 = tpu.concatenate %1, %3 in 0 : vector<16x18x4xf32>, vector<2x18x4xf32> -> vector<18x18x4xf32>
    %c0_7 = arith.constant 0 : index
    %c0_8 = arith.constant 0 : index
    %5 = vector.load %arg5[%c0_7, %c0_8] : memref<1x4xf32, #tpu.memory_space<vmem>>, vector<1x4xf32>
    %6 = vector.shape_cast %5 : vector<1x4xf32> to vector<4xf32>
    %7 = vector.extract_strided_slice %4 {offsets = [0, 0, 0], sizes = [16, 16, 4], strides = [1, 1, 1]} : vector<18x18x4xf32> to vector<16x16x4xf32>
    %8 = vector.shape_cast %7 : vector<16x16x4xf32> to vector<256x4xf32>
    %9 = vector.extract_strided_slice %4 {offsets = [0, 1, 0], sizes = [16, 16, 4], strides = [1, 1, 1]} : vector<18x18x4xf32> to vector<16x16x4xf32>
    %10 = vector.shape_cast %9 : vector<16x16x4xf32> to vector<256x4xf32>
    %11 = vector.extract_strided_slice %4 {offsets = [0, 2, 0], sizes = [16, 16, 4], strides = [1, 1, 1]} : vector<18x18x4xf32> to vector<16x16x4xf32>
    %12 = vector.shape_cast %11 : vector<16x16x4xf32> to vector<256x4xf32>
    %13 = vector.extract_strided_slice %4 {offsets = [1, 0, 0], sizes = [16, 16, 4], strides = [1, 1, 1]} : vector<18x18x4xf32> to vector<16x16x4xf32>
    %14 = vector.shape_cast %13 : vector<16x16x4xf32> to vector<256x4xf32>
    %15 = vector.extract_strided_slice %4 {offsets = [1, 1, 0], sizes = [16, 16, 4], strides = [1, 1, 1]} : vector<18x18x4xf32> to vector<16x16x4xf32>
    %16 = vector.shape_cast %15 : vector<16x16x4xf32> to vector<256x4xf32>
    %17 = vector.extract_strided_slice %4 {offsets = [1, 2, 0], sizes = [16, 16, 4], strides = [1, 1, 1]} : vector<18x18x4xf32> to vector<16x16x4xf32>
    %18 = vector.shape_cast %17 : vector<16x16x4xf32> to vector<256x4xf32>
    %19 = vector.extract_strided_slice %4 {offsets = [2, 0, 0], sizes = [16, 16, 4], strides = [1, 1, 1]} : vector<18x18x4xf32> to vector<16x16x4xf32>
    %20 = vector.shape_cast %19 : vector<16x16x4xf32> to vector<256x4xf32>
    %21 = vector.extract_strided_slice %4 {offsets = [2, 1, 0], sizes = [16, 16, 4], strides = [1, 1, 1]} : vector<18x18x4xf32> to vector<16x16x4xf32>
    %22 = vector.shape_cast %21 : vector<16x16x4xf32> to vector<256x4xf32>
    %23 = vector.extract_strided_slice %4 {offsets = [2, 2, 0], sizes = [16, 16, 4], strides = [1, 1, 1]} : vector<18x18x4xf32> to vector<16x16x4xf32>
    %24 = vector.shape_cast %23 : vector<16x16x4xf32> to vector<256x4xf32>
    %c0_9 = arith.constant 0 : index
    %c0_10 = arith.constant 0 : index
    %c0_11 = arith.constant 0 : index
    %c0_12 = arith.constant 0 : index
    %25 = vector.load %arg4[%c0_9, %c0_10, %c0_11, %c0_12] : memref<4x4x4x4xf32, #tpu.memory_space<vmem>>, vector<1x1x4x4xf32>
    %26 = vector.shape_cast %25 : vector<1x1x4x4xf32> to vector<4x4xf32>
    %cst = arith.constant dense<0.000000e+00> : vector<256x4xf32>
    %27 = tpu.matmul %8, %26, %cst {dimension_numbers = #tpu.dot_dimension_numbers<[1], [0], [0], [1], [0, 0, 1, 1], [], []>} : vector<256x4xf32>, vector<4x4xf32>, vector<256x4xf32> -> vector<256x4xf32>
    %c0_13 = arith.constant 0 : index
    %c1 = arith.constant 1 : index
    %c0_14 = arith.constant 0 : index
    %c0_15 = arith.constant 0 : index
    %28 = vector.load %arg4[%c0_13, %c1, %c0_14, %c0_15] : memref<4x4x4x4xf32, #tpu.memory_space<vmem>>, vector<1x1x4x4xf32>
    %29 = vector.shape_cast %28 : vector<1x1x4x4xf32> to vector<4x4xf32>
    %cst_16 = arith.constant dense<0.000000e+00> : vector<256x4xf32>
    %30 = tpu.matmul %10, %29, %cst_16 {dimension_numbers = #tpu.dot_dimension_numbers<[1], [0], [0], [1], [0, 0, 1, 1], [], []>} : vector<256x4xf32>, vector<4x4xf32>, vector<256x4xf32> -> vector<256x4xf32>
    %31 = arith.addf %27, %30 : vector<256x4xf32>
    %c0_17 = arith.constant 0 : index
    %c2 = arith.constant 2 : index
    %c0_18 = arith.constant 0 : index
    %c0_19 = arith.constant 0 : index
    %32 = vector.load %arg4[%c0_17, %c2, %c0_18, %c0_19] : memref<4x4x4x4xf32, #tpu.memory_space<vmem>>, vector<1x1x4x4xf32>
    %33 = vector.shape_cast %32 : vector<1x1x4x4xf32> to vector<4x4xf32>
    %cst_20 = arith.constant dense<0.000000e+00> : vector<256x4xf32>
    %34 = tpu.matmul %14, %33, %cst_20 {dimension_numbers = #tpu.dot_dimension_numbers<[1], [0], [0], [1], [0, 0, 1, 1], [], []>} : vector<256x4xf32>, vector<4x4xf32>, vector<256x4xf32> -> vector<256x4xf32>
    %35 = arith.addf %31, %34 : vector<256x4xf32>
    %c0_21 = arith.constant 0 : index
    %c3 = arith.constant 3 : index
    %c0_22 = arith.constant 0 : index
    %c0_23 = arith.constant 0 : index
    %36 = vector.load %arg4[%c0_21, %c3, %c0_22, %c0_23] : memref<4x4x4x4xf32, #tpu.memory_space<vmem>>, vector<1x1x4x4xf32>
    %37 = vector.shape_cast %36 : vector<1x1x4x4xf32> to vector<4x4xf32>
    %cst_24 = arith.constant dense<0.000000e+00> : vector<256x4xf32>
    %38 = tpu.matmul %16, %37, %cst_24 {dimension_numbers = #tpu.dot_dimension_numbers<[1], [0], [0], [1], [0, 0, 1, 1], [], []>} : vector<256x4xf32>, vector<4x4xf32>, vector<256x4xf32> -> vector<256x4xf32>
    %39 = arith.addf %35, %38 : vector<256x4xf32>
    %40 = vector.shape_cast %6 : vector<4xf32> to vector<1x4xf32>
    %41 = vector.broadcast %40 : vector<1x4xf32> to vector<256x4xf32>
    %42 = arith.addf %39, %41 : vector<256x4xf32>
    %c0_25 = arith.constant 0 : index
    %c0_26 = arith.constant 0 : index
    %c0_27 = arith.constant 0 : index
    %c0_28 = arith.constant 0 : index
    %c0_29 = arith.constant 0 : index
    %43 = vector.load %arg6[%c0_25, %c0_26, %c0_27, %c0_28, %c0_29] : memref<1x2x2x256x4xf32, #tpu.memory_space<vmem>>, vector<1x1x1x256x4xf32>
    %44 = vector.shape_cast %43 : vector<1x1x1x256x4xf32> to vector<256x4xf32>
    %45 = vector.shape_cast %42 : vector<256x4xf32> to vector<1x1x1x256x4xf32>
    tpu.vector_store %arg6[%c0_25, %c0_26, %c0_27, %c0_28, %c0_29], %45 {strides = array<i32>} : memref<1x2x2x256x4xf32, #tpu.memory_space<vmem>>, vector<1x1x1x256x4xf32>,
    %c1_30 = arith.constant 1 : index
    %c0_31 = arith.constant 0 : index
    %c0_32 = arith.constant 0 : index
    %c0_33 = arith.constant 0 : index
    %46 = vector.load %arg4[%c1_30, %c0_31, %c0_32, %c0_33] : memref<4x4x4x4xf32, #tpu.memory_space<vmem>>, vector<1x1x4x4xf32>
    %47 = vector.shape_cast %46 : vector<1x1x4x4xf32> to vector<4x4xf32>
    %cst_34 = arith.constant dense<0.000000e+00> : vector<256x4xf32>
    %48 = tpu.matmul %10, %47, %cst_34 {dimension_numbers = #tpu.dot_dimension_numbers<[1], [0], [0], [1], [0, 0, 1, 1], [], []>} : vector<256x4xf32>, vector<4x4xf32>, vector<256x4xf32> -> vector<256x4xf32>
    %c1_35 = arith.constant 1 : index
    %c1_36 = arith.constant 1 : index
    %c0_37 = arith.constant 0 : index
    %c0_38 = arith.constant 0 : index
    %49 = vector.load %arg4[%c1_35, %c1_36, %c0_37, %c0_38] : memref<4x4x4x4xf32, #tpu.memory_space<vmem>>, vector<1x1x4x4xf32>
    %50 = vector.shape_cast %49 : vector<1x1x4x4xf32> to vector<4x4xf32>
    %cst_39 = arith.constant dense<0.000000e+00> : vector<256x4xf32>
    %51 = tpu.matmul %12, %50, %cst_39 {dimension_numbers = #tpu.dot_dimension_numbers<[1], [0], [0], [1], [0, 0, 1, 1], [], []>} : vector<256x4xf32>, vector<4x4xf32>, vector<256x4xf32> -> vector<256x4xf32>
    %52 = arith.addf %48, %51 : vector<256x4xf32>
    %c1_40 = arith.constant 1 : index
    %c2_41 = arith.constant 2 : index
    %c0_42 = arith.constant 0 : index
    %c0_43 = arith.constant 0 : index
    %53 = vector.load %arg4[%c1_40, %c2_41, %c0_42, %c0_43] : memref<4x4x4x4xf32, #tpu.memory_space<vmem>>, vector<1x1x4x4xf32>
    %54 = vector.shape_cast %53 : vector<1x1x4x4xf32> to vector<4x4xf32>
    %cst_44 = arith.constant dense<0.000000e+00> : vector<256x4xf32>
    %55 = tpu.matmul %16, %54, %cst_44 {dimension_numbers = #tpu.dot_dimension_numbers<[1], [0], [0], [1], [0, 0, 1, 1], [], []>} : vector<256x4xf32>, vector<4x4xf32>, vector<256x4xf32> -> vector<256x4xf32>
    %56 = arith.addf %52, %55 : vector<256x4xf32>
    %c1_45 = arith.constant 1 : index
    %c3_46 = arith.constant 3 : index
    %c0_47 = arith.constant 0 : index
    %c0_48 = arith.constant 0 : index
    %57 = vector.load %arg4[%c1_45, %c3_46, %c0_47, %c0_48] : memref<4x4x4x4xf32, #tpu.memory_space<vmem>>, vector<1x1x4x4xf32>
    %58 = vector.shape_cast %57 : vector<1x1x4x4xf32> to vector<4x4xf32>
    %cst_49 = arith.constant dense<0.000000e+00> : vector<256x4xf32>
    %59 = tpu.matmul %18, %58, %cst_49 {dimension_numbers = #tpu.dot_dimension_numbers<[1], [0], [0], [1], [0, 0, 1, 1], [], []>} : vector<256x4xf32>, vector<4x4xf32>, vector<256x4xf32> -> vector<256x4xf32>
    %60 = arith.addf %56, %59 : vector<256x4xf32>
    %61 = vector.shape_cast %6 : vector<4xf32> to vector<1x4xf32>
    %62 = vector.broadcast %61 : vector<1x4xf32> to vector<256x4xf32>
    %63 = arith.addf %60, %62 : vector<256x4xf32>
    %c0_50 = arith.constant 0 : index
    %c0_51 = arith.constant 0 : index
    %c1_52 = arith.constant 1 : index
    %c0_53 = arith.constant 0 : index
    %c0_54 = arith.constant 0 : index
    %64 = vector.load %arg6[%c0_50, %c0_51, %c1_52, %c0_53, %c0_54] : memref<1x2x2x256x4xf32, #tpu.memory_space<vmem>>, vector<1x1x1x256x4xf32>
    %65 = vector.shape_cast %64 : vector<1x1x1x256x4xf32> to vector<256x4xf32>
    %66 = vector.shape_cast %63 : vector<256x4xf32> to vector<1x1x1x256x4xf32>
    tpu.vector_store %arg6[%c0_50, %c0_51, %c1_52, %c0_53, %c0_54], %66 {strides = array<i32>} : memref<1x2x2x256x4xf32, #tpu.memory_space<vmem>>, vector<1x1x1x256x4xf32>,
    %c2_55 = arith.constant 2 : index
    %c0_56 = arith.constant 0 : index
    %c0_57 = arith.constant 0 : index
    %c0_58 = arith.constant 0 : index
    %67 = vector.load %arg4[%c2_55, %c0_56, %c0_57, %c0_58] : memref<4x4x4x4xf32, #tpu.memory_space<vmem>>, vector<1x1x4x4xf32>
    %68 = vector.shape_cast %67 : vector<1x1x4x4xf32> to vector<4x4xf32>
    %cst_59 = arith.constant dense<0.000000e+00> : vector<256x4xf32>
    %69 = tpu.matmul %14, %68, %cst_59 {dimension_numbers = #tpu.dot_dimension_numbers<[1], [0], [0], [1], [0, 0, 1, 1], [], []>} : vector<256x4xf32>, vector<4x4xf32>, vector<256x4xf32> -> vector<256x4xf32>
    %c2_60 = arith.constant 2 : index
    %c1_61 = arith.constant 1 : index
    %c0_62 = arith.constant 0 : index
    %c0_63 = arith.constant 0 : index
    %70 = vector.load %arg4[%c2_60, %c1_61, %c0_62, %c0_63] : memref<4x4x4x4xf32, #tpu.memory_space<vmem>>, vector<1x1x4x4xf32>
    %71 = vector.shape_cast %70 : vector<1x1x4x4xf32> to vector<4x4xf32>
    %cst_64 = arith.constant dense<0.000000e+00> : vector<256x4xf32>
    %72 = tpu.matmul %16, %71, %cst_64 {dimension_numbers = #tpu.dot_dimension_numbers<[1], [0], [0], [1], [0, 0, 1, 1], [], []>} : vector<256x4xf32>, vector<4x4xf32>, vector<256x4xf32> -> vector<256x4xf32>
    %73 = arith.addf %69, %72 : vector<256x4xf32>
    %c2_65 = arith.constant 2 : index
    %c2_66 = arith.constant 2 : index
    %c0_67 = arith.constant 0 : index
    %c0_68 = arith.constant 0 : index
    %74 = vector.load %arg4[%c2_65, %c2_66, %c0_67, %c0_68] : memref<4x4x4x4xf32, #tpu.memory_space<vmem>>, vector<1x1x4x4xf32>
    %75 = vector.shape_cast %74 : vector<1x1x4x4xf32> to vector<4x4xf32>
    %cst_69 = arith.constant dense<0.000000e+00> : vector<256x4xf32>
    %76 = tpu.matmul %20, %75, %cst_69 {dimension_numbers = #tpu.dot_dimension_numbers<[1], [0], [0], [1], [0, 0, 1, 1], [], []>} : vector<256x4xf32>, vector<4x4xf32>, vector<256x4xf32> -> vector<256x4xf32>
    %77 = arith.addf %73, %76 : vector<256x4xf32>
    %c2_70 = arith.constant 2 : index
    %c3_71 = arith.constant 3 : index
    %c0_72 = arith.constant 0 : index
    %c0_73 = arith.constant 0 : index
    %78 = vector.load %arg4[%c2_70, %c3_71, %c0_72, %c0_73] : memref<4x4x4x4xf32, #tpu.memory_space<vmem>>, vector<1x1x4x4xf32>
    %79 = vector.shape_cast %78 : vector<1x1x4x4xf32> to vector<4x4xf32>
    %cst_74 = arith.constant dense<0.000000e+00> : vector<256x4xf32>
    %80 = tpu.matmul %22, %79, %cst_74 {dimension_numbers = #tpu.dot_dimension_numbers<[1], [0], [0], [1], [0, 0, 1, 1], [], []>} : vector<256x4xf32>, vector<4x4xf32>, vector<256x4xf32> -> vector<256x4xf32>
    %81 = arith.addf %77, %80 : vector<256x4xf32>
    %82 = vector.shape_cast %6 : vector<4xf32> to vector<1x4xf32>
    %83 = vector.broadcast %82 : vector<1x4xf32> to vector<256x4xf32>
    %84 = arith.addf %81, %83 : vector<256x4xf32>
    %c0_75 = arith.constant 0 : index
    %c1_76 = arith.constant 1 : index
    %c0_77 = arith.constant 0 : index
    %c0_78 = arith.constant 0 : index
    %c0_79 = arith.constant 0 : index
    %85 = vector.load %arg6[%c0_75, %c1_76, %c0_77, %c0_78, %c0_79] : memref<1x2x2x256x4xf32, #tpu.memory_space<vmem>>, vector<1x1x1x256x4xf32>
    %86 = vector.shape_cast %85 : vector<1x1x1x256x4xf32> to vector<256x4xf32>
    %87 = vector.shape_cast %84 : vector<256x4xf32> to vector<1x1x1x256x4xf32>
    tpu.vector_store %arg6[%c0_75, %c1_76, %c0_77, %c0_78, %c0_79], %87 {strides = array<i32>} : memref<1x2x2x256x4xf32, #tpu.memory_space<vmem>>, vector<1x1x1x256x4xf32>,
    %c3_80 = arith.constant 3 : index
    %c0_81 = arith.constant 0 : index
    %c0_82 = arith.constant 0 : index
    %c0_83 = arith.constant 0 : index
    %88 = vector.load %arg4[%c3_80, %c0_81, %c0_82, %c0_83] : memref<4x4x4x4xf32, #tpu.memory_space<vmem>>, vector<1x1x4x4xf32>
    %89 = vector.shape_cast %88 : vector<1x1x4x4xf32> to vector<4x4xf32>
    %cst_84 = arith.constant dense<0.000000e+00> : vector<256x4xf32>
    %90 = tpu.matmul %16, %89, %cst_84 {dimension_numbers = #tpu.dot_dimension_numbers<[1], [0], [0], [1], [0, 0, 1, 1], [], []>} : vector<256x4xf32>, vector<4x4xf32>, vector<256x4xf32> -> vector<256x4xf32>
    %c3_85 = arith.constant 3 : index
    %c1_86 = arith.constant 1 : index
    %c0_87 = arith.constant 0 : index
    %c0_88 = arith.constant 0 : index
    %91 = vector.load %arg4[%c3_85, %c1_86, %c0_87, %c0_88] : memref<4x4x4x4xf32, #tpu.memory_space<vmem>>, vector<1x1x4x4xf32>
    %92 = vector.shape_cast %91 : vector<1x1x4x4xf32> to vector<4x4xf32>
    %cst_89 = arith.constant dense<0.000000e+00> : vector<256x4xf32>
    %93 = tpu.matmul %18, %92, %cst_89 {dimension_numbers = #tpu.dot_dimension_numbers<[1], [0], [0], [1], [0, 0, 1, 1], [], []>} : vector<256x4xf32>, vector<4x4xf32>, vector<256x4xf32> -> vector<256x4xf32>
    %94 = arith.addf %90, %93 : vector<256x4xf32>
    %c3_90 = arith.constant 3 : index
    %c2_91 = arith.constant 2 : index
    %c0_92 = arith.constant 0 : index
    %c0_93 = arith.constant 0 : index
    %95 = vector.load %arg4[%c3_90, %c2_91, %c0_92, %c0_93] : memref<4x4x4x4xf32, #tpu.memory_space<vmem>>, vector<1x1x4x4xf32>
    %96 = vector.shape_cast %95 : vector<1x1x4x4xf32> to vector<4x4xf32>
    %cst_94 = arith.constant dense<0.000000e+00> : vector<256x4xf32>
    %97 = tpu.matmul %22, %96, %cst_94 {dimension_numbers = #tpu.dot_dimension_numbers<[1], [0], [0], [1], [0, 0, 1, 1], [], []>} : vector<256x4xf32>, vector<4x4xf32>, vector<256x4xf32> -> vector<256x4xf32>
    %98 = arith.addf %94, %97 : vector<256x4xf32>
    %c3_95 = arith.constant 3 : index
    %c3_96 = arith.constant 3 : index
    %c0_97 = arith.constant 0 : index
    %c0_98 = arith.constant 0 : index
    %99 = vector.load %arg4[%c3_95, %c3_96, %c0_97, %c0_98] : memref<4x4x4x4xf32, #tpu.memory_space<vmem>>, vector<1x1x4x4xf32>
    %100 = vector.shape_cast %99 : vector<1x1x4x4xf32> to vector<4x4xf32>
    %cst_99 = arith.constant dense<0.000000e+00> : vector<256x4xf32>
    %101 = tpu.matmul %24, %100, %cst_99 {dimension_numbers = #tpu.dot_dimension_numbers<[1], [0], [0], [1], [0, 0, 1, 1], [], []>} : vector<256x4xf32>, vector<4x4xf32>, vector<256x4xf32> -> vector<256x4xf32>
    %102 = arith.addf %98, %101 : vector<256x4xf32>
    %103 = vector.shape_cast %6 : vector<4xf32> to vector<1x4xf32>
    %104 = vector.broadcast %103 : vector<1x4xf32> to vector<256x4xf32>
    %105 = arith.addf %102, %104 : vector<256x4xf32>
    %c0_100 = arith.constant 0 : index
    %c1_101 = arith.constant 1 : index
    %c1_102 = arith.constant 1 : index
    %c0_103 = arith.constant 0 : index
    %c0_104 = arith.constant 0 : index
    %106 = vector.load %arg6[%c0_100, %c1_101, %c1_102, %c0_103, %c0_104] : memref<1x2x2x256x4xf32, #tpu.memory_space<vmem>>, vector<1x1x1x256x4xf32>
    %107 = vector.shape_cast %106 : vector<1x1x1x256x4xf32> to vector<256x4xf32>
    %108 = vector.shape_cast %105 : vector<256x4xf32> to vector<1x1x1x256x4xf32>
    tpu.vector_store %arg6[%c0_100, %c1_101, %c1_102, %c0_103, %c0_104], %108 {strides = array<i32>} : memref<1x2x2x256x4xf32, #tpu.memory_space<vmem>>, vector<1x1x1x256x4xf32>,
    return
  }
  func.func @transform_0(%arg0: i32, %arg1: i32) -> (i32, i32, i32, i32) {
    %c0_i32 = arith.constant 0 : i32
    %c0_i32_0 = arith.constant 0 : i32
    %c0_i32_1 = arith.constant 0 : i32
    return %arg0, %arg1, %c0_i32, %c0_i32_0 : i32, i32, i32, i32
  }
  func.func @transform_1(%arg0: i32, %arg1: i32) -> (i32, i32, i32, i32) {
    %c1_i32 = arith.constant 1 : i32
    %0 = arith.addi %arg1, %c1_i32 : i32
    %c8_i32 = arith.constant 8 : i32
    %1 = arith.muli %0, %c8_i32 : i32
    %c0_i32 = arith.constant 0 : i32
    %c0_i32_0 = arith.constant 0 : i32
    %c0_i32_1 = arith.constant 0 : i32
    return %arg0, %1, %c0_i32, %c0_i32_0 : i32, i32, i32, i32
  }
  func.func @transform_2(%arg0: i32, %arg1: i32) -> (i32, i32, i32, i32) {
    %c0_i32 = arith.constant 0 : i32
    %c0_i32_0 = arith.constant 0 : i32
    %c0_i32_1 = arith.constant 0 : i32
    %c0_i32_2 = arith.constant 0 : i32
    %c0_i32_3 = arith.constant 0 : i32
    return %c0_i32, %c0_i32_0, %c0_i32_1, %c0_i32_2 : i32, i32, i32, i32
  }
  func.func @transform_3(%arg0: i32, %arg1: i32) -> (i32, i32) {
    %c0_i32 = arith.constant 0 : i32
    %c0_i32_0 = arith.constant 0 : i32
    %c0_i32_1 = arith.constant 0 : i32
    return %c0_i32, %c0_i32_0 : i32, i32
  }
  func.func @transform_4(%arg0: i32, %arg1: i32) -> (i32, i32, i32, i32, i32) {
    %c0_i32 = arith.constant 0 : i32
    %c0_i32_0 = arith.constant 0 : i32
    %c0_i32_1 = arith.constant 0 : i32
    %c0_i32_2 = arith.constant 0 : i32
    return %arg0, %c0_i32, %c0_i32_0, %arg1, %c0_i32_1 : i32, i32, i32, i32, i32
  }
}

</mosaic_0001>

<llo_original>
// kernel: tpu_custom_call.1
$region0: #{tpu_custom_call.1}
  #allocation0 [shape = 'u32[]', space=smem, size = 0x4, offset = 0x4, fixed_abs, tag = 'smem constant byte address 0x4 - core index']
  #allocation1 [shape = 'u32[144,128]{1,0:T(1,128)}', space=vmem, size = 0x12000, scoped, tag = 'internal scratch']
  %s0 = inlined_call_operand.vmem [shape: f32[2,18,18,4], index: 0, kind: input, shape index: {}]
  %s1 = inlined_call_operand.vmem [shape: f32[2,18,18,4], index: 1, kind: input, shape index: {}]
  %s2 = inlined_call_operand.vmem [shape: f32[4,4,4,4], index: 2, kind: input, shape index: {}]
  %s3 = inlined_call_operand.vmem [shape: f32[1,4], index: 3, kind: input, shape index: {}]
  %s4 = inlined_call_operand.vmem [shape: f32[2,2,2,256,4], index: 4, kind: output, shape index: {}]
  %s5 = sld [smem:[#allocation0]]
  $region49: #{tpu_custom_call.1} parent=0
    _
  %s7 = ssub.s32 1, %s5
  %s8 = scalar_select 0, %s7, %s5
  loop: start=0, step=1, limit=4
  $region2: #{tpu_custom_call.1} parent=0 // loop_pre_header
    _
  $region3: #{tpu_custom_call.1} parent=0 // loop_header
    %s10 = sphi 0, %s14
    %p11 = scmp.ge.s32.totalorder %s10, 4
    %s17 = sphi 0, %s29
    %s18 = sphi 0, %s25
    %s19 = sphi 0, %s17
    %s20 = sphi 0, %s18
    %s21 = sphi 0, %s19
    %s22 = sphi 0, %s20
    %s34 = sphi 0, %s36
    %s37 = sphi 0, %s34
    %s38 = sphi 0, %s37
    %s54 = sphi 0, %s38
    %s66 = sphi 0, %s68
    %s69 = sphi 0, %s66
    %s70 = sphi 0, %s69
    %s86 = sphi 0, %s70
    %s90 = sphi 0, %s90
    %s92 = sphi 0, %s90
    %s93 = sphi 0, %s92
    %s107 = sphi 0, %s93
    %s111 = sphi 0, %s111
    %s113 = sphi 0, %s111
    %s114 = sphi 0, %s113
    %s128 = sphi 0, %s114
    %s136 = sphi 0, %s138
    %s139 = sphi 0, %s136
    %s140 = sphi 0, %s139
    %s156 = sphi 0, %s140
  $region4: #{tpu_custom_call.1} parent=0 // loop_header_branch
    %13 = sbr.rel (%p11) target = $region8
  $region5: #{tpu_custom_call.1} parent=0 // loop_body
    %s15 = ssub.s32 %s10, 1
    %s16 = ssub.s32 %s10, 2
    %s23 = sadd.s32 1, %s18
    %p24 = scmp.ge.s32.totalorder %s23, 1
    %s25 = scalar_select %p24, 0, %s23
    %s26 = sadd.s32 1, %s17
    %s27 = scalar_select %p24, %s26, %s17
    %p28 = scmp.ge.s32.totalorder %s27, 2
    %s29 = scalar_select %p28, 0, %s27
    %s30 = ssub.s32 %s17, %s29
    %s31 = ssub.s32 %s18, %s25
    %s32 = sor.u32 %s30, %s31
    %p33 = scmp.eq.s32.totalorder %s32, 0
    %s35 = sadd.s32 %s34, 1
    %s36 = scalar_select %p33, %s34, %s35
    %p39 = pneg %p33
    %p40 = scmp.eq.s32.totalorder %s10, 1
    %p41 = por %p39, %p40
    %p42 = scmp.ne.s32.totalorder %s34, %s37
    %p43 = scmp.eq.s32.totalorder %s10, 0
    %p44 = por %p42, %p43
    %p45 = scmp.ne.s32.totalorder %s34, %s37
    %p46 = scmp.eq.s32.totalorder %s15, 1
    %p47 = por %p45, %p46
    %p48 = scmp.ne.s32.totalorder %s37, %s38
    %p49 = scmp.eq.s32.totalorder %s15, 0
    %p50 = por %p48, %p49
    %p51 = scmp.ne.s32.totalorder %s37, %s38
    %p52 = scmp.eq.s32.totalorder %s16, 1
    %p53 = por %p51, %p52
    %p55 = scmp.ne.s32.totalorder %s38, %s54
    %p56 = scmp.eq.s32.totalorder %s16, 0
    %p57 = por %p55, %p56
    %s58 = sadd.s32 %s18, 1
    %s59 = smul.u32 %s58, 8
    %s60 = sadd.s32 %s25, 1
    %s61 = smul.u32 %s60, 8
    %s62 = ssub.s32 %s17, %s29
    %s63 = ssub.s32 %s59, %s61
    %s64 = sor.u32 %s62, %s63
    %p65 = scmp.eq.s32.totalorder %s64, 0
    %s67 = sadd.s32 %s66, 1
    %s68 = scalar_select %p65, %s66, %s67
    %p71 = pneg %p65
    %p72 = scmp.eq.s32.totalorder %s10, 1
    %p73 = por %p71, %p72
    %p74 = scmp.ne.s32.totalorder %s66, %s69
    %p75 = scmp.eq.s32.totalorder %s10, 0
    %p76 = por %p74, %p75
    %p77 = scmp.ne.s32.totalorder %s66, %s69
    %p78 = scmp.eq.s32.totalorder %s15, 1
    %p79 = por %p77, %p78
    %p80 = scmp.ne.s32.totalorder %s69, %s70
    %p81 = scmp.eq.s32.totalorder %s15, 0
    %p82 = por %p80, %p81
    %p83 = scmp.ne.s32.totalorder %s69, %s70
    %p84 = scmp.eq.s32.totalorder %s16, 1
    %p85 = por %p83, %p84
    %p87 = scmp.ne.s32.totalorder %s70, %s86
    %p88 = scmp.eq.s32.totalorder %s16, 0
    %p89 = por %p87, %p88
    %s91 = sadd.s32 %s90, 1
    %p94 = scmp.eq.s32.totalorder %s10, 1
    %p95 = scmp.ne.s32.totalorder %s90, %s92
    %p96 = scmp.eq.s32.totalorder %s10, 0
    %p97 = por %p95, %p96
    %p98 = scmp.ne.s32.totalorder %s90, %s92
    %p99 = scmp.eq.s32.totalorder %s15, 1
    %p100 = por %p98, %p99
    %p101 = scmp.ne.s32.totalorder %s92, %s93
    %p102 = scmp.eq.s32.totalorder %s15, 0
    %p103 = por %p101, %p102
    %p104 = scmp.ne.s32.totalorder %s92, %s93
    %p105 = scmp.eq.s32.totalorder %s16, 1
    %p106 = por %p104, %p105
    %p108 = scmp.ne.s32.totalorder %s93, %s107
    %p109 = scmp.eq.s32.totalorder %s16, 0
    %p110 = por %p108, %p109
    %s112 = sadd.s32 %s111, 1
    %p115 = scmp.eq.s32.totalorder %s10, 1
    %p116 = scmp.ne.s32.totalorder %s111, %s113
    %p117 = scmp.eq.s32.totalorder %s10, 0
    %p118 = por %p116, %p117
    %p119 = scmp.ne.s32.totalorder %s111, %s113
    %p120 = scmp.eq.s32.totalorder %s15, 1
    %p121 = por %p119, %p120
    %p122 = scmp.ne.s32.totalorder %s113, %s114
    %p123 = scmp.eq.s32.totalorder %s15, 0
    %p124 = por %p122, %p123
    %p125 = scmp.ne.s32.totalorder %s113, %s114
    %p126 = scmp.eq.s32.totalorder %s16, 1
    %p127 = por %p125, %p126
    %p129 = scmp.ne.s32.totalorder %s114, %s128
    %p130 = scmp.eq.s32.totalorder %s16, 0
    %p131 = por %p129, %p130
    %s132 = ssub.s32 %s17, %s29
    %s133 = ssub.s32 %s18, %s25
    %s134 = sor.u32 %s132, %s133
    %p135 = scmp.eq.s32.totalorder %s134, 0
    %s137 = sadd.s32 %s136, 1
    %s138 = scalar_select %p135, %s136, %s137
    %p141 = pneg %p135
    %p142 = scmp.eq.s32.totalorder %s10, 1
    %p143 = por %p141, %p142
    %p144 = scmp.ne.s32.totalorder %s136, %s139
    %p145 = scmp.eq.s32.totalorder %s10, 0
    %p146 = por %p144, %p145
    %p147 = scmp.ne.s32.totalorder %s136, %s139
    %p148 = scmp.eq.s32.totalorder %s15, 1
    %p149 = por %p147, %p148
    %p150 = scmp.ne.s32.totalorder %s139, %s140
    %p151 = scmp.eq.s32.totalorder %s15, 0
    %p152 = por %p150, %p151
    %p153 = scmp.ne.s32.totalorder %s139, %s140
    %p154 = scmp.eq.s32.totalorder %s16, 1
    %p155 = por %p153, %p154
    %p157 = scmp.ne.s32.totalorder %s140, %s156
    %p158 = scmp.eq.s32.totalorder %s16, 0
    %p159 = por %p157, %p158
    %p160 = scmp.le.s32.totalorder 1, %s10
    %p161 = scmp.lt.s32.totalorder %s10, 3
    %p162 = pnand %p160, %p161
    %p163 = pneg %p162
    // Predicated region
    $region9: #{tpu_custom_call.1} parent=5 // pred_check
      _
    $region10: #{tpu_custom_call.1} parent=5 // pred_check_branch
      %165 = sbr.rel (%p162) target = $region12
    $region11: #{tpu_custom_call.1} parent=5 // pred_region
      %s166 = ssub.s32 %s10, 1
      // Predicated region
      $region13: #{tpu_custom_call.1} parent=11 // pred_check
        %p167 = pneg %p103
      $region14: #{tpu_custom_call.1} parent=11 // pred_check_branch
        %169 = sbr.rel (%p167) target = $region16
      $region15: #{tpu_custom_call.1} parent=11 // pred_region
        _
      $region16: #{tpu_custom_call.1} parent=11 // pred_fallthru
        _
      // Predicated region
      $region17: #{tpu_custom_call.1} parent=11 // pred_check
        %p170 = pneg %p124
      $region18: #{tpu_custom_call.1} parent=11 // pred_check_branch
        %172 = sbr.rel (%p170) target = $region20
      $region19: #{tpu_custom_call.1} parent=11 // pred_region
        _
      $region20: #{tpu_custom_call.1} parent=11 // pred_fallthru
        _
    $region12: #{tpu_custom_call.1} parent=5 // pred_fallthru
      _
    %p173 = scmp.lt.s32.totalorder %s10, 2
    // Predicated region
    $region21: #{tpu_custom_call.1} parent=5 // pred_check
      %p174 = pneg %p173
    $region22: #{tpu_custom_call.1} parent=5 // pred_check_branch
      %176 = sbr.rel (%p174) target = $region24
    $region23: #{tpu_custom_call.1} parent=5 // pred_region
      // Predicated region
      $region25: #{tpu_custom_call.1} parent=23 // pred_check
        %p177 = pneg %p44
      $region26: #{tpu_custom_call.1} parent=23 // pred_check_branch
        %179 = sbr.rel (%p177) target = $region28
      $region27: #{tpu_custom_call.1} parent=23 // pred_region
        %s180 = smul.u32 16, %s18
        %s181 = ssub.s32 18, %s180
        %p182 = scmp.lt.s32.totalorder %s181, 16
        %s183 = scalar_select %p182, %s181, 16
        %s184 = smul.u32 128, %s183
        %s185 = smul.u32 %s184, 3
        %p186 = scmp.lt.s32.totalorder %s17, 1
        %s187 = scalar_select %p186, %s17, 1
        %p188 = scmp.lt.s32.totalorder %s180, 17
        %s189 = scalar_select %p188, %s180, 17
        %s190 = smul.addr %s189, 3
        %s191 = smul.addr %s187, 54
        %s192 = sadd.s32 %s190, %s191
        %s193 = smul.addr %s192, 8
        %s194 = scalar_lea.vmem %s0, %s193
        %s195 = smul.u32 16, %s18
        %s196 = ssub.s32 18, %s195
        %p197 = scmp.lt.s32.totalorder %s196, 16
        %s198 = scalar_select %p197, %s196, 16
        %s199 = smul.u32 128, %s198
        %s200 = smul.u32 %s199, 3
      $region28: #{tpu_custom_call.1} parent=23 // pred_fallthru
        _
      // Predicated region
      $region29: #{tpu_custom_call.1} parent=23 // pred_check
        %p201 = pneg %p76
      $region30: #{tpu_custom_call.1} parent=23 // pred_check_branch
        %203 = sbr.rel (%p201) target = $region32
      $region31: #{tpu_custom_call.1} parent=23 // pred_region
        %s204 = sadd.s32 %s18, 1
        %s205 = smul.u32 %s204, 8
        %s206 = smul.u32 2, %s205
        %p207 = scmp.lt.s32.totalorder %s17, 1
        %s208 = scalar_select %p207, %s17, 1
        %p209 = scmp.lt.s32.totalorder %s206, 17
        %s210 = scalar_select %p209, %s206, 17
        %s211 = smul.addr %s210, 3
        %s212 = smul.addr %s208, 54
        %s213 = sadd.s32 %s211, %s212
        %s214 = smul.addr %s213, 8
        %s215 = scalar_lea.vmem %s1, %s214
        %s216 = sadd.s32 %s18, 1
        %s217 = smul.u32 %s216, 8
        %s218 = smul.u32 2, %s217
      $region32: #{tpu_custom_call.1} parent=23 // pred_fallthru
        _
    $region24: #{tpu_custom_call.1} parent=5 // pred_fallthru
      _
    %p219 = scmp.le.s32.totalorder 1, %s10
    %p220 = scmp.lt.s32.totalorder %s10, 3
    %p221 = pnand %p219, %p220
    %p222 = pneg %p221
    // Predicated region
    $region33: #{tpu_custom_call.1} parent=5 // pred_check
      _
    $region34: #{tpu_custom_call.1} parent=5 // pred_check_branch
      %224 = sbr.rel (%p221) target = $region36
    $region35: #{tpu_custom_call.1} parent=5 // pred_region
      %s225 = ssub.s32 %s10, 1
      %s226 = smul.u32 16, %s20
      %s227 = ssub.s32 18, %s226
      %p228 = scmp.lt.s32.totalorder %s227, 16
      %s229 = scalar_select %p228, %s227, 16
      %s230 = smul.u32 128, %s229
      %s231 = smul.u32 %s230, 3
      %p232 = scmp.lt.s32.totalorder %s19, 1
      %s233 = scalar_select %p232, %s19, 1
      %p234 = scmp.lt.s32.totalorder %s226, 17
      %s235 = scalar_select %p234, %s226, 17
      %s236 = smul.addr %s235, 3
      %s237 = smul.addr %s233, 54
      %s238 = sadd.s32 %s236, %s237
      %s239 = smul.addr %s238, 8
      %s240 = scalar_lea.vmem %s0, %s239
      %p241 = pneg %p50
      %p242 = pneg %p47
      %s243 = sadd.s32 %s20, 1
      %s244 = smul.u32 %s243, 8
      %s245 = smul.u32 2, %s244
      %p246 = scmp.lt.s32.totalorder %s19, 1
      %s247 = scalar_select %p246, %s19, 1
      %p248 = scmp.lt.s32.totalorder %s245, 17
      %s249 = scalar_select %p248, %s245, 17
      %s250 = smul.addr %s249, 3
      %s251 = smul.addr %s247, 54
      %s252 = sadd.s32 %s250, %s251
      %s253 = smul.addr %s252, 8
      %s254 = scalar_lea.vmem %s1, %s253
      %p255 = pneg %p82
      %p256 = pneg %p79
      %p257 = pneg %p103
      %p258 = pneg %p100
      %p259 = pneg %p124
      %p260 = pneg %p121
      %p261 = pneg %p152
      %p262 = pneg %p149
      %s263 = smul.u32 32, %s20
      %p264 = scmp.lt.s32.totalorder %s19, 1
      %s265 = scalar_select %p264, %s19, 1
      %p266 = scmp.lt.s32.totalorder %s263, 31
      %s267 = scalar_select %p266, %s263, 31
      %s268 = smul.addr %s265, 128
      %s269 = sadd.s32 %s267, %s268
      %s270 = smul.addr %s269, 8
      %s271 = scalar_lea.vmem %s4, %s270
      %s272 = smul.u32 16, %s20
      %s273 = ssub.s32 18, %s272
      %p274 = scmp.lt.s32.totalorder %s273, 16
      %s275 = scalar_select %p274, %s273, 16
      %s276 = smul.u32 128, %s275
      %s277 = smul.u32 %s276, 3
      %p278 = scmp.lt.s32.totalorder %s19, 1
      %s279 = scalar_select %p278, %s19, 1
      %p280 = scmp.lt.s32.totalorder %s272, 17
      %s281 = scalar_select %p280, %s272, 17
      %s282 = smul.addr %s281, 3
      %s283 = smul.addr %s279, 54
      %s284 = sadd.s32 %s282, %s283
      %s285 = smul.addr %s284, 8
      %s286 = scalar_lea.vmem %s0, %s285
      %s287 = smul.u32 16, %s20
      %s288 = ssub.s32 18, %s287
      %p289 = scmp.lt.s32.totalorder %s288, 16
      %s290 = scalar_select %p289, %s288, 16
      %s291 = smul.u32 128, %s290
      %s292 = smul.u32 %s291, 3
      %s293 = sadd.s32 %s20, 1
      %s294 = smul.u32 %s293, 8
      %s295 = smul.u32 2, %s294
      %p296 = scmp.lt.s32.totalorder %s19, 1
      %s297 = scalar_select %p296, %s19, 1
      %p298 = scmp.lt.s32.totalorder %s295, 17
      %s299 = scalar_select %p298, %s295, 17
      %s300 = smul.addr %s299, 3
      %s301 = smul.addr %s297, 54
      %s302 = sadd.s32 %s300, %s301
      %s303 = smul.addr %s302, 8
      %s304 = scalar_lea.vmem %s1, %s303
      %s305 = sadd.s32 %s20, 1
      %s306 = smul.u32 %s305, 8
      %s307 = smul.u32 2, %s306
      %s308 = smul.u32 32, %s20
      %p309 = scmp.lt.s32.totalorder %s19, 1
      %s310 = scalar_select %p309, %s19, 1
      %p311 = scmp.lt.s32.totalorder %s308, 31
      %s312 = scalar_select %p311, %s308, 31
      %s313 = smul.addr %s310, 128
      %s314 = sadd.s32 %s312, %s313
      %s315 = smul.addr %s314, 8
      %s316 = scalar_lea.vmem %s4, %s315
      %s317 = smul.u32 32, %s20
      %v318 = vld [vmem:[%s286] sm:$0xff]
      %v319 = vld [vmem:[%s286 + $0x8] sm:$0xff]
      %v320 = vld [vmem:[%s286 + $0x10] sm:$0x3]
      %v321 = vld [vmem:[%s286 + $0x18] sm:$0xff]
      %v322 = vld [vmem:[%s286 + $0x20] sm:$0xff]
      %v323 = vld [vmem:[%s286 + $0x28] sm:$0x3]
      %v324 = vld [vmem:[%s286 + $0x30] sm:$0xff]
      %v325 = vld [vmem:[%s286 + $0x38] sm:$0xff]
      %v326 = vld [vmem:[%s286 + $0x40] sm:$0x3]
      %v327 = vld [vmem:[%s286 + $0x48] sm:$0xff]
      %v328 = vld [vmem:[%s286 + $0x50] sm:$0xff]
      %v329 = vld [vmem:[%s286 + $0x58] sm:$0x3]
      %v330 = vld [vmem:[%s286 + $0x60] sm:$0xff]
      %v331 = vld [vmem:[%s286 + $0x68] sm:$0xff]
      %v332 = vld [vmem:[%s286 + $0x70] sm:$0x3]
      %v333 = vld [vmem:[%s286 + $0x78] sm:$0xff]
      %v334 = vld [vmem:[%s286 + $0x80] sm:$0xff]
      %v335 = vld [vmem:[%s286 + $0x88] sm:$0x3]
      %v336 = vld [vmem:[%s286 + $0x90] sm:$0xff]
      %v337 = vld [vmem:[%s286 + $0x98] sm:$0xff]
      %v338 = vld [vmem:[%s286 + $0xa0] sm:$0x3]
      %v339 = vld [vmem:[%s286 + $0xa8] sm:$0xff]
      %v340 = vld [vmem:[%s286 + $0xb0] sm:$0xff]
      %v341 = vld [vmem:[%s286 + $0xb8] sm:$0x3]
      %v342 = vld [vmem:[%s286 + $0xc0] sm:$0xff]
      %v343 = vld [vmem:[%s286 + $0xc8] sm:$0xff]
      %v344 = vld [vmem:[%s286 + $0xd0] sm:$0x3]
      %v345 = vld [vmem:[%s286 + $0xd8] sm:$0xff]
      %v346 = vld [vmem:[%s286 + $0xe0] sm:$0xff]
      %v347 = vld [vmem:[%s286 + $0xe8] sm:$0x3]
      %v348 = vld [vmem:[%s286 + $0xf0] sm:$0xff]
      %v349 = vld [vmem:[%s286 + $0xf8] sm:$0xff]
      %v350 = vld [vmem:[%s286 + $0x100] sm:$0x3]
      %v351 = vld [vmem:[%s286 + $0x108] sm:$0xff]
      %v352 = vld [vmem:[%s286 + $0x110] sm:$0xff]
      %v353 = vld [vmem:[%s286 + $0x118] sm:$0x3]
      %v354 = vld [vmem:[%s286 + $0x120] sm:$0xff]
      %v355 = vld [vmem:[%s286 + $0x128] sm:$0xff]
      %v356 = vld [vmem:[%s286 + $0x130] sm:$0x3]
      %v357 = vld [vmem:[%s286 + $0x138] sm:$0xff]
      %v358 = vld [vmem:[%s286 + $0x140] sm:$0xff]
      %v359 = vld [vmem:[%s286 + $0x148] sm:$0x3]
      %v360 = vld [vmem:[%s286 + $0x150] sm:$0xff]
      %v361 = vld [vmem:[%s286 + $0x158] sm:$0xff]
      %v362 = vld [vmem:[%s286 + $0x160] sm:$0x3]
      %v363 = vld [vmem:[%s286 + $0x168] sm:$0xff]
      %v364 = vld [vmem:[%s286 + $0x170] sm:$0xff]
      %v365 = vld [vmem:[%s286 + $0x178] sm:$0x3]
      %v366 = vld [vmem:[%s304] sm:$0xff]
      %v367 = vld [vmem:[%s304 + $0x8] sm:$0xff]
      %v368 = vld [vmem:[%s304 + $0x10] sm:$0x3]
      %v369 = vld [vmem:[%s304 + $0x18] sm:$0xff]
      %v370 = vld [vmem:[%s304 + $0x20] sm:$0xff]
      %v371 = vld [vmem:[%s304 + $0x28] sm:$0x3]
      %v372 = vld [vmem:[%s3] sm:$0x1]
      %vm421 = vcmask 1046528
      %v422 = vrot.slane %v318, 1
      %v423 = vrot.slane %v319, 1
      %v424 = vsel %vm421, %v422, %v423
      %v425 = vrot.slane %v320, 1
      %v426 = vsel %vm421, %v423, %v425
      %v427 = vrot.slane %v321, 1
      %v428 = vrot.slane %v322, 1
      %v429 = vsel %vm421, %v427, %v428
      %v430 = vrot.slane %v323, 1
      %v431 = vsel %vm421, %v428, %v430
      %v432 = vrot.slane %v324, 1
      %v433 = vrot.slane %v325, 1
      %v434 = vsel %vm421, %v432, %v433
      %v435 = vrot.slane %v326, 1
      %v436 = vsel %vm421, %v433, %v435
      %v437 = vrot.slane %v327, 1
      %v438 = vrot.slane %v328, 1
      %v439 = vsel %vm421, %v437, %v438
      %v440 = vrot.slane %v329, 1
      %v441 = vsel %vm421, %v438, %v440
      %v442 = vrot.slane %v330, 1
      %v443 = vrot.slane %v331, 1
      %v444 = vsel %vm421, %v442, %v443
      %v445 = vrot.slane %v332, 1
      %v446 = vsel %vm421, %v443, %v445
      %v447 = vrot.slane %v333, 1
      %v448 = vrot.slane %v334, 1
      %v449 = vsel %vm421, %v447, %v448
      %v450 = vrot.slane %v335, 1
      %v451 = vsel %vm421, %v448, %v450
      %v452 = vrot.slane %v336, 1
      %v453 = vrot.slane %v337, 1
      %v454 = vsel %vm421, %v452, %v453
      %v455 = vrot.slane %v338, 1
      %v456 = vsel %vm421, %v453, %v455
      %v457 = vrot.slane %v339, 1
      %v458 = vrot.slane %v340, 1
      %v459 = vsel %vm421, %v457, %v458
      %v460 = vrot.slane %v341, 1
      %v461 = vsel %vm421, %v458, %v460
      %v462 = vrot.slane %v342, 1
      %v463 = vrot.slane %v343, 1
      %v464 = vsel %vm421, %v462, %v463
      %v465 = vrot.slane %v344, 1
      %v466 = vsel %vm421, %v463, %v465
      %v467 = vrot.slane %v345, 1
      %v468 = vrot.slane %v346, 1
      %v469 = vsel %vm421, %v467, %v468
      %v470 = vrot.slane %v347, 1
      %v471 = vsel %vm421, %v468, %v470
      %v472 = vrot.slane %v348, 1
      %v473 = vrot.slane %v349, 1
      %v474 = vsel %vm421, %v472, %v473
      %v475 = vrot.slane %v350, 1
      %v476 = vsel %vm421, %v473, %v475
      %v477 = vrot.slane %v351, 1
      %v478 = vrot.slane %v352, 1
      %v479 = vsel %vm421, %v477, %v478
      %v480 = vrot.slane %v353, 1
      %v481 = vsel %vm421, %v478, %v480
      %v482 = vrot.slane %v354, 1
      %v483 = vrot.slane %v355, 1
      %v484 = vsel %vm421, %v482, %v483
      %v485 = vrot.slane %v356, 1
      %v486 = vsel %vm421, %v483, %v485
      %v487 = vrot.slane %v357, 1
      %v488 = vrot.slane %v358, 1
      %v489 = vsel %vm421, %v487, %v488
      %v490 = vrot.slane %v359, 1
      %v491 = vsel %vm421, %v488, %v490
      %v492 = vrot.slane %v360, 1
      %v493 = vrot.slane %v361, 1
      %v494 = vsel %vm421, %v492, %v493
      %v495 = vrot.slane %v362, 1
      %v496 = vsel %vm421, %v493, %v495
      %v497 = vrot.slane %v363, 1
      %v498 = vrot.slane %v364, 1
      %v499 = vsel %vm421, %v497, %v498
      %v500 = vrot.slane %v365, 1
      %v501 = vsel %vm421, %v498, %v500
      %vm502 = vcmask 1045504
      %v503 = vrot.slane %v318, 2
      %v504 = vrot.slane %v319, 2
      %v505 = vsel %vm502, %v503, %v504
      %v506 = vrot.slane %v320, 2
      %v507 = vsel %vm502, %v504, %v506
      %v508 = vrot.slane %v321, 2
      %v509 = vrot.slane %v322, 2
      %v510 = vsel %vm502, %v508, %v509
      %v511 = vrot.slane %v323, 2
      %v512 = vsel %vm502, %v509, %v511
      %v513 = vrot.slane %v324, 2
      %v514 = vrot.slane %v325, 2
      %v515 = vsel %vm502, %v513, %v514
      %v516 = vrot.slane %v326, 2
      %v517 = vsel %vm502, %v514, %v516
      %v518 = vrot.slane %v327, 2
      %v519 = vrot.slane %v328, 2
      %v520 = vsel %vm502, %v518, %v519
      %v521 = vrot.slane %v329, 2
      %v522 = vsel %vm502, %v519, %v521
      %v523 = vrot.slane %v330, 2
      %v524 = vrot.slane %v331, 2
      %v525 = vsel %vm502, %v523, %v524
      %v526 = vrot.slane %v332, 2
      %v527 = vsel %vm502, %v524, %v526
      %v528 = vrot.slane %v333, 2
      %v529 = vrot.slane %v334, 2
      %v530 = vsel %vm502, %v528, %v529
      %v531 = vrot.slane %v335, 2
      %v532 = vsel %vm502, %v529, %v531
      %v533 = vrot.slane %v336, 2
      %v534 = vrot.slane %v337, 2
      %v535 = vsel %vm502, %v533, %v534
      %v536 = vrot.slane %v338, 2
      %v537 = vsel %vm502, %v534, %v536
      %v538 = vrot.slane %v339, 2
      %v539 = vrot.slane %v340, 2
      %v540 = vsel %vm502, %v538, %v539
      %v541 = vrot.slane %v341, 2
      %v542 = vsel %vm502, %v539, %v541
      %v543 = vrot.slane %v342, 2
      %v544 = vrot.slane %v343, 2
      %v545 = vsel %vm502, %v543, %v544
      %v546 = vrot.slane %v344, 2
      %v547 = vsel %vm502, %v544, %v546
      %v548 = vrot.slane %v345, 2
      %v549 = vrot.slane %v346, 2
      %v550 = vsel %vm502, %v548, %v549
      %v551 = vrot.slane %v347, 2
      %v552 = vsel %vm502, %v549, %v551
      %v553 = vrot.slane %v348, 2
      %v554 = vrot.slane %v349, 2
      %v555 = vsel %vm502, %v553, %v554
      %v556 = vrot.slane %v350, 2
      %v557 = vsel %vm502, %v554, %v556
      %v558 = vrot.slane %v351, 2
      %v559 = vrot.slane %v352, 2
      %v560 = vsel %vm502, %v558, %v559
      %v561 = vrot.slane %v353, 2
      %v562 = vsel %vm502, %v559, %v561
      %v563 = vrot.slane %v354, 2
      %v564 = vrot.slane %v355, 2
      %v565 = vsel %vm502, %v563, %v564
      %v566 = vrot.slane %v356, 2
      %v567 = vsel %vm502, %v564, %v566
      %v568 = vrot.slane %v357, 2
      %v569 = vrot.slane %v358, 2
      %v570 = vsel %vm502, %v568, %v569
      %v571 = vrot.slane %v359, 2
      %v572 = vsel %vm502, %v569, %v571
      %v573 = vrot.slane %v360, 2
      %v574 = vrot.slane %v361, 2
      %v575 = vsel %vm502, %v573, %v574
      %v576 = vrot.slane %v362, 2
      %v577 = vsel %vm502, %v574, %v576
      %v578 = vrot.slane %v363, 2
      %v579 = vrot.slane %v364, 2
      %v580 = vsel %vm502, %v578, %v579
      %v581 = vrot.slane %v365, 2
      %v582 = vsel %vm502, %v579, %v581
      %v586 = vrot.slane %v366, 1
      %v587 = vrot.slane %v367, 1
      %v588 = vsel %vm421, %v586, %v587
      %v589 = vrot.slane %v368, 1
      %v590 = vsel %vm421, %v587, %v589
      %v591 = vrot.slane %v366, 2
      %v592 = vrot.slane %v367, 2
      %v593 = vsel %vm502, %v591, %v592
      %v594 = vrot.slane %v368, 2
      %v595 = vsel %vm502, %v592, %v594
      %v599 = vrot.slane %v369, 1
      %v600 = vrot.slane %v370, 1
      %v601 = vsel %vm421, %v599, %v600
      %v602 = vrot.slane %v371, 1
      %v603 = vsel %vm421, %v600, %v602
      %v604 = vrot.slane %v369, 2
      %v605 = vrot.slane %v370, 2
      %v606 = vsel %vm502, %v604, %v605
      %v607 = vrot.slane %v371, 2
      %v608 = vsel %vm502, %v605, %v607
      %v609 = vld [vmem:[%s2] sm:$0xf]
      %s610 = scalar_lea.vmem %s2, 4
      %v611 = vld [vmem:[%s610] sm:$0xf]
      %vm612 = vcmask 31744
      %v613 = vsel %vm612, %v424, 0
      %v615 = vsel %vm612, %v426, 0
      %v617 = vsel %vm612, %v429, 0
      %v619 = vsel %vm612, %v431, 0
      %v621 = vsel %vm612, %v434, 0
      %v623 = vsel %vm612, %v436, 0
      %v625 = vsel %vm612, %v439, 0
      %v627 = vsel %vm612, %v441, 0
      %v629 = vsel %vm612, %v444, 0
      %v631 = vsel %vm612, %v446, 0
      %v633 = vsel %vm612, %v449, 0
      %v635 = vsel %vm612, %v451, 0
      %v637 = vsel %vm612, %v454, 0
      %v639 = vsel %vm612, %v456, 0
      %v641 = vsel %vm612, %v459, 0
      %v643 = vsel %vm612, %v461, 0
      %v645 = vsel %vm612, %v464, 0
      %v647 = vsel %vm612, %v466, 0
      %v649 = vsel %vm612, %v469, 0
      %v651 = vsel %vm612, %v471, 0
      %v653 = vsel %vm612, %v474, 0
      %v655 = vsel %vm612, %v476, 0
      %v657 = vsel %vm612, %v479, 0
      %v659 = vsel %vm612, %v481, 0
      %v661 = vsel %vm612, %v484, 0
      %v663 = vsel %vm612, %v486, 0
      %v665 = vsel %vm612, %v489, 0
      %v667 = vsel %vm612, %v491, 0
      %v669 = vsel %vm612, %v494, 0
      %v671 = vsel %vm612, %v496, 0
      %v673 = vsel %vm612, %v499, 0
      %v675 = vsel %vm612, %v501, 0
      %vm677 = vcmask 1043456
      %v679 = vsel %vm677, %v611, 0
      %681 = vmatprep.subr.mxu0 0.0
      %682 = vmatpush1.msra.mxu0 %v679
      %683 = vmatprep.subr.mxu0 0.0
      %684 = vmatpush1.msra.mxu0 0.0
      %685 = vmatprep.subr.mxu0 0.0
      %686 = vmatpush1.msra.mxu0 0.0
      %687 = vmatprep.subr.mxu0 0.0
      %688 = vmatpush1.msra.mxu0 0.0
      %689 = vmatprep.subr.mxu0 0.0
      %690 = vmatpush1.msra.mxu0 0.0
      %691 = vmatprep.subr.mxu0 0.0
      %692 = vmatpush1.msra.mxu0 0.0
      %693 = vmatprep.subr.mxu0 0.0
      %694 = vmatpush1.msra.mxu0 0.0
      %695 = vmatprep.subr.mxu0 0.0
      %696 = vmatpush1.msra.mxu0 0.0
      %697 = vmatprep.subr.mxu0 0.0
      %698 = vmatpush1.msra.mxu0 0.0
      %699 = vmatprep.subr.mxu0 0.0
      %700 = vmatpush1.msra.mxu0 0.0
      %701 = vmatprep.subr.mxu0 0.0
      %702 = vmatpush1.msra.mxu0 0.0
      %703 = vmatprep.subr.mxu0 0.0
      %704 = vmatpush1.msra.mxu0 0.0
      %705 = vmatprep.subr.mxu0 0.0
      %706 = vmatpush1.msra.mxu0 0.0
      %707 = vmatprep.subr.mxu0 0.0
      %708 = vmatpush1.msra.mxu0 0.0
      %709 = vmatprep.subr.mxu0 0.0
      %710 = vmatpush1.msra.mxu0 0.0
      %711 = vmatprep.subr.mxu0 0.0
      %712 = vmatpush1.msra.mxu0 0.0
      %713 = vmatprep.subr.mxu0 0.0
      %714 = vmatpush1.msra.mxu0 0.0
      %715 = vmatprep.subr.mxu0 0.0
      %716 = vmatpush1.msra.mxu0 0.0
      %717 = vmatprep.subr.mxu0 0.0
      %718 = vmatpush1.msra.mxu0 0.0
      %719 = vmatprep.subr.mxu0 0.0
      %720 = vmatpush1.msra.mxu0 0.0
      %721 = vmatprep.subr.mxu0 0.0
      %722 = vmatpush1.msra.mxu0 0.0
      %723 = vmatprep.subr.mxu0 0.0
      %724 = vmatpush1.msra.mxu0 0.0
      %725 = vmatprep.subr.mxu0 0.0
      %726 = vmatpush1.msra.mxu0 0.0
      %727 = vmatprep.subr.mxu0 0.0
      %728 = vmatpush1.msra.mxu0 0.0
      %729 = vmatprep.subr.mxu0 0.0
      %730 = vmatpush1.msra.mxu0 0.0
      %731 = vmatprep.subr.mxu0 0.0
      %732 = vmatpush1.msra.mxu0 0.0
      %733 = vmatprep.subr.mxu0 0.0
      %734 = vmatpush1.msra.mxu0 0.0
      %735 = vmatprep.subr.mxu0 0.0
      %736 = vmatpush1.msra.mxu0 0.0
      %737 = vmatprep.subr.mxu0 0.0
      %738 = vmatpush1.msra.mxu0 0.0
      %739 = vmatprep.subr.mxu0 0.0
      %740 = vmatpush1.msra.mxu0 0.0
      %741 = vmatprep.subr.mxu0 0.0
      %742 = vmatpush1.msra.mxu0 0.0
      %743 = vmatprep.subr.mxu0 0.0
      %744 = vmatpush1.msra.mxu0 0.0
      %745 = vmatprep.mubr.f32.mxu0 0.0
      %746 = vmatmul.mubr.f32.gmra.mrb[0].mxu0 %v613
      %v747 = vpop.f32.mrb[0].mxu0
      %v748 = vadd.f32 0.0, %v747
      %v749 = vpop.f32.mrb[0].mxu0
      %750 = vmatprep.mubr.f32.mxu0 0.0
      %751 = vmatmul.mubr.f32.gmra.mrb[0].mxu0 %v615
      %v752 = vpop.f32.mrb[0].mxu0
      %v753 = vadd.f32 0.0, %v752
      %v754 = vpop.f32.mrb[0].mxu0
      %755 = vmatprep.mubr.f32.mxu0 0.0
      %756 = vmatmul.mubr.f32.gmra.mrb[0].mxu0 %v617
      %v757 = vpop.f32.mrb[0].mxu0
      %v758 = vadd.f32 0.0, %v757
      %v759 = vpop.f32.mrb[0].mxu0
      %760 = vmatprep.mubr.f32.mxu0 0.0
      %761 = vmatmul.mubr.f32.gmra.mrb[0].mxu0 %v619
      %v762 = vpop.f32.mrb[0].mxu0
      %v763 = vadd.f32 0.0, %v762
      %v764 = vpop.f32.mrb[0].mxu0
      %765 = vmatprep.mubr.f32.mxu0 0.0
      %766 = vmatmul.mubr.f32.gmra.mrb[0].mxu0 %v621
      %v767 = vpop.f32.mrb[0].mxu0
      %v768 = vadd.f32 0.0, %v767
      %v769 = vpop.f32.mrb[0].mxu0
      %770 = vmatprep.mubr.f32.mxu0 0.0
      %771 = vmatmul.mubr.f32.gmra.mrb[0].mxu0 %v623
      %v772 = vpop.f32.mrb[0].mxu0
      %v773 = vadd.f32 0.0, %v772
      %v774 = vpop.f32.mrb[0].mxu0
      %775 = vmatprep.mubr.f32.mxu0 0.0
      %776 = vmatmul.mubr.f32.gmra.mrb[0].mxu0 %v625
      %v777 = vpop.f32.mrb[0].mxu0
      %v778 = vadd.f32 0.0, %v777
      %v779 = vpop.f32.mrb[0].mxu0
      %780 = vmatprep.mubr.f32.mxu0 0.0
      %781 = vmatmul.mubr.f32.gmra.mrb[0].mxu0 %v627
      %v782 = vpop.f32.mrb[0].mxu0
      %v783 = vadd.f32 0.0, %v782
      %v784 = vpop.f32.mrb[0].mxu0
      %785 = vmatprep.mubr.f32.mxu0 0.0
      %786 = vmatmul.mubr.f32.gmra.mrb[0].mxu0 %v629
      %v787 = vpop.f32.mrb[0].mxu0
      %v788 = vadd.f32 0.0, %v787
      %v789 = vpop.f32.mrb[0].mxu0
      %790 = vmatprep.mubr.f32.mxu0 0.0
      %791 = vmatmul.mubr.f32.gmra.mrb[0].mxu0 %v631
      %v792 = vpop.f32.mrb[0].mxu0
      %v793 = vadd.f32 0.0, %v792
      %v794 = vpop.f32.mrb[0].mxu0
      %795 = vmatprep.mubr.f32.mxu0 0.0
      %796 = vmatmul.mubr.f32.gmra.mrb[0].mxu0 %v633
      %v797 = vpop.f32.mrb[0].mxu0
      %v798 = vadd.f32 0.0, %v797
      %v799 = vpop.f32.mrb[0].mxu0
      %800 = vmatprep.mubr.f32.mxu0 0.0
      %801 = vmatmul.mubr.f32.gmra.mrb[0].mxu0 %v635
      %v802 = vpop.f32.mrb[0].mxu0
      %v803 = vadd.f32 0.0, %v802
      %v804 = vpop.f32.mrb[0].mxu0
      %805 = vmatprep.mubr.f32.mxu0 0.0
      %806 = vmatmul.mubr.f32.gmra.mrb[0].mxu0 %v637
      %v807 = vpop.f32.mrb[0].mxu0
      %v808 = vadd.f32 0.0, %v807
      %v809 = vpop.f32.mrb[0].mxu0
      %810 = vmatprep.mubr.f32.mxu0 0.0
      %811 = vmatmul.mubr.f32.gmra.mrb[0].mxu0 %v639
      %v812 = vpop.f32.mrb[0].mxu0
      %v813 = vadd.f32 0.0, %v812
      %v814 = vpop.f32.mrb[0].mxu0
      %815 = vmatprep.mubr.f32.mxu0 0.0
      %816 = vmatmul.mubr.f32.gmra.mrb[0].mxu0 %v641
      %v817 = vpop.f32.mrb[0].mxu0
      %v818 = vadd.f32 0.0, %v817
      %v819 = vpop.f32.mrb[0].mxu0
      %820 = vmatprep.mubr.f32.mxu0 0.0
      %821 = vmatmul.mubr.f32.gmra.mrb[0].mxu0 %v643
      %v822 = vpop.f32.mrb[0].mxu0
      %v823 = vadd.f32 0.0, %v822
      %v824 = vpop.f32.mrb[0].mxu0
      %825 = vmatprep.mubr.f32.mxu0 0.0
      %826 = vmatmul.mubr.f32.gmra.mrb[0].mxu0 %v645
      %v827 = vpop.f32.mrb[0].mxu0
      %v828 = vadd.f32 0.0, %v827
      %v829 = vpop.f32.mrb[0].mxu0
      %830 = vmatprep.mubr.f32.mxu0 0.0
      %831 = vmatmul.mubr.f32.gmra.mrb[0].mxu0 %v647
      %v832 = vpop.f32.mrb[0].mxu0
      %v833 = vadd.f32 0.0, %v832
      %v834 = vpop.f32.mrb[0].mxu0
      %835 = vmatprep.mubr.f32.mxu0 0.0
      %836 = vmatmul.mubr.f32.gmra.mrb[0].mxu0 %v649
      %v837 = vpop.f32.mrb[0].mxu0
      %v838 = vadd.f32 0.0, %v837
      %v839 = vpop.f32.mrb[0].mxu0
      %840 = vmatprep.mubr.f32.mxu0 0.0
      %841 = vmatmul.mubr.f32.gmra.mrb[0].mxu0 %v651
      %v842 = vpop.f32.mrb[0].mxu0
      %v843 = vadd.f32 0.0, %v842
      %v844 = vpop.f32.mrb[0].mxu0
      %845 = vmatprep.mubr.f32.mxu0 0.0
      %846 = vmatmul.mubr.f32.gmra.mrb[0].mxu0 %v653
      %v847 = vpop.f32.mrb[0].mxu0
      %v848 = vadd.f32 0.0, %v847
      %v849 = vpop.f32.mrb[0].mxu0
      %850 = vmatprep.mubr.f32.mxu0 0.0
      %851 = vmatmul.mubr.f32.gmra.mrb[0].mxu0 %v655
      %v852 = vpop.f32.mrb[0].mxu0
      %v853 = vadd.f32 0.0, %v852
      %v854 = vpop.f32.mrb[0].mxu0
      %855 = vmatprep.mubr.f32.mxu0 0.0
      %856 = vmatmul.mubr.f32.gmra.mrb[0].mxu0 %v657
      %v857 = vpop.f32.mrb[0].mxu0
      %v858 = vadd.f32 0.0, %v857
      %v859 = vpop.f32.mrb[0].mxu0
      %860 = vmatprep.mubr.f32.mxu0 0.0
      %861 = vmatmul.mubr.f32.gmra.mrb[0].mxu0 %v659
      %v862 = vpop.f32.mrb[0].mxu0
      %v863 = vadd.f32 0.0, %v862
      %v864 = vpop.f32.mrb[0].mxu0
      %865 = vmatprep.mubr.f32.mxu0 0.0
      %866 = vmatmul.mubr.f32.gmra.mrb[0].mxu0 %v661
      %v867 = vpop.f32.mrb[0].mxu0
      %v868 = vadd.f32 0.0, %v867
      %v869 = vpop.f32.mrb[0].mxu0
      %870 = vmatprep.mubr.f32.mxu0 0.0
      %871 = vmatmul.mubr.f32.gmra.mrb[0].mxu0 %v663
      %v872 = vpop.f32.mrb[0].mxu0
      %v873 = vadd.f32 0.0, %v872
      %v874 = vpop.f32.mrb[0].mxu0
      %875 = vmatprep.mubr.f32.mxu0 0.0
      %876 = vmatmul.mubr.f32.gmra.mrb[0].mxu0 %v665
      %v877 = vpop.f32.mrb[0].mxu0
      %v878 = vadd.f32 0.0, %v877
      %v879 = vpop.f32.mrb[0].mxu0
      %880 = vmatprep.mubr.f32.mxu0 0.0
      %881 = vmatmul.mubr.f32.gmra.mrb[0].mxu0 %v667
      %v882 = vpop.f32.mrb[0].mxu0
      %v883 = vadd.f32 0.0, %v882
      %v884 = vpop.f32.mrb[0].mxu0
      %885 = vmatprep.mubr.f32.mxu0 0.0
      %886 = vmatmul.mubr.f32.gmra.mrb[0].mxu0 %v669
      %v887 = vpop.f32.mrb[0].mxu0
      %v888 = vadd.f32 0.0, %v887
      %v889 = vpop.f32.mrb[0].mxu0
      %890 = vmatprep.mubr.f32.mxu0 0.0
      %891 = vmatmul.mubr.f32.gmra.mrb[0].mxu0 %v671
      %v892 = vpop.f32.mrb[0].mxu0
      %v893 = vadd.f32 0.0, %v892
      %v894 = vpop.f32.mrb[0].mxu0
      %895 = vmatprep.mubr.f32.mxu0 0.0
      %896 = vmatmul.mubr.f32.gmra.mrb[0].mxu0 %v673
      %v897 = vpop.f32.mrb[0].mxu0
      %v898 = vadd.f32 0.0, %v897
      %v899 = vpop.f32.mrb[0].mxu0
      %900 = vmatprep.mubr.f32.mxu0 0.0
      %901 = vmatmul.mubr.f32.gmra.mrb[0].mxu0 %v675
      %v902 = vpop.f32.mrb[0].mxu0
      %v903 = vadd.f32 0.0, %v902
      %v904 = vpop.f32.mrb[0].mxu0
      %905 = vdwg.mxu0
      %v906 = vsel %vm612, %v318, 0
      %v908 = vsel %vm612, %v319, 0
      %v910 = vsel %vm612, %v321, 0
      %v912 = vsel %vm612, %v322, 0
      %v914 = vsel %vm612, %v324, 0
      %v916 = vsel %vm612, %v325, 0
      %v918 = vsel %vm612, %v327, 0
      %v920 = vsel %vm612, %v328, 0
      %v922 = vsel %vm612, %v330, 0
      %v924 = vsel %vm612, %v331, 0
      %v926 = vsel %vm612, %v333, 0
      %v928 = vsel %vm612, %v334, 0
      %v930 = vsel %vm612, %v336, 0
      %v932 = vsel %vm612, %v337, 0
      %v934 = vsel %vm612, %v339, 0
      %v936 = vsel %vm612, %v340, 0
      %v938 = vsel %vm612, %v342, 0
      %v940 = vsel %vm612, %v343, 0
      %v942 = vsel %vm612, %v345, 0
      %v944 = vsel %vm612, %v346, 0
      %v946 = vsel %vm612, %v348, 0
      %v948 = vsel %vm612, %v349, 0
      %v950 = vsel %vm612, %v351, 0
      %v952 = vsel %vm612, %v352, 0
      %v954 = vsel %vm612, %v354, 0
      %v956 = vsel %vm612, %v355, 0
      %v958 = vsel %vm612, %v357, 0
      %v960 = vsel %vm612, %v358, 0
      %v962 = vsel %vm612, %v360, 0
      %v964 = vsel %vm612, %v361, 0
      %v966 = vsel %vm612, %v363, 0
      %v968 = vsel %vm612, %v364, 0
      %v971 = vsel %vm677, %v609, 0
      %973 = vmatprep.subr.mxu0 0.0
      %974 = vmatpush1.msra.mxu0 %v971
      %975 = vmatprep.subr.mxu0 0.0
      %976 = vmatpush1.msra.mxu0 0.0
      %977 = vmatprep.subr.mxu0 0.0
      %978 = vmatpush1.msra.mxu0 0.0
      %979 = vmatprep.subr.mxu0 0.0
      %980 = vmatpush1.msra.mxu0 0.0
      %981 = vmatprep.subr.mxu0 0.0
      %982 = vmatpush1.msra.mxu0 0.0
      %983 = vmatprep.subr.mxu0 0.0
      %984 = vmatpush1.msra.mxu0 0.0
      %985 = vmatprep.subr.mxu0 0.0
      %986 = vmatpush1.msra.mxu0 0.0
      %987 = vmatprep.subr.mxu0 0.0
      %988 = vmatpush1.msra.mxu0 0.0
      %989 = vmatprep.subr.mxu0 0.0
      %990 = vmatpush1.msra.mxu0 0.0
      %991 = vmatprep.subr.mxu0 0.0
      %992 = vmatpush1.msra.mxu0 0.0
      %993 = vmatprep.subr.mxu0 0.0
      %994 = vmatpush1.msra.mxu0 0.0
      %995 = vmatprep.subr.mxu0 0.0
      %996 = vmatpush1.msra.mxu0 0.0
      %997 = vmatprep.subr.mxu0 0.0
      %998 = vmatpush1.msra.mxu0 0.0
      %999 = vmatprep.subr.mxu0 0.0
      %1000 = vmatpush1.msra.mxu0 0.0
      %1001 = vmatprep.subr.mxu0 0.0
      %1002 = vmatpush1.msra.mxu0 0.0
      %1003 = vmatprep.subr.mxu0 0.0
      %1004 = vmatpush1.msra.mxu0 0.0
      %1005 = vmatprep.subr.mxu0 0.0
      %1006 = vmatpush1.msra.mxu0 0.0
      %1007 = vmatprep.subr.mxu0 0.0
      %1008 = vmatpush1.msra.mxu0 0.0
      %1009 = vmatprep.subr.mxu0 0.0
      %1010 = vmatpush1.msra.mxu0 0.0
      %1011 = vmatprep.subr.mxu0 0.0
      %1012 = vmatpush1.msra.mxu0 0.0
      %1013 = vmatprep.subr.mxu0 0.0
      %1014 = vmatpush1.msra.mxu0 0.0
      %1015 = vmatprep.subr.mxu0 0.0
      %1016 = vmatpush1.msra.mxu0 0.0
      %1017 = vmatprep.subr.mxu0 0.0
      %1018 = vmatpush1.msra.mxu0 0.0
      %1019 = vmatprep.subr.mxu0 0.0
      %1020 = vmatpush1.msra.mxu0 0.0
      %1021 = vmatprep.subr.mxu0 0.0
      %1022 = vmatpush1.msra.mxu0 0.0
      %1023 = vmatprep.subr.mxu0 0.0
      %1024 = vmatpush1.msra.mxu0 0.0
      %1025 = vmatprep.subr.mxu0 0.0
      %1026 = vmatpush1.msra.mxu0 0.0
      %1027 = vmatprep.subr.mxu0 0.0
      %1028 = vmatpush1.msra.mxu0 0.0
      %1029 = vmatprep.subr.mxu0 0.0
      %1030 = vmatpush1.msra.mxu0 0.0
      %1031 = vmatprep.subr.mxu0 0.0
      %1032 = vmatpush1.msra.mxu0 0.0
      %1033 = vmatprep.subr.mxu0 0.0
      %1034 = vmatpush1.msra.mxu0 0.0
      %1035 = vmatprep.subr.mxu0 0.0
      %1036 = vmatpush1.msra.mxu0 0.0
      %1037 = vmatprep.mubr.f32.mxu0 0.0
      %1038 = vmatmul.mubr.f32.gmra.mrb[0].mxu0 %v906
      %v1039 = vpop.f32.mrb[0].mxu0
      %v1040 = vadd.f32 %v748, %v1039
      %v1041 = vpop.f32.mrb[0].mxu0
      %1042 = vmatprep.mubr.f32.mxu0 0.0
      %1043 = vmatmul.mubr.f32.gmra.mrb[0].mxu0 %v908
      %v1044 = vpop.f32.mrb[0].mxu0
      %v1045 = vadd.f32 %v753, %v1044
      %v1046 = vpop.f32.mrb[0].mxu0
      %1047 = vmatprep.mubr.f32.mxu0 0.0
      %1048 = vmatmul.mubr.f32.gmra.mrb[0].mxu0 %v910
      %v1049 = vpop.f32.mrb[0].mxu0
      %v1050 = vadd.f32 %v758, %v1049
      %v1051 = vpop.f32.mrb[0].mxu0
      %1052 = vmatprep.mubr.f32.mxu0 0.0
      %1053 = vmatmul.mubr.f32.gmra.mrb[0].mxu0 %v912
      %v1054 = vpop.f32.mrb[0].mxu0
      %v1055 = vadd.f32 %v763, %v1054
      %v1056 = vpop.f32.mrb[0].mxu0
      %1057 = vmatprep.mubr.f32.mxu0 0.0
      %1058 = vmatmul.mubr.f32.gmra.mrb[0].mxu0 %v914
      %v1059 = vpop.f32.mrb[0].mxu0
      %v1060 = vadd.f32 %v768, %v1059
      %v1061 = vpop.f32.mrb[0].mxu0
      %1062 = vmatprep.mubr.f32.mxu0 0.0
      %1063 = vmatmul.mubr.f32.gmra.mrb[0].mxu0 %v916
      %v1064 = vpop.f32.mrb[0].mxu0
      %v1065 = vadd.f32 %v773, %v1064
      %v1066 = vpop.f32.mrb[0].mxu0
      %1067 = vmatprep.mubr.f32.mxu0 0.0
      %1068 = vmatmul.mubr.f32.gmra.mrb[0].mxu0 %v918
      %v1069 = vpop.f32.mrb[0].mxu0
      %v1070 = vadd.f32 %v778, %v1069
      %v1071 = vpop.f32.mrb[0].mxu0
      %1072 = vmatprep.mubr.f32.mxu0 0.0
      %1073 = vmatmul.mubr.f32.gmra.mrb[0].mxu0 %v920
      %v1074 = vpop.f32.mrb[0].mxu0
      %v1075 = vadd.f32 %v783, %v1074
      %v1076 = vpop.f32.mrb[0].mxu0
      %1077 = vmatprep.mubr.f32.mxu0 0.0
      %1078 = vmatmul.mubr.f32.gmra.mrb[0].mxu0 %v922
      %v1079 = vpop.f32.mrb[0].mxu0
      %v1080 = vadd.f32 %v788, %v1079
      %v1081 = vpop.f32.mrb[0].mxu0
      %1082 = vmatprep.mubr.f32.mxu0 0.0
      %1083 = vmatmul.mubr.f32.gmra.mrb[0].mxu0 %v924
      %v1084 = vpop.f32.mrb[0].mxu0
      %v1085 = vadd.f32 %v793, %v1084
      %v1086 = vpop.f32.mrb[0].mxu0
      %1087 = vmatprep.mubr.f32.mxu0 0.0
      %1088 = vmatmul.mubr.f32.gmra.mrb[0].mxu0 %v926
      %v1089 = vpop.f32.mrb[0].mxu0
      %v1090 = vadd.f32 %v798, %v1089
      %v1091 = vpop.f32.mrb[0].mxu0
      %1092 = vmatprep.mubr.f32.mxu0 0.0
      %1093 = vmatmul.mubr.f32.gmra.mrb[0].mxu0 %v928
      %v1094 = vpop.f32.mrb[0].mxu0
      %v1095 = vadd.f32 %v803, %v1094
      %v1096 = vpop.f32.mrb[0].mxu0
      %1097 = vmatprep.mubr.f32.mxu0 0.0
      %1098 = vmatmul.mubr.f32.gmra.mrb[0].mxu0 %v930
      %v1099 = vpop.f32.mrb[0].mxu0
      %v1100 = vadd.f32 %v808, %v1099
      %v1101 = vpop.f32.mrb[0].mxu0
      %1102 = vmatprep.mubr.f32.mxu0 0.0
      %1103 = vmatmul.mubr.f32.gmra.mrb[0].mxu0 %v932
      %v1104 = vpop.f32.mrb[0].mxu0
      %v1105 = vadd.f32 %v813, %v1104
      %v1106 = vpop.f32.mrb[0].mxu0
      %1107 = vmatprep.mubr.f32.mxu0 0.0
      %1108 = vmatmul.mubr.f32.gmra.mrb[0].mxu0 %v934
      %v1109 = vpop.f32.mrb[0].mxu0
      %v1110 = vadd.f32 %v818, %v1109
      %v1111 = vpop.f32.mrb[0].mxu0
      %1112 = vmatprep.mubr.f32.mxu0 0.0
      %1113 = vmatmul.mubr.f32.gmra.mrb[0].mxu0 %v936
      %v1114 = vpop.f32.mrb[0].mxu0
      %v1115 = vadd.f32 %v823, %v1114
      %v1116 = vpop.f32.mrb[0].mxu0
      %1117 = vmatprep.mubr.f32.mxu0 0.0
      %1118 = vmatmul.mubr.f32.gmra.mrb[0].mxu0 %v938
      %v1119 = vpop.f32.mrb[0].mxu0
      %v1120 = vadd.f32 %v828, %v1119
      %v1121 = vpop.f32.mrb[0].mxu0
      %1122 = vmatprep.mubr.f32.mxu0 0.0
      %1123 = vmatmul.mubr.f32.gmra.mrb[0].mxu0 %v940
      %v1124 = vpop.f32.mrb[0].mxu0
      %v1125 = vadd.f32 %v833, %v1124
      %v1126 = vpop.f32.mrb[0].mxu0
      %1127 = vmatprep.mubr.f32.mxu0 0.0
      %1128 = vmatmul.mubr.f32.gmra.mrb[0].mxu0 %v942
      %v1129 = vpop.f32.mrb[0].mxu0
      %v1130 = vadd.f32 %v838, %v1129
      %v1131 = vpop.f32.mrb[0].mxu0
      %1132 = vmatprep.mubr.f32.mxu0 0.0
      %1133 = vmatmul.mubr.f32.gmra.mrb[0].mxu0 %v944
      %v1134 = vpop.f32.mrb[0].mxu0
      %v1135 = vadd.f32 %v843, %v1134
      %v1136 = vpop.f32.mrb[0].mxu0
      %1137 = vmatprep.mubr.f32.mxu0 0.0
      %1138 = vmatmul.mubr.f32.gmra.mrb[0].mxu0 %v946
      %v1139 = vpop.f32.mrb[0].mxu0
      %v1140 = vadd.f32 %v848, %v1139
      %v1141 = vpop.f32.mrb[0].mxu0
      %1142 = vmatprep.mubr.f32.mxu0 0.0
      %1143 = vmatmul.mubr.f32.gmra.mrb[0].mxu0 %v948
      %v1144 = vpop.f32.mrb[0].mxu0
      %v1145 = vadd.f32 %v853, %v1144
      %v1146 = vpop.f32.mrb[0].mxu0
      %1147 = vmatprep.mubr.f32.mxu0 0.0
      %1148 = vmatmul.mubr.f32.gmra.mrb[0].mxu0 %v950
      %v1149 = vpop.f32.mrb[0].mxu0
      %v1150 = vadd.f32 %v858, %v1149
      %v1151 = vpop.f32.mrb[0].mxu0
      %1152 = vmatprep.mubr.f32.mxu0 0.0
      %1153 = vmatmul.mubr.f32.gmra.mrb[0].mxu0 %v952
      %v1154 = vpop.f32.mrb[0].mxu0
      %v1155 = vadd.f32 %v863, %v1154
      %v1156 = vpop.f32.mrb[0].mxu0
      %1157 = vmatprep.mubr.f32.mxu0 0.0
      %1158 = vmatmul.mubr.f32.gmra.mrb[0].mxu0 %v954
      %v1159 = vpop.f32.mrb[0].mxu0
      %v1160 = vadd.f32 %v868, %v1159
      %v1161 = vpop.f32.mrb[0].mxu0
      %1162 = vmatprep.mubr.f32.mxu0 0.0
      %1163 = vmatmul.mubr.f32.gmra.mrb[0].mxu0 %v956
      %v1164 = vpop.f32.mrb[0].mxu0
      %v1165 = vadd.f32 %v873, %v1164
      %v1166 = vpop.f32.mrb[0].mxu0
      %1167 = vmatprep.mubr.f32.mxu0 0.0
      %1168 = vmatmul.mubr.f32.gmra.mrb[0].mxu0 %v958
      %v1169 = vpop.f32.mrb[0].mxu0
      %v1170 = vadd.f32 %v878, %v1169
      %v1171 = vpop.f32.mrb[0].mxu0
      %1172 = vmatprep.mubr.f32.mxu0 0.0
      %1173 = vmatmul.mubr.f32.gmra.mrb[0].mxu0 %v960
      %v1174 = vpop.f32.mrb[0].mxu0
      %v1175 = vadd.f32 %v883, %v1174
      %v1176 = vpop.f32.mrb[0].mxu0
      %1177 = vmatprep.mubr.f32.mxu0 0.0
      %1178 = vmatmul.mubr.f32.gmra.mrb[0].mxu0 %v962
      %v1179 = vpop.f32.mrb[0].mxu0
      %v1180 = vadd.f32 %v888, %v1179
      %v1181 = vpop.f32.mrb[0].mxu0
      %1182 = vmatprep.mubr.f32.mxu0 0.0
      %1183 = vmatmul.mubr.f32.gmra.mrb[0].mxu0 %v964
      %v1184 = vpop.f32.mrb[0].mxu0
      %v1185 = vadd.f32 %v893, %v1184
      %v1186 = vpop.f32.mrb[0].mxu0
      %1187 = vmatprep.mubr.f32.mxu0 0.0
      %1188 = vmatmul.mubr.f32.gmra.mrb[0].mxu0 %v966
      %v1189 = vpop.f32.mrb[0].mxu0
      %v1190 = vadd.f32 %v898, %v1189
      %v1191 = vpop.f32.mrb[0].mxu0
      %1192 = vmatprep.mubr.f32.mxu0 0.0
      %1193 = vmatmul.mubr.f32.gmra.mrb[0].mxu0 %v968
      %v1194 = vpop.f32.mrb[0].mxu0
      %v1195 = vadd.f32 %v903, %v1194
      %v1196 = vpop.f32.mrb[0].mxu0
      %1197 = vdwg.mxu0
      %s1198 = scalar_lea.vmem %s2, 8
      %v1199 = vld [vmem:[%s1198] sm:$0xf]
      %v1200 = vsel %vm612, %v366, 0
      %v1202 = vsel %vm612, %v367, 0
      %v1205 = vsel %vm677, %v1199, 0
      %1207 = vmatprep.subr.mxu0 0.0
      %1208 = vmatpush1.msra.mxu0 %v1205
      %1209 = vmatprep.subr.mxu0 0.0
      %1210 = vmatpush1.msra.mxu0 0.0
      %1211 = vmatprep.subr.mxu0 0.0
      %1212 = vmatpush1.msra.mxu0 0.0
      %1213 = vmatprep.subr.mxu0 0.0
      %1214 = vmatpush1.msra.mxu0 0.0
      %1215 = vmatprep.subr.mxu0 0.0
      %1216 = vmatpush1.msra.mxu0 0.0
      %1217 = vmatprep.subr.mxu0 0.0
      %1218 = vmatpush1.msra.mxu0 0.0
      %1219 = vmatprep.subr.mxu0 0.0
      %1220 = vmatpush1.msra.mxu0 0.0
      %1221 = vmatprep.subr.mxu0 0.0
      %1222 = vmatpush1.msra.mxu0 0.0
      %1223 = vmatprep.subr.mxu0 0.0
      %1224 = vmatpush1.msra.mxu0 0.0
      %1225 = vmatprep.subr.mxu0 0.0
      %1226 = vmatpush1.msra.mxu0 0.0
      %1227 = vmatprep.subr.mxu0 0.0
      %1228 = vmatpush1.msra.mxu0 0.0
      %1229 = vmatprep.subr.mxu0 0.0
      %1230 = vmatpush1.msra.mxu0 0.0
      %1231 = vmatprep.subr.mxu0 0.0
      %1232 = vmatpush1.msra.mxu0 0.0
      %1233 = vmatprep.subr.mxu0 0.0
      %1234 = vmatpush1.msra.mxu0 0.0
      %1235 = vmatprep.subr.mxu0 0.0
      %1236 = vmatpush1.msra.mxu0 0.0
      %1237 = vmatprep.subr.mxu0 0.0
      %1238 = vmatpush1.msra.mxu0 0.0
      %1239 = vmatprep.subr.mxu0 0.0
      %1240 = vmatpush1.msra.mxu0 0.0
      %1241 = vmatprep.subr.mxu0 0.0
      %1242 = vmatpush1.msra.mxu0 0.0
      %1243 = vmatprep.subr.mxu0 0.0
      %1244 = vmatpush1.msra.mxu0 0.0
      %1245 = vmatprep.subr.mxu0 0.0
      %1246 = vmatpush1.msra.mxu0 0.0
      %1247 = vmatprep.subr.mxu0 0.0
      %1248 = vmatpush1.msra.mxu0 0.0
      %1249 = vmatprep.subr.mxu0 0.0
      %1250 = vmatpush1.msra.mxu0 0.0
      %1251 = vmatprep.subr.mxu0 0.0
      %1252 = vmatpush1.msra.mxu0 0.0
      %1253 = vmatprep.subr.mxu0 0.0
      %1254 = vmatpush1.msra.mxu0 0.0
      %1255 = vmatprep.subr.mxu0 0.0
      %1256 = vmatpush1.msra.mxu0 0.0
      %1257 = vmatprep.subr.mxu0 0.0
      %1258 = vmatpush1.msra.mxu0 0.0
      %1259 = vmatprep.subr.mxu0 0.0
      %1260 = vmatpush1.msra.mxu0 0.0
      %1261 = vmatprep.subr.mxu0 0.0
      %1262 = vmatpush1.msra.mxu0 0.0
      %1263 = vmatprep.subr.mxu0 0.0
      %1264 = vmatpush1.msra.mxu0 0.0
      %1265 = vmatprep.subr.mxu0 0.0
      %1266 = vmatpush1.msra.mxu0 0.0
      %1267 = vmatprep.subr.mxu0 0.0
      %1268 = vmatpush1.msra.mxu0 0.0
      %1269 = vmatprep.subr.mxu0 0.0
      %1270 = vmatpush1.msra.mxu0 0.0
      %1271 = vmatprep.mubr.f32.mxu0 0.0
      %1272 = vmatmul.mubr.f32.gmra.mrb[0].mxu0 %v910
      %v1273 = vpop.f32.mrb[0].mxu0
      %v1274 = vadd.f32 0.0, %v1273
      %v1275 = vpop.f32.mrb[0].mxu0
      %1276 = vmatprep.mubr.f32.mxu0 0.0
      %1277 = vmatmul.mubr.f32.gmra.mrb[0].mxu0 %v912
      %v1278 = vpop.f32.mrb[0].mxu0
      %v1279 = vadd.f32 0.0, %v1278
      %v1280 = vpop.f32.mrb[0].mxu0
      %1281 = vmatprep.mubr.f32.mxu0 0.0
      %1282 = vmatmul.mubr.f32.gmra.mrb[0].mxu0 %v914
      %v1283 = vpop.f32.mrb[0].mxu0
      %v1284 = vadd.f32 0.0, %v1283
      %v1285 = vpop.f32.mrb[0].mxu0
      %1286 = vmatprep.mubr.f32.mxu0 0.0
      %1287 = vmatmul.mubr.f32.gmra.mrb[0].mxu0 %v916
      %v1288 = vpop.f32.mrb[0].mxu0
      %v1289 = vadd.f32 0.0, %v1288
      %v1290 = vpop.f32.mrb[0].mxu0
      %1291 = vmatprep.mubr.f32.mxu0 0.0
      %1292 = vmatmul.mubr.f32.gmra.mrb[0].mxu0 %v918
      %v1293 = vpop.f32.mrb[0].mxu0
      %v1294 = vadd.f32 0.0, %v1293
      %v1295 = vpop.f32.mrb[0].mxu0
      %1296 = vmatprep.mubr.f32.mxu0 0.0
      %1297 = vmatmul.mubr.f32.gmra.mrb[0].mxu0 %v920
      %v1298 = vpop.f32.mrb[0].mxu0
      %v1299 = vadd.f32 0.0, %v1298
      %v1300 = vpop.f32.mrb[0].mxu0
      %1301 = vmatprep.mubr.f32.mxu0 0.0
      %1302 = vmatmul.mubr.f32.gmra.mrb[0].mxu0 %v922
      %v1303 = vpop.f32.mrb[0].mxu0
      %v1304 = vadd.f32 0.0, %v1303
      %v1305 = vpop.f32.mrb[0].mxu0
      %1306 = vmatprep.mubr.f32.mxu0 0.0
      %1307 = vmatmul.mubr.f32.gmra.mrb[0].mxu0 %v924
      %v1308 = vpop.f32.mrb[0].mxu0
      %v1309 = vadd.f32 0.0, %v1308
      %v1310 = vpop.f32.mrb[0].mxu0
      %1311 = vmatprep.mubr.f32.mxu0 0.0
      %1312 = vmatmul.mubr.f32.gmra.mrb[0].mxu0 %v926
      %v1313 = vpop.f32.mrb[0].mxu0
      %v1314 = vadd.f32 0.0, %v1313
      %v1315 = vpop.f32.mrb[0].mxu0
      %1316 = vmatprep.mubr.f32.mxu0 0.0
      %1317 = vmatmul.mubr.f32.gmra.mrb[0].mxu0 %v928
      %v1318 = vpop.f32.mrb[0].mxu0
      %v1319 = vadd.f32 0.0, %v1318
      %v1320 = vpop.f32.mrb[0].mxu0
      %1321 = vmatprep.mubr.f32.mxu0 0.0
      %1322 = vmatmul.mubr.f32.gmra.mrb[0].mxu0 %v930
      %v1323 = vpop.f32.mrb[0].mxu0
      %v1324 = vadd.f32 0.0, %v1323
      %v1325 = vpop.f32.mrb[0].mxu0
      %1326 = vmatprep.mubr.f32.mxu0 0.0
      %1327 = vmatmul.mubr.f32.gmra.mrb[0].mxu0 %v932
      %v1328 = vpop.f32.mrb[0].mxu0
      %v1329 = vadd.f32 0.0, %v1328
      %v1330 = vpop.f32.mrb[0].mxu0
      %1331 = vmatprep.mubr.f32.mxu0 0.0
      %1332 = vmatmul.mubr.f32.gmra.mrb[0].mxu0 %v934
      %v1333 = vpop.f32.mrb[0].mxu0
      %v1334 = vadd.f32 0.0, %v1333
      %v1335 = vpop.f32.mrb[0].mxu0
      %1336 = vmatprep.mubr.f32.mxu0 0.0
      %1337 = vmatmul.mubr.f32.gmra.mrb[0].mxu0 %v936
      %v1338 = vpop.f32.mrb[0].mxu0
      %v1339 = vadd.f32 0.0, %v1338
      %v1340 = vpop.f32.mrb[0].mxu0
      %1341 = vmatprep.mubr.f32.mxu0 0.0
      %1342 = vmatmul.mubr.f32.gmra.mrb[0].mxu0 %v938
      %v1343 = vpop.f32.mrb[0].mxu0
      %v1344 = vadd.f32 0.0, %v1343
      %v1345 = vpop.f32.mrb[0].mxu0
      %1346 = vmatprep.mubr.f32.mxu0 0.0
      %1347 = vmatmul.mubr.f32.gmra.mrb[0].mxu0 %v940
      %v1348 = vpop.f32.mrb[0].mxu0
      %v1349 = vadd.f32 0.0, %v1348
      %v1350 = vpop.f32.mrb[0].mxu0
      %1351 = vmatprep.mubr.f32.mxu0 0.0
      %1352 = vmatmul.mubr.f32.gmra.mrb[0].mxu0 %v942
      %v1353 = vpop.f32.mrb[0].mxu0
      %v1354 = vadd.f32 0.0, %v1353
      %v1355 = vpop.f32.mrb[0].mxu0
      %1356 = vmatprep.mubr.f32.mxu0 0.0
      %1357 = vmatmul.mubr.f32.gmra.mrb[0].mxu0 %v944
      %v1358 = vpop.f32.mrb[0].mxu0
      %v1359 = vadd.f32 0.0, %v1358
      %v1360 = vpop.f32.mrb[0].mxu0
      %1361 = vmatprep.mubr.f32.mxu0 0.0
      %1362 = vmatmul.mubr.f32.gmra.mrb[0].mxu0 %v946
      %v1363 = vpop.f32.mrb[0].mxu0
      %v1364 = vadd.f32 0.0, %v1363
      %v1365 = vpop.f32.mrb[0].mxu0
      %1366 = vmatprep.mubr.f32.mxu0 0.0
      %1367 = vmatmul.mubr.f32.gmra.mrb[0].mxu0 %v948
      %v1368 = vpop.f32.mrb[0].mxu0
      %v1369 = vadd.f32 0.0, %v1368
      %v1370 = vpop.f32.mrb[0].mxu0
      %1371 = vmatprep.mubr.f32.mxu0 0.0
      %1372 = vmatmul.mubr.f32.gmra.mrb[0].mxu0 %v950
      %v1373 = vpop.f32.mrb[0].mxu0
      %v1374 = vadd.f32 0.0, %v1373
      %v1375 = vpop.f32.mrb[0].mxu0
      %1376 = vmatprep.mubr.f32.mxu0 0.0
      %1377 = vmatmul.mubr.f32.gmra.mrb[0].mxu0 %v952
      %v1378 = vpop.f32.mrb[0].mxu0
      %v1379 = vadd.f32 0.0, %v1378
      %v1380 = vpop.f32.mrb[0].mxu0
      %1381 = vmatprep.mubr.f32.mxu0 0.0
      %1382 = vmatmul.mubr.f32.gmra.mrb[0].mxu0 %v954
      %v1383 = vpop.f32.mrb[0].mxu0
      %v1384 = vadd.f32 0.0, %v1383
      %v1385 = vpop.f32.mrb[0].mxu0
      %1386 = vmatprep.mubr.f32.mxu0 0.0
      %1387 = vmatmul.mubr.f32.gmra.mrb[0].mxu0 %v956
      %v1388 = vpop.f32.mrb[0].mxu0
      %v1389 = vadd.f32 0.0, %v1388
      %v1390 = vpop.f32.mrb[0].mxu0
      %1391 = vmatprep.mubr.f32.mxu0 0.0
      %1392 = vmatmul.mubr.f32.gmra.mrb[0].mxu0 %v958
      %v1393 = vpop.f32.mrb[0].mxu0
      %v1394 = vadd.f32 0.0, %v1393
      %v1395 = vpop.f32.mrb[0].mxu0
      %1396 = vmatprep.mubr.f32.mxu0 0.0
      %1397 = vmatmul.mubr.f32.gmra.mrb[0].mxu0 %v960
      %v1398 = vpop.f32.mrb[0].mxu0
      %v1399 = vadd.f32 0.0, %v1398
      %v1400 = vpop.f32.mrb[0].mxu0
      %1401 = vmatprep.mubr.f32.mxu0 0.0
      %1402 = vmatmul.mubr.f32.gmra.mrb[0].mxu0 %v962
      %v1403 = vpop.f32.mrb[0].mxu0
      %v1404 = vadd.f32 0.0, %v1403
      %v1405 = vpop.f32.mrb[0].mxu0
      %1406 = vmatprep.mubr.f32.mxu0 0.0
      %1407 = vmatmul.mubr.f32.gmra.mrb[0].mxu0 %v964
      %v1408 = vpop.f32.mrb[0].mxu0
      %v1409 = vadd.f32 0.0, %v1408
      %v1410 = vpop.f32.mrb[0].mxu0
      %1411 = vmatprep.mubr.f32.mxu0 0.0
      %1412 = vmatmul.mubr.f32.gmra.mrb[0].mxu0 %v966
      %v1413 = vpop.f32.mrb[0].mxu0
      %v1414 = vadd.f32 0.0, %v1413
      %v1415 = vpop.f32.mrb[0].mxu0
      %1416 = vmatprep.mubr.f32.mxu0 0.0
      %1417 = vmatmul.mubr.f32.gmra.mrb[0].mxu0 %v968
      %v1418 = vpop.f32.mrb[0].mxu0
      %v1419 = vadd.f32 0.0, %v1418
      %v1420 = vpop.f32.mrb[0].mxu0
      %1421 = vmatprep.mubr.f32.mxu0 0.0
      %1422 = vmatmul.mubr.f32.gmra.mrb[0].mxu0 %v1200
      %v1423 = vpop.f32.mrb[0].mxu0
      %v1424 = vadd.f32 0.0, %v1423
      %v1425 = vpop.f32.mrb[0].mxu0
      %1426 = vmatprep.mubr.f32.mxu0 0.0
      %1427 = vmatmul.mubr.f32.gmra.mrb[0].mxu0 %v1202
      %v1428 = vpop.f32.mrb[0].mxu0
      %v1429 = vadd.f32 0.0, %v1428
      %v1430 = vpop.f32.mrb[0].mxu0
      %1431 = vdwg.mxu0
      %v1432 = vadd.f32 %v1040, %v1274
      %v1433 = vadd.f32 %v1045, %v1279
      %v1434 = vadd.f32 %v1050, %v1284
      %v1435 = vadd.f32 %v1055, %v1289
      %v1436 = vadd.f32 %v1060, %v1294
      %v1437 = vadd.f32 %v1065, %v1299
      %v1438 = vadd.f32 %v1070, %v1304
      %v1439 = vadd.f32 %v1075, %v1309
      %v1440 = vadd.f32 %v1080, %v1314
      %v1441 = vadd.f32 %v1085, %v1319
      %v1442 = vadd.f32 %v1090, %v1324
      %v1443 = vadd.f32 %v1095, %v1329
      %v1444 = vadd.f32 %v1100, %v1334
      %v1445 = vadd.f32 %v1105, %v1339
      %v1446 = vadd.f32 %v1110, %v1344
      %v1447 = vadd.f32 %v1115, %v1349
      %v1448 = vadd.f32 %v1120, %v1354
      %v1449 = vadd.f32 %v1125, %v1359
      %v1450 = vadd.f32 %v1130, %v1364
      %v1451 = vadd.f32 %v1135, %v1369
      %v1452 = vadd.f32 %v1140, %v1374
      %v1453 = vadd.f32 %v1145, %v1379
      %v1454 = vadd.f32 %v1150, %v1384
      %v1455 = vadd.f32 %v1155, %v1389
      %v1456 = vadd.f32 %v1160, %v1394
      %v1457 = vadd.f32 %v1165, %v1399
      %v1458 = vadd.f32 %v1170, %v1404
      %v1459 = vadd.f32 %v1175, %v1409
      %v1460 = vadd.f32 %v1180, %v1414
      %v1461 = vadd.f32 %v1185, %v1419
      %v1462 = vadd.f32 %v1190, %v1424
      %v1463 = vadd.f32 %v1195, %v1429
      %s1464 = scalar_lea.vmem %s2, 12
      %v1465 = vld [vmem:[%s1464] sm:$0xf]
      %v1466 = vsel %vm612, %v588, 0
      %v1468 = vsel %vm612, %v590, 0
      %v1471 = vsel %vm677, %v1465, 0
      %1473 = vmatprep.subr.mxu0 0.0
      %1474 = vmatpush1.msra.mxu0 %v1471
      %1475 = vmatprep.subr.mxu0 0.0
      %1476 = vmatpush1.msra.mxu0 0.0
      %1477 = vmatprep.subr.mxu0 0.0
      %1478 = vmatpush1.msra.mxu0 0.0
      %1479 = vmatprep.subr.mxu0 0.0
      %1480 = vmatpush1.msra.mxu0 0.0
      %1481 = vmatprep.subr.mxu0 0.0
      %1482 = vmatpush1.msra.mxu0 0.0
      %1483 = vmatprep.subr.mxu0 0.0
      %1484 = vmatpush1.msra.mxu0 0.0
      %1485 = vmatprep.subr.mxu0 0.0
      %1486 = vmatpush1.msra.mxu0 0.0
      %1487 = vmatprep.subr.mxu0 0.0
      %1488 = vmatpush1.msra.mxu0 0.0
      %1489 = vmatprep.subr.mxu0 0.0
      %1490 = vmatpush1.msra.mxu0 0.0
      %1491 = vmatprep.subr.mxu0 0.0
      %1492 = vmatpush1.msra.mxu0 0.0
      %1493 = vmatprep.subr.mxu0 0.0
      %1494 = vmatpush1.msra.mxu0 0.0
      %1495 = vmatprep.subr.mxu0 0.0
      %1496 = vmatpush1.msra.mxu0 0.0
      %1497 = vmatprep.subr.mxu0 0.0
      %1498 = vmatpush1.msra.mxu0 0.0
      %1499 = vmatprep.subr.mxu0 0.0
      %1500 = vmatpush1.msra.mxu0 0.0
      %1501 = vmatprep.subr.mxu0 0.0
      %1502 = vmatpush1.msra.mxu0 0.0
      %1503 = vmatprep.subr.mxu0 0.0
      %1504 = vmatpush1.msra.mxu0 0.0
      %1505 = vmatprep.subr.mxu0 0.0
      %1506 = vmatpush1.msra.mxu0 0.0
      %1507 = vmatprep.subr.mxu0 0.0
      %1508 = vmatpush1.msra.mxu0 0.0
      %1509 = vmatprep.subr.mxu0 0.0
      %1510 = vmatpush1.msra.mxu0 0.0
      %1511 = vmatprep.subr.mxu0 0.0
      %1512 = vmatpush1.msra.mxu0 0.0
      %1513 = vmatprep.subr.mxu0 0.0
      %1514 = vmatpush1.msra.mxu0 0.0
      %1515 = vmatprep.subr.mxu0 0.0
      %1516 = vmatpush1.msra.mxu0 0.0
      %1517 = vmatprep.subr.mxu0 0.0
      %1518 = vmatpush1.msra.mxu0 0.0
      %1519 = vmatprep.subr.mxu0 0.0
      %1520 = vmatpush1.msra.mxu0 0.0
      %1521 = vmatprep.subr.mxu0 0.0
      %1522 = vmatpush1.msra.mxu0 0.0
      %1523 = vmatprep.subr.mxu0 0.0
      %1524 = vmatpush1.msra.mxu0 0.0
      %1525 = vmatprep.subr.mxu0 0.0
      %1526 = vmatpush1.msra.mxu0 0.0
      %1527 = vmatprep.subr.mxu0 0.0
      %1528 = vmatpush1.msra.mxu0 0.0
      %1529 = vmatprep.subr.mxu0 0.0
      %1530 = vmatpush1.msra.mxu0 0.0
      %1531 = vmatprep.subr.mxu0 0.0
      %1532 = vmatpush1.msra.mxu0 0.0
      %1533 = vmatprep.subr.mxu0 0.0
      %1534 = vmatpush1.msra.mxu0 0.0
      %1535 = vmatprep.subr.mxu0 0.0
      %1536 = vmatpush1.msra.mxu0 0.0
      %1537 = vmatprep.mubr.f32.mxu0 0.0
      %1538 = vmatmul.mubr.f32.gmra.mrb[0].mxu0 %v617
      %v1539 = vpop.f32.mrb[0].mxu0
      %v1540 = vadd.f32 0.0, %v1539
      %v1541 = vpop.f32.mrb[0].mxu0
      %1542 = vmatprep.mubr.f32.mxu0 0.0
      %1543 = vmatmul.mubr.f32.gmra.mrb[0].mxu0 %v619
      %v1544 = vpop.f32.mrb[0].mxu0
      %v1545 = vadd.f32 0.0, %v1544
      %v1546 = vpop.f32.mrb[0].mxu0
      %1547 = vmatprep.mubr.f32.mxu0 0.0
      %1548 = vmatmul.mubr.f32.gmra.mrb[0].mxu0 %v621
      %v1549 = vpop.f32.mrb[0].mxu0
      %v1550 = vadd.f32 0.0, %v1549
      %v1551 = vpop.f32.mrb[0].mxu0
      %1552 = vmatprep.mubr.f32.mxu0 0.0
      %1553 = vmatmul.mubr.f32.gmra.mrb[0].mxu0 %v623
      %v1554 = vpop.f32.mrb[0].mxu0
      %v1555 = vadd.f32 0.0, %v1554
      %v1556 = vpop.f32.mrb[0].mxu0
      %1557 = vmatprep.mubr.f32.mxu0 0.0
      %1558 = vmatmul.mubr.f32.gmra.mrb[0].mxu0 %v625
      %v1559 = vpop.f32.mrb[0].mxu0
      %v1560 = vadd.f32 0.0, %v1559
      %v1561 = vpop.f32.mrb[0].mxu0
      %1562 = vmatprep.mubr.f32.mxu0 0.0
      %1563 = vmatmul.mubr.f32.gmra.mrb[0].mxu0 %v627
      %v1564 = vpop.f32.mrb[0].mxu0
      %v1565 = vadd.f32 0.0, %v1564
      %v1566 = vpop.f32.mrb[0].mxu0
      %1567 = vmatprep.mubr.f32.mxu0 0.0
      %1568 = vmatmul.mubr.f32.gmra.mrb[0].mxu0 %v629
      %v1569 = vpop.f32.mrb[0].mxu0
      %v1570 = vadd.f32 0.0, %v1569
      %v1571 = vpop.f32.mrb[0].mxu0
      %1572 = vmatprep.mubr.f32.mxu0 0.0
      %1573 = vmatmul.mubr.f32.gmra.mrb[0].mxu0 %v631
      %v1574 = vpop.f32.mrb[0].mxu0
      %v1575 = vadd.f32 0.0, %v1574
      %v1576 = vpop.f32.mrb[0].mxu0
      %1577 = vmatprep.mubr.f32.mxu0 0.0
      %1578 = vmatmul.mubr.f32.gmra.mrb[0].mxu0 %v633
      %v1579 = vpop.f32.mrb[0].mxu0
      %v1580 = vadd.f32 0.0, %v1579
      %v1581 = vpop.f32.mrb[0].mxu0
      %1582 = vmatprep.mubr.f32.mxu0 0.0
      %1583 = vmatmul.mubr.f32.gmra.mrb[0].mxu0 %v635
      %v1584 = vpop.f32.mrb[0].mxu0
      %v1585 = vadd.f32 0.0, %v1584
      %v1586 = vpop.f32.mrb[0].mxu0
      %1587 = vmatprep.mubr.f32.mxu0 0.0
      %1588 = vmatmul.mubr.f32.gmra.mrb[0].mxu0 %v637
      %v1589 = vpop.f32.mrb[0].mxu0
      %v1590 = vadd.f32 0.0, %v1589
      %v1591 = vpop.f32.mrb[0].mxu0
      %1592 = vmatprep.mubr.f32.mxu0 0.0
      %1593 = vmatmul.mubr.f32.gmra.mrb[0].mxu0 %v639
      %v1594 = vpop.f32.mrb[0].mxu0
      %v1595 = vadd.f32 0.0, %v1594
      %v1596 = vpop.f32.mrb[0].mxu0
      %1597 = vmatprep.mubr.f32.mxu0 0.0
      %1598 = vmatmul.mubr.f32.gmra.mrb[0].mxu0 %v641
      %v1599 = vpop.f32.mrb[0].mxu0
      %v1600 = vadd.f32 0.0, %v1599
      %v1601 = vpop.f32.mrb[0].mxu0
      %1602 = vmatprep.mubr.f32.mxu0 0.0
      %1603 = vmatmul.mubr.f32.gmra.mrb[0].mxu0 %v643
      %v1604 = vpop.f32.mrb[0].mxu0
      %v1605 = vadd.f32 0.0, %v1604
      %v1606 = vpop.f32.mrb[0].mxu0
      %1607 = vmatprep.mubr.f32.mxu0 0.0
      %1608 = vmatmul.mubr.f32.gmra.mrb[0].mxu0 %v645
      %v1609 = vpop.f32.mrb[0].mxu0
      %v1610 = vadd.f32 0.0, %v1609
      %v1611 = vpop.f32.mrb[0].mxu0
      %1612 = vmatprep.mubr.f32.mxu0 0.0
      %1613 = vmatmul.mubr.f32.gmra.mrb[0].mxu0 %v647
      %v1614 = vpop.f32.mrb[0].mxu0
      %v1615 = vadd.f32 0.0, %v1614
      %v1616 = vpop.f32.mrb[0].mxu0
      %1617 = vmatprep.mubr.f32.mxu0 0.0
      %1618 = vmatmul.mubr.f32.gmra.mrb[0].mxu0 %v649
      %v1619 = vpop.f32.mrb[0].mxu0
      %v1620 = vadd.f32 0.0, %v1619
      %v1621 = vpop.f32.mrb[0].mxu0
      %1622 = vmatprep.mubr.f32.mxu0 0.0
      %1623 = vmatmul.mubr.f32.gmra.mrb[0].mxu0 %v651
      %v1624 = vpop.f32.mrb[0].mxu0
      %v1625 = vadd.f32 0.0, %v1624
      %v1626 = vpop.f32.mrb[0].mxu0
      %1627 = vmatprep.mubr.f32.mxu0 0.0
      %1628 = vmatmul.mubr.f32.gmra.mrb[0].mxu0 %v653
      %v1629 = vpop.f32.mrb[0].mxu0
      %v1630 = vadd.f32 0.0, %v1629
      %v1631 = vpop.f32.mrb[0].mxu0
      %1632 = vmatprep.mubr.f32.mxu0 0.0
      %1633 = vmatmul.mubr.f32.gmra.mrb[0].mxu0 %v655
      %v1634 = vpop.f32.mrb[0].mxu0
      %v1635 = vadd.f32 0.0, %v1634
      %v1636 = vpop.f32.mrb[0].mxu0
      %1637 = vmatprep.mubr.f32.mxu0 0.0
      %1638 = vmatmul.mubr.f32.gmra.mrb[0].mxu0 %v657
      %v1639 = vpop.f32.mrb[0].mxu0
      %v1640 = vadd.f32 0.0, %v1639
      %v1641 = vpop.f32.mrb[0].mxu0
      %1642 = vmatprep.mubr.f32.mxu0 0.0
      %1643 = vmatmul.mubr.f32.gmra.mrb[0].mxu0 %v659
      %v1644 = vpop.f32.mrb[0].mxu0
      %v1645 = vadd.f32 0.0, %v1644
      %v1646 = vpop.f32.mrb[0].mxu0
      %1647 = vmatprep.mubr.f32.mxu0 0.0
      %1648 = vmatmul.mubr.f32.gmra.mrb[0].mxu0 %v661
      %v1649 = vpop.f32.mrb[0].mxu0
      %v1650 = vadd.f32 0.0, %v1649
      %v1651 = vpop.f32.mrb[0].mxu0
      %1652 = vmatprep.mubr.f32.mxu0 0.0
      %1653 = vmatmul.mubr.f32.gmra.mrb[0].mxu0 %v663
      %v1654 = vpop.f32.mrb[0].mxu0
      %v1655 = vadd.f32 0.0, %v1654
      %v1656 = vpop.f32.mrb[0].mxu0
      %1657 = vmatprep.mubr.f32.mxu0 0.0
      %1658 = vmatmul.mubr.f32.gmra.mrb[0].mxu0 %v665
      %v1659 = vpop.f32.mrb[0].mxu0
      %v1660 = vadd.f32 0.0, %v1659
      %v1661 = vpop.f32.mrb[0].mxu0
      %1662 = vmatprep.mubr.f32.mxu0 0.0
      %1663 = vmatmul.mubr.f32.gmra.mrb[0].mxu0 %v667
      %v1664 = vpop.f32.mrb[0].mxu0
      %v1665 = vadd.f32 0.0, %v1664
      %v1666 = vpop.f32.mrb[0].mxu0
      %1667 = vmatprep.mubr.f32.mxu0 0.0
      %1668 = vmatmul.mubr.f32.gmra.mrb[0].mxu0 %v669
      %v1669 = vpop.f32.mrb[0].mxu0
      %v1670 = vadd.f32 0.0, %v1669
      %v1671 = vpop.f32.mrb[0].mxu0
      %1672 = vmatprep.mubr.f32.mxu0 0.0
      %1673 = vmatmul.mubr.f32.gmra.mrb[0].mxu0 %v671
      %v1674 = vpop.f32.mrb[0].mxu0
      %v1675 = vadd.f32 0.0, %v1674
      %v1676 = vpop.f32.mrb[0].mxu0
      %1677 = vmatprep.mubr.f32.mxu0 0.0
      %1678 = vmatmul.mubr.f32.gmra.mrb[0].mxu0 %v673
      %v1679 = vpop.f32.mrb[0].mxu0
      %v1680 = vadd.f32 0.0, %v1679
      %v1681 = vpop.f32.mrb[0].mxu0
      %1682 = vmatprep.mubr.f32.mxu0 0.0
      %1683 = vmatmul.mubr.f32.gmra.mrb[0].mxu0 %v675
      %v1684 = vpop.f32.mrb[0].mxu0
      %v1685 = vadd.f32 0.0, %v1684
      %v1686 = vpop.f32.mrb[0].mxu0
      %1687 = vmatprep.mubr.f32.mxu0 0.0
      %1688 = vmatmul.mubr.f32.gmra.mrb[0].mxu0 %v1466
      %v1689 = vpop.f32.mrb[0].mxu0
      %v1690 = vadd.f32 0.0, %v1689
      %v1691 = vpop.f32.mrb[0].mxu0
      %1692 = vmatprep.mubr.f32.mxu0 0.0
      %1693 = vmatmul.mubr.f32.gmra.mrb[0].mxu0 %v1468
      %v1694 = vpop.f32.mrb[0].mxu0
      %v1695 = vadd.f32 0.0, %v1694
      %v1696 = vpop.f32.mrb[0].mxu0
      %1697 = vdwg.mxu0
      %v1698 = vadd.f32 %v1432, %v1540
      %v1699 = vadd.f32 %v1433, %v1545
      %v1700 = vadd.f32 %v1434, %v1550
      %v1701 = vadd.f32 %v1435, %v1555
      %v1702 = vadd.f32 %v1436, %v1560
      %v1703 = vadd.f32 %v1437, %v1565
      %v1704 = vadd.f32 %v1438, %v1570
      %v1705 = vadd.f32 %v1439, %v1575
      %v1706 = vadd.f32 %v1440, %v1580
      %v1707 = vadd.f32 %v1441, %v1585
      %v1708 = vadd.f32 %v1442, %v1590
      %v1709 = vadd.f32 %v1443, %v1595
      %v1710 = vadd.f32 %v1444, %v1600
      %v1711 = vadd.f32 %v1445, %v1605
      %v1712 = vadd.f32 %v1446, %v1610
      %v1713 = vadd.f32 %v1447, %v1615
      %v1714 = vadd.f32 %v1448, %v1620
      %v1715 = vadd.f32 %v1449, %v1625
      %v1716 = vadd.f32 %v1450, %v1630
      %v1717 = vadd.f32 %v1451, %v1635
      %v1718 = vadd.f32 %v1452, %v1640
      %v1719 = vadd.f32 %v1453, %v1645
      %v1720 = vadd.f32 %v1454, %v1650
      %v1721 = vadd.f32 %v1455, %v1655
      %v1722 = vadd.f32 %v1456, %v1660
      %v1723 = vadd.f32 %v1457, %v1665
      %v1724 = vadd.f32 %v1458, %v1670
      %v1725 = vadd.f32 %v1459, %v1675
      %v1726 = vadd.f32 %v1460, %v1680
      %v1727 = vadd.f32 %v1461, %v1685
      %v1728 = vadd.f32 %v1462, %v1690
      %v1729 = vadd.f32 %v1463, %v1695
      %v1731 = vlaneseq
      %v1732 = vshrl.u32 %v1731, 7
      %v1733 = vsub.s32 0, %v1732
      %v1734 = vrot.slane %v372, %v1733
      %v1736 = vadd.f32 %v1698, %v1734
      %v1737 = vadd.f32 %v1699, %v1734
      %v1738 = vadd.f32 %v1700, %v1734
      %v1739 = vadd.f32 %v1701, %v1734
      %v1740 = vadd.f32 %v1702, %v1734
      %v1741 = vadd.f32 %v1703, %v1734
      %v1742 = vadd.f32 %v1704, %v1734
      %v1743 = vadd.f32 %v1705, %v1734
      %v1744 = vadd.f32 %v1706, %v1734
      %v1745 = vadd.f32 %v1707, %v1734
      %v1746 = vadd.f32 %v1708, %v1734
      %v1747 = vadd.f32 %v1709, %v1734
      %v1748 = vadd.f32 %v1710, %v1734
      %v1749 = vadd.f32 %v1711, %v1734
      %v1750 = vadd.f32 %v1712, %v1734
      %v1751 = vadd.f32 %v1713, %v1734
      %v1752 = vadd.f32 %v1714, %v1734
      %v1753 = vadd.f32 %v1715, %v1734
      %v1754 = vadd.f32 %v1716, %v1734
      %v1755 = vadd.f32 %v1717, %v1734
      %v1756 = vadd.f32 %v1718, %v1734
      %v1757 = vadd.f32 %v1719, %v1734
      %v1758 = vadd.f32 %v1720, %v1734
      %v1759 = vadd.f32 %v1721, %v1734
      %v1760 = vadd.f32 %v1722, %v1734
      %v1761 = vadd.f32 %v1723, %v1734
      %v1762 = vadd.f32 %v1724, %v1734
      %v1763 = vadd.f32 %v1725, %v1734
      %v1764 = vadd.f32 %v1726, %v1734
      %v1765 = vadd.f32 %v1727, %v1734
      %v1766 = vadd.f32 %v1728, %v1734
      %v1767 = vadd.f32 %v1729, %v1734
      %1768 = vst.msk [vmem:[%s316] sm:$0xff] %vm612, %v1736
      %1769 = vst.msk [vmem:[%s316 + $0x8] sm:$0xff] %vm612, %v1737
      %1770 = vst.msk [vmem:[%s316 + $0x10] sm:$0xff] %vm612, %v1738
      %1771 = vst.msk [vmem:[%s316 + $0x18] sm:$0xff] %vm612, %v1739
      %1772 = vst.msk [vmem:[%s316 + $0x20] sm:$0xff] %vm612, %v1740
      %1773 = vst.msk [vmem:[%s316 + $0x28] sm:$0xff] %vm612, %v1741
      %1774 = vst.msk [vmem:[%s316 + $0x30] sm:$0xff] %vm612, %v1742
      %1775 = vst.msk [vmem:[%s316 + $0x38] sm:$0xff] %vm612, %v1743
      %1776 = vst.msk [vmem:[%s316 + $0x40] sm:$0xff] %vm612, %v1744
      %1777 = vst.msk [vmem:[%s316 + $0x48] sm:$0xff] %vm612, %v1745
      %1778 = vst.msk [vmem:[%s316 + $0x50] sm:$0xff] %vm612, %v1746
      %1779 = vst.msk [vmem:[%s316 + $0x58] sm:$0xff] %vm612, %v1747
      %1780 = vst.msk [vmem:[%s316 + $0x60] sm:$0xff] %vm612, %v1748
      %1781 = vst.msk [vmem:[%s316 + $0x68] sm:$0xff] %vm612, %v1749
      %1782 = vst.msk [vmem:[%s316 + $0x70] sm:$0xff] %vm612, %v1750
      %1783 = vst.msk [vmem:[%s316 + $0x78] sm:$0xff] %vm612, %v1751
      %1784 = vst.msk [vmem:[%s316 + $0x80] sm:$0xff] %vm612, %v1752
      %1785 = vst.msk [vmem:[%s316 + $0x88] sm:$0xff] %vm612, %v1753
      %1786 = vst.msk [vmem:[%s316 + $0x90] sm:$0xff] %vm612, %v1754
      %1787 = vst.msk [vmem:[%s316 + $0x98] sm:$0xff] %vm612, %v1755
      %1788 = vst.msk [vmem:[%s316 + $0xa0] sm:$0xff] %vm612, %v1756
      %1789 = vst.msk [vmem:[%s316 + $0xa8] sm:$0xff] %vm612, %v1757
      %1790 = vst.msk [vmem:[%s316 + $0xb0] sm:$0xff] %vm612, %v1758
      %1791 = vst.msk [vmem:[%s316 + $0xb8] sm:$0xff] %vm612, %v1759
      %1792 = vst.msk [vmem:[%s316 + $0xc0] sm:$0xff] %vm612, %v1760
      %1793 = vst.msk [vmem:[%s316 + $0xc8] sm:$0xff] %vm612, %v1761
      %1794 = vst.msk [vmem:[%s316 + $0xd0] sm:$0xff] %vm612, %v1762
      %1795 = vst.msk [vmem:[%s316 + $0xd8] sm:$0xff] %vm612, %v1763
      %1796 = vst.msk [vmem:[%s316 + $0xe0] sm:$0xff] %vm612, %v1764
      %1797 = vst.msk [vmem:[%s316 + $0xe8] sm:$0xff] %vm612, %v1765
      %1798 = vst.msk [vmem:[%s316 + $0xf0] sm:$0xff] %vm612, %v1766
      %1799 = vst.msk [vmem:[%s316 + $0xf8] sm:$0xff] %vm612, %v1767
      %s1800 = scalar_lea.vmem %s2, 16
      %v1801 = vld [vmem:[%s1800] sm:$0xf]
      %s1802 = scalar_lea.vmem %s2, 20
      %v1803 = vld [vmem:[%s1802] sm:$0xf]
      %v1804 = vsel %vm612, %v505, 0
      %v1806 = vsel %vm612, %v507, 0
      %v1808 = vsel %vm612, %v510, 0
      %v1810 = vsel %vm612, %v512, 0
      %v1812 = vsel %vm612, %v515, 0
      %v1814 = vsel %vm612, %v517, 0
      %v1816 = vsel %vm612, %v520, 0
      %v1818 = vsel %vm612, %v522, 0
      %v1820 = vsel %vm612, %v525, 0
      %v1822 = vsel %vm612, %v527, 0
      %v1824 = vsel %vm612, %v530, 0
      %v1826 = vsel %vm612, %v532, 0
      %v1828 = vsel %vm612, %v535, 0
      %v1830 = vsel %vm612, %v537, 0
      %v1832 = vsel %vm612, %v540, 0
      %v1834 = vsel %vm612, %v542, 0
      %v1836 = vsel %vm612, %v545, 0
      %v1838 = vsel %vm612, %v547, 0
      %v1840 = vsel %vm612, %v550, 0
      %v1842 = vsel %vm612, %v552, 0
      %v1844 = vsel %vm612, %v555, 0
      %v1846 = vsel %vm612, %v557, 0
      %v1848 = vsel %vm612, %v560, 0
      %v1850 = vsel %vm612, %v562, 0
      %v1852 = vsel %vm612, %v565, 0
      %v1854 = vsel %vm612, %v567, 0
      %v1856 = vsel %vm612, %v570, 0
      %v1858 = vsel %vm612, %v572, 0
      %v1860 = vsel %vm612, %v575, 0
      %v1862 = vsel %vm612, %v577, 0
      %v1864 = vsel %vm612, %v580, 0
      %v1866 = vsel %vm612, %v582, 0
      %v1869 = vsel %vm677, %v1803, 0
      %1871 = vmatprep.subr.mxu0 0.0
      %1872 = vmatpush1.msra.mxu0 %v1869
      %1873 = vmatprep.subr.mxu0 0.0
      %1874 = vmatpush1.msra.mxu0 0.0
      %1875 = vmatprep.subr.mxu0 0.0
      %1876 = vmatpush1.msra.mxu0 0.0
      %1877 = vmatprep.subr.mxu0 0.0
      %1878 = vmatpush1.msra.mxu0 0.0
      %1879 = vmatprep.subr.mxu0 0.0
      %1880 = vmatpush1.msra.mxu0 0.0
      %1881 = vmatprep.subr.mxu0 0.0
      %1882 = vmatpush1.msra.mxu0 0.0
      %1883 = vmatprep.subr.mxu0 0.0
      %1884 = vmatpush1.msra.mxu0 0.0
      %1885 = vmatprep.subr.mxu0 0.0
      %1886 = vmatpush1.msra.mxu0 0.0
      %1887 = vmatprep.subr.mxu0 0.0
      %1888 = vmatpush1.msra.mxu0 0.0
      %1889 = vmatprep.subr.mxu0 0.0
      %1890 = vmatpush1.msra.mxu0 0.0
      %1891 = vmatprep.subr.mxu0 0.0
      %1892 = vmatpush1.msra.mxu0 0.0
      %1893 = vmatprep.subr.mxu0 0.0
      %1894 = vmatpush1.msra.mxu0 0.0
      %1895 = vmatprep.subr.mxu0 0.0
      %1896 = vmatpush1.msra.mxu0 0.0
      %1897 = vmatprep.subr.mxu0 0.0
      %1898 = vmatpush1.msra.mxu0 0.0
      %1899 = vmatprep.subr.mxu0 0.0
      %1900 = vmatpush1.msra.mxu0 0.0
      %1901 = vmatprep.subr.mxu0 0.0
      %1902 = vmatpush1.msra.mxu0 0.0
      %1903 = vmatprep.subr.mxu0 0.0
      %1904 = vmatpush1.msra.mxu0 0.0
      %1905 = vmatprep.subr.mxu0 0.0
      %1906 = vmatpush1.msra.mxu0 0.0
      %1907 = vmatprep.subr.mxu0 0.0
      %1908 = vmatpush1.msra.mxu0 0.0
      %1909 = vmatprep.subr.mxu0 0.0
      %1910 = vmatpush1.msra.mxu0 0.0
      %1911 = vmatprep.subr.mxu0 0.0
      %1912 = vmatpush1.msra.mxu0 0.0
      %1913 = vmatprep.subr.mxu0 0.0
      %1914 = vmatpush1.msra.mxu0 0.0
      %1915 = vmatprep.subr.mxu0 0.0
      %1916 = vmatpush1.msra.mxu0 0.0
      %1917 = vmatprep.subr.mxu0 0.0
      %1918 = vmatpush1.msra.mxu0 0.0
      %1919 = vmatprep.subr.mxu0 0.0
      %1920 = vmatpush1.msra.mxu0 0.0
      %1921 = vmatprep.subr.mxu0 0.0
      %1922 = vmatpush1.msra.mxu0 0.0
      %1923 = vmatprep.subr.mxu0 0.0
      %1924 = vmatpush1.msra.mxu0 0.0
      %1925 = vmatprep.subr.mxu0 0.0
      %1926 = vmatpush1.msra.mxu0 0.0
      %1927 = vmatprep.subr.mxu0 0.0
      %1928 = vmatpush1.msra.mxu0 0.0
      %1929 = vmatprep.subr.mxu0 0.0
      %1930 = vmatpush1.msra.mxu0 0.0
      %1931 = vmatprep.subr.mxu0 0.0
      %1932 = vmatpush1.msra.mxu0 0.0
      %1933 = vmatprep.subr.mxu0 0.0
      %1934 = vmatpush1.msra.mxu0 0.0
      %1935 = vmatprep.mubr.f32.mxu0 0.0
      %1936 = vmatmul.mubr.f32.gmra.mrb[0].mxu0 %v1804
      %v1937 = vpop.f32.mrb[0].mxu0
      %v1938 = vadd.f32 0.0, %v1937
      %v1939 = vpop.f32.mrb[0].mxu0
      %1940 = vmatprep.mubr.f32.mxu0 0.0
      %1941 = vmatmul.mubr.f32.gmra.mrb[0].mxu0 %v1806
      %v1942 = vpop.f32.mrb[0].mxu0
      %v1943 = vadd.f32 0.0, %v1942
      %v1944 = vpop.f32.mrb[0].mxu0
      %1945 = vmatprep.mubr.f32.mxu0 0.0
      %1946 = vmatmul.mubr.f32.gmra.mrb[0].mxu0 %v1808
      %v1947 = vpop.f32.mrb[0].mxu0
      %v1948 = vadd.f32 0.0, %v1947
      %v1949 = vpop.f32.mrb[0].mxu0
      %1950 = vmatprep.mubr.f32.mxu0 0.0
      %1951 = vmatmul.mubr.f32.gmra.mrb[0].mxu0 %v1810
      %v1952 = vpop.f32.mrb[0].mxu0
      %v1953 = vadd.f32 0.0, %v1952
      %v1954 = vpop.f32.mrb[0].mxu0
      %1955 = vmatprep.mubr.f32.mxu0 0.0
      %1956 = vmatmul.mubr.f32.gmra.mrb[0].mxu0 %v1812
      %v1957 = vpop.f32.mrb[0].mxu0
      %v1958 = vadd.f32 0.0, %v1957
      %v1959 = vpop.f32.mrb[0].mxu0
      %1960 = vmatprep.mubr.f32.mxu0 0.0
      %1961 = vmatmul.mubr.f32.gmra.mrb[0].mxu0 %v1814
      %v1962 = vpop.f32.mrb[0].mxu0
      %v1963 = vadd.f32 0.0, %v1962
      %v1964 = vpop.f32.mrb[0].mxu0
      %1965 = vmatprep.mubr.f32.mxu0 0.0
      %1966 = vmatmul.mubr.f32.gmra.mrb[0].mxu0 %v1816
      %v1967 = vpop.f32.mrb[0].mxu0
      %v1968 = vadd.f32 0.0, %v1967
      %v1969 = vpop.f32.mrb[0].mxu0
      %1970 = vmatprep.mubr.f32.mxu0 0.0
      %1971 = vmatmul.mubr.f32.gmra.mrb[0].mxu0 %v1818
      %v1972 = vpop.f32.mrb[0].mxu0
      %v1973 = vadd.f32 0.0, %v1972
      %v1974 = vpop.f32.mrb[0].mxu0
      %1975 = vmatprep.mubr.f32.mxu0 0.0
      %1976 = vmatmul.mubr.f32.gmra.mrb[0].mxu0 %v1820
      %v1977 = vpop.f32.mrb[0].mxu0
      %v1978 = vadd.f32 0.0, %v1977
      %v1979 = vpop.f32.mrb[0].mxu0
      %1980 = vmatprep.mubr.f32.mxu0 0.0
      %1981 = vmatmul.mubr.f32.gmra.mrb[0].mxu0 %v1822
      %v1982 = vpop.f32.mrb[0].mxu0
      %v1983 = vadd.f32 0.0, %v1982
      %v1984 = vpop.f32.mrb[0].mxu0
      %1985 = vmatprep.mubr.f32.mxu0 0.0
      %1986 = vmatmul.mubr.f32.gmra.mrb[0].mxu0 %v1824
      %v1987 = vpop.f32.mrb[0].mxu0
      %v1988 = vadd.f32 0.0, %v1987
      %v1989 = vpop.f32.mrb[0].mxu0
      %1990 = vmatprep.mubr.f32.mxu0 0.0
      %1991 = vmatmul.mubr.f32.gmra.mrb[0].mxu0 %v1826
      %v1992 = vpop.f32.mrb[0].mxu0
      %v1993 = vadd.f32 0.0, %v1992
      %v1994 = vpop.f32.mrb[0].mxu0
      %1995 = vmatprep.mubr.f32.mxu0 0.0
      %1996 = vmatmul.mubr.f32.gmra.mrb[0].mxu0 %v1828
      %v1997 = vpop.f32.mrb[0].mxu0
      %v1998 = vadd.f32 0.0, %v1997
      %v1999 = vpop.f32.mrb[0].mxu0
      %2000 = vmatprep.mubr.f32.mxu0 0.0
      %2001 = vmatmul.mubr.f32.gmra.mrb[0].mxu0 %v1830
      %v2002 = vpop.f32.mrb[0].mxu0
      %v2003 = vadd.f32 0.0, %v2002
      %v2004 = vpop.f32.mrb[0].mxu0
      %2005 = vmatprep.mubr.f32.mxu0 0.0
      %2006 = vmatmul.mubr.f32.gmra.mrb[0].mxu0 %v1832
      %v2007 = vpop.f32.mrb[0].mxu0
      %v2008 = vadd.f32 0.0, %v2007
      %v2009 = vpop.f32.mrb[0].mxu0
      %2010 = vmatprep.mubr.f32.mxu0 0.0
      %2011 = vmatmul.mubr.f32.gmra.mrb[0].mxu0 %v1834
      %v2012 = vpop.f32.mrb[0].mxu0
      %v2013 = vadd.f32 0.0, %v2012
      %v2014 = vpop.f32.mrb[0].mxu0
      %2015 = vmatprep.mubr.f32.mxu0 0.0
      %2016 = vmatmul.mubr.f32.gmra.mrb[0].mxu0 %v1836
      %v2017 = vpop.f32.mrb[0].mxu0
      %v2018 = vadd.f32 0.0, %v2017
      %v2019 = vpop.f32.mrb[0].mxu0
      %2020 = vmatprep.mubr.f32.mxu0 0.0
      %2021 = vmatmul.mubr.f32.gmra.mrb[0].mxu0 %v1838
      %v2022 = vpop.f32.mrb[0].mxu0
      %v2023 = vadd.f32 0.0, %v2022
      %v2024 = vpop.f32.mrb[0].mxu0
      %2025 = vmatprep.mubr.f32.mxu0 0.0
      %2026 = vmatmul.mubr.f32.gmra.mrb[0].mxu0 %v1840
      %v2027 = vpop.f32.mrb[0].mxu0
      %v2028 = vadd.f32 0.0, %v2027
      %v2029 = vpop.f32.mrb[0].mxu0
      %2030 = vmatprep.mubr.f32.mxu0 0.0
      %2031 = vmatmul.mubr.f32.gmra.mrb[0].mxu0 %v1842
      %v2032 = vpop.f32.mrb[0].mxu0
      %v2033 = vadd.f32 0.0, %v2032
      %v2034 = vpop.f32.mrb[0].mxu0
      %2035 = vmatprep.mubr.f32.mxu0 0.0
      %2036 = vmatmul.mubr.f32.gmra.mrb[0].mxu0 %v1844
      %v2037 = vpop.f32.mrb[0].mxu0
      %v2038 = vadd.f32 0.0, %v2037
      %v2039 = vpop.f32.mrb[0].mxu0
      %2040 = vmatprep.mubr.f32.mxu0 0.0
      %2041 = vmatmul.mubr.f32.gmra.mrb[0].mxu0 %v1846
      %v2042 = vpop.f32.mrb[0].mxu0
      %v2043 = vadd.f32 0.0, %v2042
      %v2044 = vpop.f32.mrb[0].mxu0
      %2045 = vmatprep.mubr.f32.mxu0 0.0
      %2046 = vmatmul.mubr.f32.gmra.mrb[0].mxu0 %v1848
      %v2047 = vpop.f32.mrb[0].mxu0
      %v2048 = vadd.f32 0.0, %v2047
      %v2049 = vpop.f32.mrb[0].mxu0
      %2050 = vmatprep.mubr.f32.mxu0 0.0
      %2051 = vmatmul.mubr.f32.gmra.mrb[0].mxu0 %v1850
      %v2052 = vpop.f32.mrb[0].mxu0
      %v2053 = vadd.f32 0.0, %v2052
      %v2054 = vpop.f32.mrb[0].mxu0
      %2055 = vmatprep.mubr.f32.mxu0 0.0
      %2056 = vmatmul.mubr.f32.gmra.mrb[0].mxu0 %v1852
      %v2057 = vpop.f32.mrb[0].mxu0
      %v2058 = vadd.f32 0.0, %v2057
      %v2059 = vpop.f32.mrb[0].mxu0
      %2060 = vmatprep.mubr.f32.mxu0 0.0
      %2061 = vmatmul.mubr.f32.gmra.mrb[0].mxu0 %v1854
      %v2062 = vpop.f32.mrb[0].mxu0
      %v2063 = vadd.f32 0.0, %v2062
      %v2064 = vpop.f32.mrb[0].mxu0
      %2065 = vmatprep.mubr.f32.mxu0 0.0
      %2066 = vmatmul.mubr.f32.gmra.mrb[0].mxu0 %v1856
      %v2067 = vpop.f32.mrb[0].mxu0
      %v2068 = vadd.f32 0.0, %v2067
      %v2069 = vpop.f32.mrb[0].mxu0
      %2070 = vmatprep.mubr.f32.mxu0 0.0
      %2071 = vmatmul.mubr.f32.gmra.mrb[0].mxu0 %v1858
      %v2072 = vpop.f32.mrb[0].mxu0
      %v2073 = vadd.f32 0.0, %v2072
      %v2074 = vpop.f32.mrb[0].mxu0
      %2075 = vmatprep.mubr.f32.mxu0 0.0
      %2076 = vmatmul.mubr.f32.gmra.mrb[0].mxu0 %v1860
      %v2077 = vpop.f32.mrb[0].mxu0
      %v2078 = vadd.f32 0.0, %v2077
      %v2079 = vpop.f32.mrb[0].mxu0
      %2080 = vmatprep.mubr.f32.mxu0 0.0
      %2081 = vmatmul.mubr.f32.gmra.mrb[0].mxu0 %v1862
      %v2082 = vpop.f32.mrb[0].mxu0
      %v2083 = vadd.f32 0.0, %v2082
      %v2084 = vpop.f32.mrb[0].mxu0
      %2085 = vmatprep.mubr.f32.mxu0 0.0
      %2086 = vmatmul.mubr.f32.gmra.mrb[0].mxu0 %v1864
      %v2087 = vpop.f32.mrb[0].mxu0
      %v2088 = vadd.f32 0.0, %v2087
      %v2089 = vpop.f32.mrb[0].mxu0
      %2090 = vmatprep.mubr.f32.mxu0 0.0
      %2091 = vmatmul.mubr.f32.gmra.mrb[0].mxu0 %v1866
      %v2092 = vpop.f32.mrb[0].mxu0
      %v2093 = vadd.f32 0.0, %v2092
      %v2094 = vpop.f32.mrb[0].mxu0
      %2095 = vdwg.mxu0
      %v2097 = vsel %vm677, %v1801, 0
      %2099 = vmatprep.subr.mxu0 0.0
      %2100 = vmatpush1.msra.mxu0 %v2097
      %2101 = vmatprep.subr.mxu0 0.0
      %2102 = vmatpush1.msra.mxu0 0.0
      %2103 = vmatprep.subr.mxu0 0.0
      %2104 = vmatpush1.msra.mxu0 0.0
      %2105 = vmatprep.subr.mxu0 0.0
      %2106 = vmatpush1.msra.mxu0 0.0
      %2107 = vmatprep.subr.mxu0 0.0
      %2108 = vmatpush1.msra.mxu0 0.0
      %2109 = vmatprep.subr.mxu0 0.0
      %2110 = vmatpush1.msra.mxu0 0.0
      %2111 = vmatprep.subr.mxu0 0.0
      %2112 = vmatpush1.msra.mxu0 0.0
      %2113 = vmatprep.subr.mxu0 0.0
      %2114 = vmatpush1.msra.mxu0 0.0
      %2115 = vmatprep.subr.mxu0 0.0
      %2116 = vmatpush1.msra.mxu0 0.0
      %2117 = vmatprep.subr.mxu0 0.0
      %2118 = vmatpush1.msra.mxu0 0.0
      %2119 = vmatprep.subr.mxu0 0.0
      %2120 = vmatpush1.msra.mxu0 0.0
      %2121 = vmatprep.subr.mxu0 0.0
      %2122 = vmatpush1.msra.mxu0 0.0
      %2123 = vmatprep.subr.mxu0 0.0
      %2124 = vmatpush1.msra.mxu0 0.0
      %2125 = vmatprep.subr.mxu0 0.0
      %2126 = vmatpush1.msra.mxu0 0.0
      %2127 = vmatprep.subr.mxu0 0.0
      %2128 = vmatpush1.msra.mxu0 0.0
      %2129 = vmatprep.subr.mxu0 0.0
      %2130 = vmatpush1.msra.mxu0 0.0
      %2131 = vmatprep.subr.mxu0 0.0
      %2132 = vmatpush1.msra.mxu0 0.0
      %2133 = vmatprep.subr.mxu0 0.0
      %2134 = vmatpush1.msra.mxu0 0.0
      %2135 = vmatprep.subr.mxu0 0.0
      %2136 = vmatpush1.msra.mxu0 0.0
      %2137 = vmatprep.subr.mxu0 0.0
      %2138 = vmatpush1.msra.mxu0 0.0
      %2139 = vmatprep.subr.mxu0 0.0
      %2140 = vmatpush1.msra.mxu0 0.0
      %2141 = vmatprep.subr.mxu0 0.0
      %2142 = vmatpush1.msra.mxu0 0.0
      %2143 = vmatprep.subr.mxu0 0.0
      %2144 = vmatpush1.msra.mxu0 0.0
      %2145 = vmatprep.subr.mxu0 0.0
      %2146 = vmatpush1.msra.mxu0 0.0
      %2147 = vmatprep.subr.mxu0 0.0
      %2148 = vmatpush1.msra.mxu0 0.0
      %2149 = vmatprep.subr.mxu0 0.0
      %2150 = vmatpush1.msra.mxu0 0.0
      %2151 = vmatprep.subr.mxu0 0.0
      %2152 = vmatpush1.msra.mxu0 0.0
      %2153 = vmatprep.subr.mxu0 0.0
      %2154 = vmatpush1.msra.mxu0 0.0
      %2155 = vmatprep.subr.mxu0 0.0
      %2156 = vmatpush1.msra.mxu0 0.0
      %2157 = vmatprep.subr.mxu0 0.0
      %2158 = vmatpush1.msra.mxu0 0.0
      %2159 = vmatprep.subr.mxu0 0.0
      %2160 = vmatpush1.msra.mxu0 0.0
      %2161 = vmatprep.subr.mxu0 0.0
      %2162 = vmatpush1.msra.mxu0 0.0
      %2163 = vmatprep.mubr.f32.mxu0 0.0
      %2164 = vmatmul.mubr.f32.gmra.mrb[0].mxu0 %v613
      %v2165 = vpop.f32.mrb[0].mxu0
      %v2166 = vadd.f32 %v1938, %v2165
      %v2167 = vpop.f32.mrb[0].mxu0
      %2168 = vmatprep.mubr.f32.mxu0 0.0
      %2169 = vmatmul.mubr.f32.gmra.mrb[0].mxu0 %v615
      %v2170 = vpop.f32.mrb[0].mxu0
      %v2171 = vadd.f32 %v1943, %v2170
      %v2172 = vpop.f32.mrb[0].mxu0
      %2173 = vmatprep.mubr.f32.mxu0 0.0
      %2174 = vmatmul.mubr.f32.gmra.mrb[0].mxu0 %v617
      %v2175 = vpop.f32.mrb[0].mxu0
      %v2176 = vadd.f32 %v1948, %v2175
      %v2177 = vpop.f32.mrb[0].mxu0
      %2178 = vmatprep.mubr.f32.mxu0 0.0
      %2179 = vmatmul.mubr.f32.gmra.mrb[0].mxu0 %v619
      %v2180 = vpop.f32.mrb[0].mxu0
      %v2181 = vadd.f32 %v1953, %v2180
      %v2182 = vpop.f32.mrb[0].mxu0
      %2183 = vmatprep.mubr.f32.mxu0 0.0
      %2184 = vmatmul.mubr.f32.gmra.mrb[0].mxu0 %v621
      %v2185 = vpop.f32.mrb[0].mxu0
      %v2186 = vadd.f32 %v1958, %v2185
      %v2187 = vpop.f32.mrb[0].mxu0
      %2188 = vmatprep.mubr.f32.mxu0 0.0
      %2189 = vmatmul.mubr.f32.gmra.mrb[0].mxu0 %v623
      %v2190 = vpop.f32.mrb[0].mxu0
      %v2191 = vadd.f32 %v1963, %v2190
      %v2192 = vpop.f32.mrb[0].mxu0
      %2193 = vmatprep.mubr.f32.mxu0 0.0
      %2194 = vmatmul.mubr.f32.gmra.mrb[0].mxu0 %v625
      %v2195 = vpop.f32.mrb[0].mxu0
      %v2196 = vadd.f32 %v1968, %v2195
      %v2197 = vpop.f32.mrb[0].mxu0
      %2198 = vmatprep.mubr.f32.mxu0 0.0
      %2199 = vmatmul.mubr.f32.gmra.mrb[0].mxu0 %v627
      %v2200 = vpop.f32.mrb[0].mxu0
      %v2201 = vadd.f32 %v1973, %v2200
      %v2202 = vpop.f32.mrb[0].mxu0
      %2203 = vmatprep.mubr.f32.mxu0 0.0
      %2204 = vmatmul.mubr.f32.gmra.mrb[0].mxu0 %v629
      %v2205 = vpop.f32.mrb[0].mxu0
      %v2206 = vadd.f32 %v1978, %v2205
      %v2207 = vpop.f32.mrb[0].mxu0
      %2208 = vmatprep.mubr.f32.mxu0 0.0
      %2209 = vmatmul.mubr.f32.gmra.mrb[0].mxu0 %v631
      %v2210 = vpop.f32.mrb[0].mxu0
      %v2211 = vadd.f32 %v1983, %v2210
      %v2212 = vpop.f32.mrb[0].mxu0
      %2213 = vmatprep.mubr.f32.mxu0 0.0
      %2214 = vmatmul.mubr.f32.gmra.mrb[0].mxu0 %v633
      %v2215 = vpop.f32.mrb[0].mxu0
      %v2216 = vadd.f32 %v1988, %v2215
      %v2217 = vpop.f32.mrb[0].mxu0
      %2218 = vmatprep.mubr.f32.mxu0 0.0
      %2219 = vmatmul.mubr.f32.gmra.mrb[0].mxu0 %v635
      %v2220 = vpop.f32.mrb[0].mxu0
      %v2221 = vadd.f32 %v1993, %v2220
      %v2222 = vpop.f32.mrb[0].mxu0
      %2223 = vmatprep.mubr.f32.mxu0 0.0
      %2224 = vmatmul.mubr.f32.gmra.mrb[0].mxu0 %v637
      %v2225 = vpop.f32.mrb[0].mxu0
      %v2226 = vadd.f32 %v1998, %v2225
      %v2227 = vpop.f32.mrb[0].mxu0
      %2228 = vmatprep.mubr.f32.mxu0 0.0
      %2229 = vmatmul.mubr.f32.gmra.mrb[0].mxu0 %v639
      %v2230 = vpop.f32.mrb[0].mxu0
      %v2231 = vadd.f32 %v2003, %v2230
      %v2232 = vpop.f32.mrb[0].mxu0
      %2233 = vmatprep.mubr.f32.mxu0 0.0
      %2234 = vmatmul.mubr.f32.gmra.mrb[0].mxu0 %v641
      %v2235 = vpop.f32.mrb[0].mxu0
      %v2236 = vadd.f32 %v2008, %v2235
      %v2237 = vpop.f32.mrb[0].mxu0
      %2238 = vmatprep.mubr.f32.mxu0 0.0
      %2239 = vmatmul.mubr.f32.gmra.mrb[0].mxu0 %v643
      %v2240 = vpop.f32.mrb[0].mxu0
      %v2241 = vadd.f32 %v2013, %v2240
      %v2242 = vpop.f32.mrb[0].mxu0
      %2243 = vmatprep.mubr.f32.mxu0 0.0
      %2244 = vmatmul.mubr.f32.gmra.mrb[0].mxu0 %v645
      %v2245 = vpop.f32.mrb[0].mxu0
      %v2246 = vadd.f32 %v2018, %v2245
      %v2247 = vpop.f32.mrb[0].mxu0
      %2248 = vmatprep.mubr.f32.mxu0 0.0
      %2249 = vmatmul.mubr.f32.gmra.mrb[0].mxu0 %v647
      %v2250 = vpop.f32.mrb[0].mxu0
      %v2251 = vadd.f32 %v2023, %v2250
      %v2252 = vpop.f32.mrb[0].mxu0
      %2253 = vmatprep.mubr.f32.mxu0 0.0
      %2254 = vmatmul.mubr.f32.gmra.mrb[0].mxu0 %v649
      %v2255 = vpop.f32.mrb[0].mxu0
      %v2256 = vadd.f32 %v2028, %v2255
      %v2257 = vpop.f32.mrb[0].mxu0
      %2258 = vmatprep.mubr.f32.mxu0 0.0
      %2259 = vmatmul.mubr.f32.gmra.mrb[0].mxu0 %v651
      %v2260 = vpop.f32.mrb[0].mxu0
      %v2261 = vadd.f32 %v2033, %v2260
      %v2262 = vpop.f32.mrb[0].mxu0
      %2263 = vmatprep.mubr.f32.mxu0 0.0
      %2264 = vmatmul.mubr.f32.gmra.mrb[0].mxu0 %v653
      %v2265 = vpop.f32.mrb[0].mxu0
      %v2266 = vadd.f32 %v2038, %v2265
      %v2267 = vpop.f32.mrb[0].mxu0
      %2268 = vmatprep.mubr.f32.mxu0 0.0
      %2269 = vmatmul.mubr.f32.gmra.mrb[0].mxu0 %v655
      %v2270 = vpop.f32.mrb[0].mxu0
      %v2271 = vadd.f32 %v2043, %v2270
      %v2272 = vpop.f32.mrb[0].mxu0
      %2273 = vmatprep.mubr.f32.mxu0 0.0
      %2274 = vmatmul.mubr.f32.gmra.mrb[0].mxu0 %v657
      %v2275 = vpop.f32.mrb[0].mxu0
      %v2276 = vadd.f32 %v2048, %v2275
      %v2277 = vpop.f32.mrb[0].mxu0
      %2278 = vmatprep.mubr.f32.mxu0 0.0
      %2279 = vmatmul.mubr.f32.gmra.mrb[0].mxu0 %v659
      %v2280 = vpop.f32.mrb[0].mxu0
      %v2281 = vadd.f32 %v2053, %v2280
      %v2282 = vpop.f32.mrb[0].mxu0
      %2283 = vmatprep.mubr.f32.mxu0 0.0
      %2284 = vmatmul.mubr.f32.gmra.mrb[0].mxu0 %v661
      %v2285 = vpop.f32.mrb[0].mxu0
      %v2286 = vadd.f32 %v2058, %v2285
      %v2287 = vpop.f32.mrb[0].mxu0
      %2288 = vmatprep.mubr.f32.mxu0 0.0
      %2289 = vmatmul.mubr.f32.gmra.mrb[0].mxu0 %v663
      %v2290 = vpop.f32.mrb[0].mxu0
      %v2291 = vadd.f32 %v2063, %v2290
      %v2292 = vpop.f32.mrb[0].mxu0
      %2293 = vmatprep.mubr.f32.mxu0 0.0
      %2294 = vmatmul.mubr.f32.gmra.mrb[0].mxu0 %v665
      %v2295 = vpop.f32.mrb[0].mxu0
      %v2296 = vadd.f32 %v2068, %v2295
      %v2297 = vpop.f32.mrb[0].mxu0
      %2298 = vmatprep.mubr.f32.mxu0 0.0
      %2299 = vmatmul.mubr.f32.gmra.mrb[0].mxu0 %v667
      %v2300 = vpop.f32.mrb[0].mxu0
      %v2301 = vadd.f32 %v2073, %v2300
      %v2302 = vpop.f32.mrb[0].mxu0
      %2303 = vmatprep.mubr.f32.mxu0 0.0
      %2304 = vmatmul.mubr.f32.gmra.mrb[0].mxu0 %v669
      %v2305 = vpop.f32.mrb[0].mxu0
      %v2306 = vadd.f32 %v2078, %v2305
      %v2307 = vpop.f32.mrb[0].mxu0
      %2308 = vmatprep.mubr.f32.mxu0 0.0
      %2309 = vmatmul.mubr.f32.gmra.mrb[0].mxu0 %v671
      %v2310 = vpop.f32.mrb[0].mxu0
      %v2311 = vadd.f32 %v2083, %v2310
      %v2312 = vpop.f32.mrb[0].mxu0
      %2313 = vmatprep.mubr.f32.mxu0 0.0
      %2314 = vmatmul.mubr.f32.gmra.mrb[0].mxu0 %v673
      %v2315 = vpop.f32.mrb[0].mxu0
      %v2316 = vadd.f32 %v2088, %v2315
      %v2317 = vpop.f32.mrb[0].mxu0
      %2318 = vmatprep.mubr.f32.mxu0 0.0
      %2319 = vmatmul.mubr.f32.gmra.mrb[0].mxu0 %v675
      %v2320 = vpop.f32.mrb[0].mxu0
      %v2321 = vadd.f32 %v2093, %v2320
      %v2322 = vpop.f32.mrb[0].mxu0
      %2323 = vdwg.mxu0
      %s2324 = scalar_lea.vmem %s2, 24
      %v2325 = vld [vmem:[%s2324] sm:$0xf]
      %v2327 = vsel %vm677, %v2325, 0
      %2329 = vmatprep.subr.mxu0 0.0
      %2330 = vmatpush1.msra.mxu0 %v2327
      %2331 = vmatprep.subr.mxu0 0.0
      %2332 = vmatpush1.msra.mxu0 0.0
      %2333 = vmatprep.subr.mxu0 0.0
      %2334 = vmatpush1.msra.mxu0 0.0
      %2335 = vmatprep.subr.mxu0 0.0
      %2336 = vmatpush1.msra.mxu0 0.0
      %2337 = vmatprep.subr.mxu0 0.0
      %2338 = vmatpush1.msra.mxu0 0.0
      %2339 = vmatprep.subr.mxu0 0.0
      %2340 = vmatpush1.msra.mxu0 0.0
      %2341 = vmatprep.subr.mxu0 0.0
      %2342 = vmatpush1.msra.mxu0 0.0
      %2343 = vmatprep.subr.mxu0 0.0
      %2344 = vmatpush1.msra.mxu0 0.0
      %2345 = vmatprep.subr.mxu0 0.0
      %2346 = vmatpush1.msra.mxu0 0.0
      %2347 = vmatprep.subr.mxu0 0.0
      %2348 = vmatpush1.msra.mxu0 0.0
      %2349 = vmatprep.subr.mxu0 0.0
      %2350 = vmatpush1.msra.mxu0 0.0
      %2351 = vmatprep.subr.mxu0 0.0
      %2352 = vmatpush1.msra.mxu0 0.0
      %2353 = vmatprep.subr.mxu0 0.0
      %2354 = vmatpush1.msra.mxu0 0.0
      %2355 = vmatprep.subr.mxu0 0.0
      %2356 = vmatpush1.msra.mxu0 0.0
      %2357 = vmatprep.subr.mxu0 0.0
      %2358 = vmatpush1.msra.mxu0 0.0
      %2359 = vmatprep.subr.mxu0 0.0
      %2360 = vmatpush1.msra.mxu0 0.0
      %2361 = vmatprep.subr.mxu0 0.0
      %2362 = vmatpush1.msra.mxu0 0.0
      %2363 = vmatprep.subr.mxu0 0.0
      %2364 = vmatpush1.msra.mxu0 0.0
      %2365 = vmatprep.subr.mxu0 0.0
      %2366 = vmatpush1.msra.mxu0 0.0
      %2367 = vmatprep.subr.mxu0 0.0
      %2368 = vmatpush1.msra.mxu0 0.0
      %2369 = vmatprep.subr.mxu0 0.0
      %2370 = vmatpush1.msra.mxu0 0.0
      %2371 = vmatprep.subr.mxu0 0.0
      %2372 = vmatpush1.msra.mxu0 0.0
      %2373 = vmatprep.subr.mxu0 0.0
      %2374 = vmatpush1.msra.mxu0 0.0
      %2375 = vmatprep.subr.mxu0 0.0
      %2376 = vmatpush1.msra.mxu0 0.0
      %2377 = vmatprep.subr.mxu0 0.0
      %2378 = vmatpush1.msra.mxu0 0.0
      %2379 = vmatprep.subr.mxu0 0.0
      %2380 = vmatpush1.msra.mxu0 0.0
      %2381 = vmatprep.subr.mxu0 0.0
      %2382 = vmatpush1.msra.mxu0 0.0
      %2383 = vmatprep.subr.mxu0 0.0
      %2384 = vmatpush1.msra.mxu0 0.0
      %2385 = vmatprep.subr.mxu0 0.0
      %2386 = vmatpush1.msra.mxu0 0.0
      %2387 = vmatprep.subr.mxu0 0.0
      %2388 = vmatpush1.msra.mxu0 0.0
      %2389 = vmatprep.subr.mxu0 0.0
      %2390 = vmatpush1.msra.mxu0 0.0
      %2391 = vmatprep.subr.mxu0 0.0
      %2392 = vmatpush1.msra.mxu0 0.0
      %2393 = vmatprep.mubr.f32.mxu0 0.0
      %2394 = vmatmul.mubr.f32.gmra.mrb[0].mxu0 %v617
      %v2395 = vpop.f32.mrb[0].mxu0
      %v2396 = vadd.f32 0.0, %v2395
      %v2397 = vpop.f32.mrb[0].mxu0
      %2398 = vmatprep.mubr.f32.mxu0 0.0
      %2399 = vmatmul.mubr.f32.gmra.mrb[0].mxu0 %v619
      %v2400 = vpop.f32.mrb[0].mxu0
      %v2401 = vadd.f32 0.0, %v2400
      %v2402 = vpop.f32.mrb[0].mxu0
      %2403 = vmatprep.mubr.f32.mxu0 0.0
      %2404 = vmatmul.mubr.f32.gmra.mrb[0].mxu0 %v621
      %v2405 = vpop.f32.mrb[0].mxu0
      %v2406 = vadd.f32 0.0, %v2405
      %v2407 = vpop.f32.mrb[0].mxu0
      %2408 = vmatprep.mubr.f32.mxu0 0.0
      %2409 = vmatmul.mubr.f32.gmra.mrb[0].mxu0 %v623
      %v2410 = vpop.f32.mrb[0].mxu0
      %v2411 = vadd.f32 0.0, %v2410
      %v2412 = vpop.f32.mrb[0].mxu0
      %2413 = vmatprep.mubr.f32.mxu0 0.0
      %2414 = vmatmul.mubr.f32.gmra.mrb[0].mxu0 %v625
      %v2415 = vpop.f32.mrb[0].mxu0
      %v2416 = vadd.f32 0.0, %v2415
      %v2417 = vpop.f32.mrb[0].mxu0
      %2418 = vmatprep.mubr.f32.mxu0 0.0
      %2419 = vmatmul.mubr.f32.gmra.mrb[0].mxu0 %v627
      %v2420 = vpop.f32.mrb[0].mxu0
      %v2421 = vadd.f32 0.0, %v2420
      %v2422 = vpop.f32.mrb[0].mxu0
      %2423 = vmatprep.mubr.f32.mxu0 0.0
      %2424 = vmatmul.mubr.f32.gmra.mrb[0].mxu0 %v629
      %v2425 = vpop.f32.mrb[0].mxu0
      %v2426 = vadd.f32 0.0, %v2425
      %v2427 = vpop.f32.mrb[0].mxu0
      %2428 = vmatprep.mubr.f32.mxu0 0.0
      %2429 = vmatmul.mubr.f32.gmra.mrb[0].mxu0 %v631
      %v2430 = vpop.f32.mrb[0].mxu0
      %v2431 = vadd.f32 0.0, %v2430
      %v2432 = vpop.f32.mrb[0].mxu0
      %2433 = vmatprep.mubr.f32.mxu0 0.0
      %2434 = vmatmul.mubr.f32.gmra.mrb[0].mxu0 %v633
      %v2435 = vpop.f32.mrb[0].mxu0
      %v2436 = vadd.f32 0.0, %v2435
      %v2437 = vpop.f32.mrb[0].mxu0
      %2438 = vmatprep.mubr.f32.mxu0 0.0
      %2439 = vmatmul.mubr.f32.gmra.mrb[0].mxu0 %v635
      %v2440 = vpop.f32.mrb[0].mxu0
      %v2441 = vadd.f32 0.0, %v2440
      %v2442 = vpop.f32.mrb[0].mxu0
      %2443 = vmatprep.mubr.f32.mxu0 0.0
      %2444 = vmatmul.mubr.f32.gmra.mrb[0].mxu0 %v637
      %v2445 = vpop.f32.mrb[0].mxu0
      %v2446 = vadd.f32 0.0, %v2445
      %v2447 = vpop.f32.mrb[0].mxu0
      %2448 = vmatprep.mubr.f32.mxu0 0.0
      %2449 = vmatmul.mubr.f32.gmra.mrb[0].mxu0 %v639
      %v2450 = vpop.f32.mrb[0].mxu0
      %v2451 = vadd.f32 0.0, %v2450
      %v2452 = vpop.f32.mrb[0].mxu0
      %2453 = vmatprep.mubr.f32.mxu0 0.0
      %2454 = vmatmul.mubr.f32.gmra.mrb[0].mxu0 %v641
      %v2455 = vpop.f32.mrb[0].mxu0
      %v2456 = vadd.f32 0.0, %v2455
      %v2457 = vpop.f32.mrb[0].mxu0
      %2458 = vmatprep.mubr.f32.mxu0 0.0
      %2459 = vmatmul.mubr.f32.gmra.mrb[0].mxu0 %v643
      %v2460 = vpop.f32.mrb[0].mxu0
      %v2461 = vadd.f32 0.0, %v2460
      %v2462 = vpop.f32.mrb[0].mxu0
      %2463 = vmatprep.mubr.f32.mxu0 0.0
      %2464 = vmatmul.mubr.f32.gmra.mrb[0].mxu0 %v645
      %v2465 = vpop.f32.mrb[0].mxu0
      %v2466 = vadd.f32 0.0, %v2465
      %v2467 = vpop.f32.mrb[0].mxu0
      %2468 = vmatprep.mubr.f32.mxu0 0.0
      %2469 = vmatmul.mubr.f32.gmra.mrb[0].mxu0 %v647
      %v2470 = vpop.f32.mrb[0].mxu0
      %v2471 = vadd.f32 0.0, %v2470
      %v2472 = vpop.f32.mrb[0].mxu0
      %2473 = vmatprep.mubr.f32.mxu0 0.0
      %2474 = vmatmul.mubr.f32.gmra.mrb[0].mxu0 %v649
      %v2475 = vpop.f32.mrb[0].mxu0
      %v2476 = vadd.f32 0.0, %v2475
      %v2477 = vpop.f32.mrb[0].mxu0
      %2478 = vmatprep.mubr.f32.mxu0 0.0
      %2479 = vmatmul.mubr.f32.gmra.mrb[0].mxu0 %v651
      %v2480 = vpop.f32.mrb[0].mxu0
      %v2481 = vadd.f32 0.0, %v2480
      %v2482 = vpop.f32.mrb[0].mxu0
      %2483 = vmatprep.mubr.f32.mxu0 0.0
      %2484 = vmatmul.mubr.f32.gmra.mrb[0].mxu0 %v653
      %v2485 = vpop.f32.mrb[0].mxu0
      %v2486 = vadd.f32 0.0, %v2485
      %v2487 = vpop.f32.mrb[0].mxu0
      %2488 = vmatprep.mubr.f32.mxu0 0.0
      %2489 = vmatmul.mubr.f32.gmra.mrb[0].mxu0 %v655
      %v2490 = vpop.f32.mrb[0].mxu0
      %v2491 = vadd.f32 0.0, %v2490
      %v2492 = vpop.f32.mrb[0].mxu0
      %2493 = vmatprep.mubr.f32.mxu0 0.0
      %2494 = vmatmul.mubr.f32.gmra.mrb[0].mxu0 %v657
      %v2495 = vpop.f32.mrb[0].mxu0
      %v2496 = vadd.f32 0.0, %v2495
      %v2497 = vpop.f32.mrb[0].mxu0
      %2498 = vmatprep.mubr.f32.mxu0 0.0
      %2499 = vmatmul.mubr.f32.gmra.mrb[0].mxu0 %v659
      %v2500 = vpop.f32.mrb[0].mxu0
      %v2501 = vadd.f32 0.0, %v2500
      %v2502 = vpop.f32.mrb[0].mxu0
      %2503 = vmatprep.mubr.f32.mxu0 0.0
      %2504 = vmatmul.mubr.f32.gmra.mrb[0].mxu0 %v661
      %v2505 = vpop.f32.mrb[0].mxu0
      %v2506 = vadd.f32 0.0, %v2505
      %v2507 = vpop.f32.mrb[0].mxu0
      %2508 = vmatprep.mubr.f32.mxu0 0.0
      %2509 = vmatmul.mubr.f32.gmra.mrb[0].mxu0 %v663
      %v2510 = vpop.f32.mrb[0].mxu0
      %v2511 = vadd.f32 0.0, %v2510
      %v2512 = vpop.f32.mrb[0].mxu0
      %2513 = vmatprep.mubr.f32.mxu0 0.0
      %2514 = vmatmul.mubr.f32.gmra.mrb[0].mxu0 %v665
      %v2515 = vpop.f32.mrb[0].mxu0
      %v2516 = vadd.f32 0.0, %v2515
      %v2517 = vpop.f32.mrb[0].mxu0
      %2518 = vmatprep.mubr.f32.mxu0 0.0
      %2519 = vmatmul.mubr.f32.gmra.mrb[0].mxu0 %v667
      %v2520 = vpop.f32.mrb[0].mxu0
      %v2521 = vadd.f32 0.0, %v2520
      %v2522 = vpop.f32.mrb[0].mxu0
      %2523 = vmatprep.mubr.f32.mxu0 0.0
      %2524 = vmatmul.mubr.f32.gmra.mrb[0].mxu0 %v669
      %v2525 = vpop.f32.mrb[0].mxu0
      %v2526 = vadd.f32 0.0, %v2525
      %v2527 = vpop.f32.mrb[0].mxu0
      %2528 = vmatprep.mubr.f32.mxu0 0.0
      %2529 = vmatmul.mubr.f32.gmra.mrb[0].mxu0 %v671
      %v2530 = vpop.f32.mrb[0].mxu0
      %v2531 = vadd.f32 0.0, %v2530
      %v2532 = vpop.f32.mrb[0].mxu0
      %2533 = vmatprep.mubr.f32.mxu0 0.0
      %2534 = vmatmul.mubr.f32.gmra.mrb[0].mxu0 %v673
      %v2535 = vpop.f32.mrb[0].mxu0
      %v2536 = vadd.f32 0.0, %v2535
      %v2537 = vpop.f32.mrb[0].mxu0
      %2538 = vmatprep.mubr.f32.mxu0 0.0
      %2539 = vmatmul.mubr.f32.gmra.mrb[0].mxu0 %v675
      %v2540 = vpop.f32.mrb[0].mxu0
      %v2541 = vadd.f32 0.0, %v2540
      %v2542 = vpop.f32.mrb[0].mxu0
      %2543 = vmatprep.mubr.f32.mxu0 0.0
      %2544 = vmatmul.mubr.f32.gmra.mrb[0].mxu0 %v1466
      %v2545 = vpop.f32.mrb[0].mxu0
      %v2546 = vadd.f32 0.0, %v2545
      %v2547 = vpop.f32.mrb[0].mxu0
      %2548 = vmatprep.mubr.f32.mxu0 0.0
      %2549 = vmatmul.mubr.f32.gmra.mrb[0].mxu0 %v1468
      %v2550 = vpop.f32.mrb[0].mxu0
      %v2551 = vadd.f32 0.0, %v2550
      %v2552 = vpop.f32.mrb[0].mxu0
      %2553 = vdwg.mxu0
      %v2554 = vadd.f32 %v2166, %v2396
      %v2555 = vadd.f32 %v2171, %v2401
      %v2556 = vadd.f32 %v2176, %v2406
      %v2557 = vadd.f32 %v2181, %v2411
      %v2558 = vadd.f32 %v2186, %v2416
      %v2559 = vadd.f32 %v2191, %v2421
      %v2560 = vadd.f32 %v2196, %v2426
      %v2561 = vadd.f32 %v2201, %v2431
      %v2562 = vadd.f32 %v2206, %v2436
      %v2563 = vadd.f32 %v2211, %v2441
      %v2564 = vadd.f32 %v2216, %v2446
      %v2565 = vadd.f32 %v2221, %v2451
      %v2566 = vadd.f32 %v2226, %v2456
      %v2567 = vadd.f32 %v2231, %v2461
      %v2568 = vadd.f32 %v2236, %v2466
      %v2569 = vadd.f32 %v2241, %v2471
      %v2570 = vadd.f32 %v2246, %v2476
      %v2571 = vadd.f32 %v2251, %v2481
      %v2572 = vadd.f32 %v2256, %v2486
      %v2573 = vadd.f32 %v2261, %v2491
      %v2574 = vadd.f32 %v2266, %v2496
      %v2575 = vadd.f32 %v2271, %v2501
      %v2576 = vadd.f32 %v2276, %v2506
      %v2577 = vadd.f32 %v2281, %v2511
      %v2578 = vadd.f32 %v2286, %v2516
      %v2579 = vadd.f32 %v2291, %v2521
      %v2580 = vadd.f32 %v2296, %v2526
      %v2581 = vadd.f32 %v2301, %v2531
      %v2582 = vadd.f32 %v2306, %v2536
      %v2583 = vadd.f32 %v2311, %v2541
      %v2584 = vadd.f32 %v2316, %v2546
      %v2585 = vadd.f32 %v2321, %v2551
      %s2586 = scalar_lea.vmem %s2, 28
      %v2587 = vld [vmem:[%s2586] sm:$0xf]
      %v2588 = vsel %vm612, %v593, 0
      %v2590 = vsel %vm612, %v595, 0
      %v2593 = vsel %vm677, %v2587, 0
      %2595 = vmatprep.subr.mxu0 0.0
      %2596 = vmatpush1.msra.mxu0 %v2593
      %2597 = vmatprep.subr.mxu0 0.0
      %2598 = vmatpush1.msra.mxu0 0.0
      %2599 = vmatprep.subr.mxu0 0.0
      %2600 = vmatpush1.msra.mxu0 0.0
      %2601 = vmatprep.subr.mxu0 0.0
      %2602 = vmatpush1.msra.mxu0 0.0
      %2603 = vmatprep.subr.mxu0 0.0
      %2604 = vmatpush1.msra.mxu0 0.0
      %2605 = vmatprep.subr.mxu0 0.0
      %2606 = vmatpush1.msra.mxu0 0.0
      %2607 = vmatprep.subr.mxu0 0.0
      %2608 = vmatpush1.msra.mxu0 0.0
      %2609 = vmatprep.subr.mxu0 0.0
      %2610 = vmatpush1.msra.mxu0 0.0
      %2611 = vmatprep.subr.mxu0 0.0
      %2612 = vmatpush1.msra.mxu0 0.0
      %2613 = vmatprep.subr.mxu0 0.0
      %2614 = vmatpush1.msra.mxu0 0.0
      %2615 = vmatprep.subr.mxu0 0.0
      %2616 = vmatpush1.msra.mxu0 0.0
      %2617 = vmatprep.subr.mxu0 0.0
      %2618 = vmatpush1.msra.mxu0 0.0
      %2619 = vmatprep.subr.mxu0 0.0
      %2620 = vmatpush1.msra.mxu0 0.0
      %2621 = vmatprep.subr.mxu0 0.0
      %2622 = vmatpush1.msra.mxu0 0.0
      %2623 = vmatprep.subr.mxu0 0.0
      %2624 = vmatpush1.msra.mxu0 0.0
      %2625 = vmatprep.subr.mxu0 0.0
      %2626 = vmatpush1.msra.mxu0 0.0
      %2627 = vmatprep.subr.mxu0 0.0
      %2628 = vmatpush1.msra.mxu0 0.0
      %2629 = vmatprep.subr.mxu0 0.0
      %2630 = vmatpush1.msra.mxu0 0.0
      %2631 = vmatprep.subr.mxu0 0.0
      %2632 = vmatpush1.msra.mxu0 0.0
      %2633 = vmatprep.subr.mxu0 0.0
      %2634 = vmatpush1.msra.mxu0 0.0
      %2635 = vmatprep.subr.mxu0 0.0
      %2636 = vmatpush1.msra.mxu0 0.0
      %2637 = vmatprep.subr.mxu0 0.0
      %2638 = vmatpush1.msra.mxu0 0.0
      %2639 = vmatprep.subr.mxu0 0.0
      %2640 = vmatpush1.msra.mxu0 0.0
      %2641 = vmatprep.subr.mxu0 0.0
      %2642 = vmatpush1.msra.mxu0 0.0
      %2643 = vmatprep.subr.mxu0 0.0
      %2644 = vmatpush1.msra.mxu0 0.0
      %2645 = vmatprep.subr.mxu0 0.0
      %2646 = vmatpush1.msra.mxu0 0.0
      %2647 = vmatprep.subr.mxu0 0.0
      %2648 = vmatpush1.msra.mxu0 0.0
      %2649 = vmatprep.subr.mxu0 0.0
      %2650 = vmatpush1.msra.mxu0 0.0
      %2651 = vmatprep.subr.mxu0 0.0
      %2652 = vmatpush1.msra.mxu0 0.0
      %2653 = vmatprep.subr.mxu0 0.0
      %2654 = vmatpush1.msra.mxu0 0.0
      %2655 = vmatprep.subr.mxu0 0.0
      %2656 = vmatpush1.msra.mxu0 0.0
      %2657 = vmatprep.subr.mxu0 0.0
      %2658 = vmatpush1.msra.mxu0 0.0
      %2659 = vmatprep.mubr.f32.mxu0 0.0
      %2660 = vmatmul.mubr.f32.gmra.mrb[0].mxu0 %v1808
      %v2661 = vpop.f32.mrb[0].mxu0
      %v2662 = vadd.f32 0.0, %v2661
      %v2663 = vpop.f32.mrb[0].mxu0
      %2664 = vmatprep.mubr.f32.mxu0 0.0
      %2665 = vmatmul.mubr.f32.gmra.mrb[0].mxu0 %v1810
      %v2666 = vpop.f32.mrb[0].mxu0
      %v2667 = vadd.f32 0.0, %v2666
      %v2668 = vpop.f32.mrb[0].mxu0
      %2669 = vmatprep.mubr.f32.mxu0 0.0
      %2670 = vmatmul.mubr.f32.gmra.mrb[0].mxu0 %v1812
      %v2671 = vpop.f32.mrb[0].mxu0
      %v2672 = vadd.f32 0.0, %v2671
      %v2673 = vpop.f32.mrb[0].mxu0
      %2674 = vmatprep.mubr.f32.mxu0 0.0
      %2675 = vmatmul.mubr.f32.gmra.mrb[0].mxu0 %v1814
      %v2676 = vpop.f32.mrb[0].mxu0
      %v2677 = vadd.f32 0.0, %v2676
      %v2678 = vpop.f32.mrb[0].mxu0
      %2679 = vmatprep.mubr.f32.mxu0 0.0
      %2680 = vmatmul.mubr.f32.gmra.mrb[0].mxu0 %v1816
      %v2681 = vpop.f32.mrb[0].mxu0
      %v2682 = vadd.f32 0.0, %v2681
      %v2683 = vpop.f32.mrb[0].mxu0
      %2684 = vmatprep.mubr.f32.mxu0 0.0
      %2685 = vmatmul.mubr.f32.gmra.mrb[0].mxu0 %v1818
      %v2686 = vpop.f32.mrb[0].mxu0
      %v2687 = vadd.f32 0.0, %v2686
      %v2688 = vpop.f32.mrb[0].mxu0
      %2689 = vmatprep.mubr.f32.mxu0 0.0
      %2690 = vmatmul.mubr.f32.gmra.mrb[0].mxu0 %v1820
      %v2691 = vpop.f32.mrb[0].mxu0
      %v2692 = vadd.f32 0.0, %v2691
      %v2693 = vpop.f32.mrb[0].mxu0
      %2694 = vmatprep.mubr.f32.mxu0 0.0
      %2695 = vmatmul.mubr.f32.gmra.mrb[0].mxu0 %v1822
      %v2696 = vpop.f32.mrb[0].mxu0
      %v2697 = vadd.f32 0.0, %v2696
      %v2698 = vpop.f32.mrb[0].mxu0
      %2699 = vmatprep.mubr.f32.mxu0 0.0
      %2700 = vmatmul.mubr.f32.gmra.mrb[0].mxu0 %v1824
      %v2701 = vpop.f32.mrb[0].mxu0
      %v2702 = vadd.f32 0.0, %v2701
      %v2703 = vpop.f32.mrb[0].mxu0
      %2704 = vmatprep.mubr.f32.mxu0 0.0
      %2705 = vmatmul.mubr.f32.gmra.mrb[0].mxu0 %v1826
      %v2706 = vpop.f32.mrb[0].mxu0
      %v2707 = vadd.f32 0.0, %v2706
      %v2708 = vpop.f32.mrb[0].mxu0
      %2709 = vmatprep.mubr.f32.mxu0 0.0
      %2710 = vmatmul.mubr.f32.gmra.mrb[0].mxu0 %v1828
      %v2711 = vpop.f32.mrb[0].mxu0
      %v2712 = vadd.f32 0.0, %v2711
      %v2713 = vpop.f32.mrb[0].mxu0
      %2714 = vmatprep.mubr.f32.mxu0 0.0
      %2715 = vmatmul.mubr.f32.gmra.mrb[0].mxu0 %v1830
      %v2716 = vpop.f32.mrb[0].mxu0
      %v2717 = vadd.f32 0.0, %v2716
      %v2718 = vpop.f32.mrb[0].mxu0
      %2719 = vmatprep.mubr.f32.mxu0 0.0
      %2720 = vmatmul.mubr.f32.gmra.mrb[0].mxu0 %v1832
      %v2721 = vpop.f32.mrb[0].mxu0
      %v2722 = vadd.f32 0.0, %v2721
      %v2723 = vpop.f32.mrb[0].mxu0
      %2724 = vmatprep.mubr.f32.mxu0 0.0
      %2725 = vmatmul.mubr.f32.gmra.mrb[0].mxu0 %v1834
      %v2726 = vpop.f32.mrb[0].mxu0
      %v2727 = vadd.f32 0.0, %v2726
      %v2728 = vpop.f32.mrb[0].mxu0
      %2729 = vmatprep.mubr.f32.mxu0 0.0
      %2730 = vmatmul.mubr.f32.gmra.mrb[0].mxu0 %v1836
      %v2731 = vpop.f32.mrb[0].mxu0
      %v2732 = vadd.f32 0.0, %v2731
      %v2733 = vpop.f32.mrb[0].mxu0
      %2734 = vmatprep.mubr.f32.mxu0 0.0
      %2735 = vmatmul.mubr.f32.gmra.mrb[0].mxu0 %v1838
      %v2736 = vpop.f32.mrb[0].mxu0
      %v2737 = vadd.f32 0.0, %v2736
      %v2738 = vpop.f32.mrb[0].mxu0
      %2739 = vmatprep.mubr.f32.mxu0 0.0
      %2740 = vmatmul.mubr.f32.gmra.mrb[0].mxu0 %v1840
      %v2741 = vpop.f32.mrb[0].mxu0
      %v2742 = vadd.f32 0.0, %v2741
      %v2743 = vpop.f32.mrb[0].mxu0
      %2744 = vmatprep.mubr.f32.mxu0 0.0
      %2745 = vmatmul.mubr.f32.gmra.mrb[0].mxu0 %v1842
      %v2746 = vpop.f32.mrb[0].mxu0
      %v2747 = vadd.f32 0.0, %v2746
      %v2748 = vpop.f32.mrb[0].mxu0
      %2749 = vmatprep.mubr.f32.mxu0 0.0
      %2750 = vmatmul.mubr.f32.gmra.mrb[0].mxu0 %v1844
      %v2751 = vpop.f32.mrb[0].mxu0
      %v2752 = vadd.f32 0.0, %v2751
      %v2753 = vpop.f32.mrb[0].mxu0
      %2754 = vmatprep.mubr.f32.mxu0 0.0
      %2755 = vmatmul.mubr.f32.gmra.mrb[0].mxu0 %v1846
      %v2756 = vpop.f32.mrb[0].mxu0
      %v2757 = vadd.f32 0.0, %v2756
      %v2758 = vpop.f32.mrb[0].mxu0
      %2759 = vmatprep.mubr.f32.mxu0 0.0
      %2760 = vmatmul.mubr.f32.gmra.mrb[0].mxu0 %v1848
      %v2761 = vpop.f32.mrb[0].mxu0
      %v2762 = vadd.f32 0.0, %v2761
      %v2763 = vpop.f32.mrb[0].mxu0
      %2764 = vmatprep.mubr.f32.mxu0 0.0
      %2765 = vmatmul.mubr.f32.gmra.mrb[0].mxu0 %v1850
      %v2766 = vpop.f32.mrb[0].mxu0
      %v2767 = vadd.f32 0.0, %v2766
      %v2768 = vpop.f32.mrb[0].mxu0
      %2769 = vmatprep.mubr.f32.mxu0 0.0
      %2770 = vmatmul.mubr.f32.gmra.mrb[0].mxu0 %v1852
      %v2771 = vpop.f32.mrb[0].mxu0
      %v2772 = vadd.f32 0.0, %v2771
      %v2773 = vpop.f32.mrb[0].mxu0
      %2774 = vmatprep.mubr.f32.mxu0 0.0
      %2775 = vmatmul.mubr.f32.gmra.mrb[0].mxu0 %v1854
      %v2776 = vpop.f32.mrb[0].mxu0
      %v2777 = vadd.f32 0.0, %v2776
      %v2778 = vpop.f32.mrb[0].mxu0
      %2779 = vmatprep.mubr.f32.mxu0 0.0
      %2780 = vmatmul.mubr.f32.gmra.mrb[0].mxu0 %v1856
      %v2781 = vpop.f32.mrb[0].mxu0
      %v2782 = vadd.f32 0.0, %v2781
      %v2783 = vpop.f32.mrb[0].mxu0
      %2784 = vmatprep.mubr.f32.mxu0 0.0
      %2785 = vmatmul.mubr.f32.gmra.mrb[0].mxu0 %v1858
      %v2786 = vpop.f32.mrb[0].mxu0
      %v2787 = vadd.f32 0.0, %v2786
      %v2788 = vpop.f32.mrb[0].mxu0
      %2789 = vmatprep.mubr.f32.mxu0 0.0
      %2790 = vmatmul.mubr.f32.gmra.mrb[0].mxu0 %v1860
      %v2791 = vpop.f32.mrb[0].mxu0
      %v2792 = vadd.f32 0.0, %v2791
      %v2793 = vpop.f32.mrb[0].mxu0
      %2794 = vmatprep.mubr.f32.mxu0 0.0
      %2795 = vmatmul.mubr.f32.gmra.mrb[0].mxu0 %v1862
      %v2796 = vpop.f32.mrb[0].mxu0
      %v2797 = vadd.f32 0.0, %v2796
      %v2798 = vpop.f32.mrb[0].mxu0
      %2799 = vmatprep.mubr.f32.mxu0 0.0
      %2800 = vmatmul.mubr.f32.gmra.mrb[0].mxu0 %v1864
      %v2801 = vpop.f32.mrb[0].mxu0
      %v2802 = vadd.f32 0.0, %v2801
      %v2803 = vpop.f32.mrb[0].mxu0
      %2804 = vmatprep.mubr.f32.mxu0 0.0
      %2805 = vmatmul.mubr.f32.gmra.mrb[0].mxu0 %v1866
      %v2806 = vpop.f32.mrb[0].mxu0
      %v2807 = vadd.f32 0.0, %v2806
      %v2808 = vpop.f32.mrb[0].mxu0
      %2809 = vmatprep.mubr.f32.mxu0 0.0
      %2810 = vmatmul.mubr.f32.gmra.mrb[0].mxu0 %v2588
      %v2811 = vpop.f32.mrb[0].mxu0
      %v2812 = vadd.f32 0.0, %v2811
      %v2813 = vpop.f32.mrb[0].mxu0
      %2814 = vmatprep.mubr.f32.mxu0 0.0
      %2815 = vmatmul.mubr.f32.gmra.mrb[0].mxu0 %v2590
      %v2816 = vpop.f32.mrb[0].mxu0
      %v2817 = vadd.f32 0.0, %v2816
      %v2818 = vpop.f32.mrb[0].mxu0
      %2819 = vdwg.mxu0
      %v2820 = vadd.f32 %v2554, %v2662
      %v2821 = vadd.f32 %v2555, %v2667
      %v2822 = vadd.f32 %v2556, %v2672
      %v2823 = vadd.f32 %v2557, %v2677
      %v2824 = vadd.f32 %v2558, %v2682
      %v2825 = vadd.f32 %v2559, %v2687
      %v2826 = vadd.f32 %v2560, %v2692
      %v2827 = vadd.f32 %v2561, %v2697
      %v2828 = vadd.f32 %v2562, %v2702
      %v2829 = vadd.f32 %v2563, %v2707
      %v2830 = vadd.f32 %v2564, %v2712
      %v2831 = vadd.f32 %v2565, %v2717
      %v2832 = vadd.f32 %v2566, %v2722
      %v2833 = vadd.f32 %v2567, %v2727
      %v2834 = vadd.f32 %v2568, %v2732
      %v2835 = vadd.f32 %v2569, %v2737
      %v2836 = vadd.f32 %v2570, %v2742
      %v2837 = vadd.f32 %v2571, %v2747
      %v2838 = vadd.f32 %v2572, %v2752
      %v2839 = vadd.f32 %v2573, %v2757
      %v2840 = vadd.f32 %v2574, %v2762
      %v2841 = vadd.f32 %v2575, %v2767
      %v2842 = vadd.f32 %v2576, %v2772
      %v2843 = vadd.f32 %v2577, %v2777
      %v2844 = vadd.f32 %v2578, %v2782
      %v2845 = vadd.f32 %v2579, %v2787
      %v2846 = vadd.f32 %v2580, %v2792
      %v2847 = vadd.f32 %v2581, %v2797
      %v2848 = vadd.f32 %v2582, %v2802
      %v2849 = vadd.f32 %v2583, %v2807
      %v2850 = vadd.f32 %v2584, %v2812
      %v2851 = vadd.f32 %v2585, %v2817
      %v2852 = vadd.f32 %v2820, %v1734
      %v2853 = vadd.f32 %v2821, %v1734
      %v2854 = vadd.f32 %v2822, %v1734
      %v2855 = vadd.f32 %v2823, %v1734
      %v2856 = vadd.f32 %v2824, %v1734
      %v2857 = vadd.f32 %v2825, %v1734
      %v2858 = vadd.f32 %v2826, %v1734
      %v2859 = vadd.f32 %v2827, %v1734
      %v2860 = vadd.f32 %v2828, %v1734
      %v2861 = vadd.f32 %v2829, %v1734
      %v2862 = vadd.f32 %v2830, %v1734
      %v2863 = vadd.f32 %v2831, %v1734
      %v2864 = vadd.f32 %v2832, %v1734
      %v2865 = vadd.f32 %v2833, %v1734
      %v2866 = vadd.f32 %v2834, %v1734
      %v2867 = vadd.f32 %v2835, %v1734
      %v2868 = vadd.f32 %v2836, %v1734
      %v2869 = vadd.f32 %v2837, %v1734
      %v2870 = vadd.f32 %v2838, %v1734
      %v2871 = vadd.f32 %v2839, %v1734
      %v2872 = vadd.f32 %v2840, %v1734
      %v2873 = vadd.f32 %v2841, %v1734
      %v2874 = vadd.f32 %v2842, %v1734
      %v2875 = vadd.f32 %v2843, %v1734
      %v2876 = vadd.f32 %v2844, %v1734
      %v2877 = vadd.f32 %v2845, %v1734
      %v2878 = vadd.f32 %v2846, %v1734
      %v2879 = vadd.f32 %v2847, %v1734
      %v2880 = vadd.f32 %v2848, %v1734
      %v2881 = vadd.f32 %v2849, %v1734
      %v2882 = vadd.f32 %v2850, %v1734
      %v2883 = vadd.f32 %v2851, %v1734
      %s2884 = scalar_lea.vmem %s316, 256
      %2885 = vst.msk [vmem:[%s2884] sm:$0xff] %vm612, %v2852
      %2886 = vst.msk [vmem:[%s2884 + $0x8] sm:$0xff] %vm612, %v2853
      %2887 = vst.msk [vmem:[%s2884 + $0x10] sm:$0xff] %vm612, %v2854
      %2888 = vst.msk [vmem:[%s2884 + $0x18] sm:$0xff] %vm612, %v2855
      %2889 = vst.msk [vmem:[%s2884 + $0x20] sm:$0xff] %vm612, %v2856
      %2890 = vst.msk [vmem:[%s2884 + $0x28] sm:$0xff] %vm612, %v2857
      %2891 = vst.msk [vmem:[%s2884 + $0x30] sm:$0xff] %vm612, %v2858
      %2892 = vst.msk [vmem:[%s2884 + $0x38] sm:$0xff] %vm612, %v2859
      %2893 = vst.msk [vmem:[%s2884 + $0x40] sm:$0xff] %vm612, %v2860
      %2894 = vst.msk [vmem:[%s2884 + $0x48] sm:$0xff] %vm612, %v2861
      %2895 = vst.msk [vmem:[%s2884 + $0x50] sm:$0xff] %vm612, %v2862
      %2896 = vst.msk [vmem:[%s2884 + $0x58] sm:$0xff] %vm612, %v2863
      %2897 = vst.msk [vmem:[%s2884 + $0x60] sm:$0xff] %vm612, %v2864
      %2898 = vst.msk [vmem:[%s2884 + $0x68] sm:$0xff] %vm612, %v2865
      %2899 = vst.msk [vmem:[%s2884 + $0x70] sm:$0xff] %vm612, %v2866
      %2900 = vst.msk [vmem:[%s2884 + $0x78] sm:$0xff] %vm612, %v2867
      %2901 = vst.msk [vmem:[%s2884 + $0x80] sm:$0xff] %vm612, %v2868
      %2902 = vst.msk [vmem:[%s2884 + $0x88] sm:$0xff] %vm612, %v2869
      %2903 = vst.msk [vmem:[%s2884 + $0x90] sm:$0xff] %vm612, %v2870
      %2904 = vst.msk [vmem:[%s2884 + $0x98] sm:$0xff] %vm612, %v2871
      %2905 = vst.msk [vmem:[%s2884 + $0xa0] sm:$0xff] %vm612, %v2872
      %2906 = vst.msk [vmem:[%s2884 + $0xa8] sm:$0xff] %vm612, %v2873
      %2907 = vst.msk [vmem:[%s2884 + $0xb0] sm:$0xff] %vm612, %v2874
      %2908 = vst.msk [vmem:[%s2884 + $0xb8] sm:$0xff] %vm612, %v2875
      %2909 = vst.msk [vmem:[%s2884 + $0xc0] sm:$0xff] %vm612, %v2876
      %2910 = vst.msk [vmem:[%s2884 + $0xc8] sm:$0xff] %vm612, %v2877
      %2911 = vst.msk [vmem:[%s2884 + $0xd0] sm:$0xff] %vm612, %v2878
      %2912 = vst.msk [vmem:[%s2884 + $0xd8] sm:$0xff] %vm612, %v2879
      %2913 = vst.msk [vmem:[%s2884 + $0xe0] sm:$0xff] %vm612, %v2880
      %2914 = vst.msk [vmem:[%s2884 + $0xe8] sm:$0xff] %vm612, %v2881
      %2915 = vst.msk [vmem:[%s2884 + $0xf0] sm:$0xff] %vm612, %v2882
      %2916 = vst.msk [vmem:[%s2884 + $0xf8] sm:$0xff] %vm612, %v2883
      %s2917 = scalar_lea.vmem %s2, 32
      %v2918 = vld [vmem:[%s2917] sm:$0xf]
      %s2919 = scalar_lea.vmem %s2, 36
      %v2920 = vld [vmem:[%s2919] sm:$0xf]
      %v2922 = vsel %vm677, %v2920, 0
      %2924 = vmatprep.subr.mxu0 0.0
      %2925 = vmatpush1.msra.mxu0 %v2922
      %2926 = vmatprep.subr.mxu0 0.0
      %2927 = vmatpush1.msra.mxu0 0.0
      %2928 = vmatprep.subr.mxu0 0.0
      %2929 = vmatpush1.msra.mxu0 0.0
      %2930 = vmatprep.subr.mxu0 0.0
      %2931 = vmatpush1.msra.mxu0 0.0
      %2932 = vmatprep.subr.mxu0 0.0
      %2933 = vmatpush1.msra.mxu0 0.0
      %2934 = vmatprep.subr.mxu0 0.0
      %2935 = vmatpush1.msra.mxu0 0.0
      %2936 = vmatprep.subr.mxu0 0.0
      %2937 = vmatpush1.msra.mxu0 0.0
      %2938 = vmatprep.subr.mxu0 0.0
      %2939 = vmatpush1.msra.mxu0 0.0
      %2940 = vmatprep.subr.mxu0 0.0
      %2941 = vmatpush1.msra.mxu0 0.0
      %2942 = vmatprep.subr.mxu0 0.0
      %2943 = vmatpush1.msra.mxu0 0.0
      %2944 = vmatprep.subr.mxu0 0.0
      %2945 = vmatpush1.msra.mxu0 0.0
      %2946 = vmatprep.subr.mxu0 0.0
      %2947 = vmatpush1.msra.mxu0 0.0
      %2948 = vmatprep.subr.mxu0 0.0
      %2949 = vmatpush1.msra.mxu0 0.0
      %2950 = vmatprep.subr.mxu0 0.0
      %2951 = vmatpush1.msra.mxu0 0.0
      %2952 = vmatprep.subr.mxu0 0.0
      %2953 = vmatpush1.msra.mxu0 0.0
      %2954 = vmatprep.subr.mxu0 0.0
      %2955 = vmatpush1.msra.mxu0 0.0
      %2956 = vmatprep.subr.mxu0 0.0
      %2957 = vmatpush1.msra.mxu0 0.0
      %2958 = vmatprep.subr.mxu0 0.0
      %2959 = vmatpush1.msra.mxu0 0.0
      %2960 = vmatprep.subr.mxu0 0.0
      %2961 = vmatpush1.msra.mxu0 0.0
      %2962 = vmatprep.subr.mxu0 0.0
      %2963 = vmatpush1.msra.mxu0 0.0
      %2964 = vmatprep.subr.mxu0 0.0
      %2965 = vmatpush1.msra.mxu0 0.0
      %2966 = vmatprep.subr.mxu0 0.0
      %2967 = vmatpush1.msra.mxu0 0.0
      %2968 = vmatprep.subr.mxu0 0.0
      %2969 = vmatpush1.msra.mxu0 0.0
      %2970 = vmatprep.subr.mxu0 0.0
      %2971 = vmatpush1.msra.mxu0 0.0
      %2972 = vmatprep.subr.mxu0 0.0
      %2973 = vmatpush1.msra.mxu0 0.0
      %2974 = vmatprep.subr.mxu0 0.0
      %2975 = vmatpush1.msra.mxu0 0.0
      %2976 = vmatprep.subr.mxu0 0.0
      %2977 = vmatpush1.msra.mxu0 0.0
      %2978 = vmatprep.subr.mxu0 0.0
      %2979 = vmatpush1.msra.mxu0 0.0
      %2980 = vmatprep.subr.mxu0 0.0
      %2981 = vmatpush1.msra.mxu0 0.0
      %2982 = vmatprep.subr.mxu0 0.0
      %2983 = vmatpush1.msra.mxu0 0.0
      %2984 = vmatprep.subr.mxu0 0.0
      %2985 = vmatpush1.msra.mxu0 0.0
      %2986 = vmatprep.subr.mxu0 0.0
      %2987 = vmatpush1.msra.mxu0 0.0
      %2988 = vmatprep.mubr.f32.mxu0 0.0
      %2989 = vmatmul.mubr.f32.gmra.mrb[0].mxu0 %v617
      %v2990 = vpop.f32.mrb[0].mxu0
      %v2991 = vadd.f32 0.0, %v2990
      %v2992 = vpop.f32.mrb[0].mxu0
      %2993 = vmatprep.mubr.f32.mxu0 0.0
      %2994 = vmatmul.mubr.f32.gmra.mrb[0].mxu0 %v619
      %v2995 = vpop.f32.mrb[0].mxu0
      %v2996 = vadd.f32 0.0, %v2995
      %v2997 = vpop.f32.mrb[0].mxu0
      %2998 = vmatprep.mubr.f32.mxu0 0.0
      %2999 = vmatmul.mubr.f32.gmra.mrb[0].mxu0 %v621
      %v3000 = vpop.f32.mrb[0].mxu0
      %v3001 = vadd.f32 0.0, %v3000
      %v3002 = vpop.f32.mrb[0].mxu0
      %3003 = vmatprep.mubr.f32.mxu0 0.0
      %3004 = vmatmul.mubr.f32.gmra.mrb[0].mxu0 %v623
      %v3005 = vpop.f32.mrb[0].mxu0
      %v3006 = vadd.f32 0.0, %v3005
      %v3007 = vpop.f32.mrb[0].mxu0
      %3008 = vmatprep.mubr.f32.mxu0 0.0
      %3009 = vmatmul.mubr.f32.gmra.mrb[0].mxu0 %v625
      %v3010 = vpop.f32.mrb[0].mxu0
      %v3011 = vadd.f32 0.0, %v3010
      %v3012 = vpop.f32.mrb[0].mxu0
      %3013 = vmatprep.mubr.f32.mxu0 0.0
      %3014 = vmatmul.mubr.f32.gmra.mrb[0].mxu0 %v627
      %v3015 = vpop.f32.mrb[0].mxu0
      %v3016 = vadd.f32 0.0, %v3015
      %v3017 = vpop.f32.mrb[0].mxu0
      %3018 = vmatprep.mubr.f32.mxu0 0.0
      %3019 = vmatmul.mubr.f32.gmra.mrb[0].mxu0 %v629
      %v3020 = vpop.f32.mrb[0].mxu0
      %v3021 = vadd.f32 0.0, %v3020
      %v3022 = vpop.f32.mrb[0].mxu0
      %3023 = vmatprep.mubr.f32.mxu0 0.0
      %3024 = vmatmul.mubr.f32.gmra.mrb[0].mxu0 %v631
      %v3025 = vpop.f32.mrb[0].mxu0
      %v3026 = vadd.f32 0.0, %v3025
      %v3027 = vpop.f32.mrb[0].mxu0
      %3028 = vmatprep.mubr.f32.mxu0 0.0
      %3029 = vmatmul.mubr.f32.gmra.mrb[0].mxu0 %v633
      %v3030 = vpop.f32.mrb[0].mxu0
      %v3031 = vadd.f32 0.0, %v3030
      %v3032 = vpop.f32.mrb[0].mxu0
      %3033 = vmatprep.mubr.f32.mxu0 0.0
      %3034 = vmatmul.mubr.f32.gmra.mrb[0].mxu0 %v635
      %v3035 = vpop.f32.mrb[0].mxu0
      %v3036 = vadd.f32 0.0, %v3035
      %v3037 = vpop.f32.mrb[0].mxu0
      %3038 = vmatprep.mubr.f32.mxu0 0.0
      %3039 = vmatmul.mubr.f32.gmra.mrb[0].mxu0 %v637
      %v3040 = vpop.f32.mrb[0].mxu0
      %v3041 = vadd.f32 0.0, %v3040
      %v3042 = vpop.f32.mrb[0].mxu0
      %3043 = vmatprep.mubr.f32.mxu0 0.0
      %3044 = vmatmul.mubr.f32.gmra.mrb[0].mxu0 %v639
      %v3045 = vpop.f32.mrb[0].mxu0
      %v3046 = vadd.f32 0.0, %v3045
      %v3047 = vpop.f32.mrb[0].mxu0
      %3048 = vmatprep.mubr.f32.mxu0 0.0
      %3049 = vmatmul.mubr.f32.gmra.mrb[0].mxu0 %v641
      %v3050 = vpop.f32.mrb[0].mxu0
      %v3051 = vadd.f32 0.0, %v3050
      %v3052 = vpop.f32.mrb[0].mxu0
      %3053 = vmatprep.mubr.f32.mxu0 0.0
      %3054 = vmatmul.mubr.f32.gmra.mrb[0].mxu0 %v643
      %v3055 = vpop.f32.mrb[0].mxu0
      %v3056 = vadd.f32 0.0, %v3055
      %v3057 = vpop.f32.mrb[0].mxu0
      %3058 = vmatprep.mubr.f32.mxu0 0.0
      %3059 = vmatmul.mubr.f32.gmra.mrb[0].mxu0 %v645
      %v3060 = vpop.f32.mrb[0].mxu0
      %v3061 = vadd.f32 0.0, %v3060
      %v3062 = vpop.f32.mrb[0].mxu0
      %3063 = vmatprep.mubr.f32.mxu0 0.0
      %3064 = vmatmul.mubr.f32.gmra.mrb[0].mxu0 %v647
      %v3065 = vpop.f32.mrb[0].mxu0
      %v3066 = vadd.f32 0.0, %v3065
      %v3067 = vpop.f32.mrb[0].mxu0
      %3068 = vmatprep.mubr.f32.mxu0 0.0
      %3069 = vmatmul.mubr.f32.gmra.mrb[0].mxu0 %v649
      %v3070 = vpop.f32.mrb[0].mxu0
      %v3071 = vadd.f32 0.0, %v3070
      %v3072 = vpop.f32.mrb[0].mxu0
      %3073 = vmatprep.mubr.f32.mxu0 0.0
      %3074 = vmatmul.mubr.f32.gmra.mrb[0].mxu0 %v651
      %v3075 = vpop.f32.mrb[0].mxu0
      %v3076 = vadd.f32 0.0, %v3075
      %v3077 = vpop.f32.mrb[0].mxu0
      %3078 = vmatprep.mubr.f32.mxu0 0.0
      %3079 = vmatmul.mubr.f32.gmra.mrb[0].mxu0 %v653
      %v3080 = vpop.f32.mrb[0].mxu0
      %v3081 = vadd.f32 0.0, %v3080
      %v3082 = vpop.f32.mrb[0].mxu0
      %3083 = vmatprep.mubr.f32.mxu0 0.0
      %3084 = vmatmul.mubr.f32.gmra.mrb[0].mxu0 %v655
      %v3085 = vpop.f32.mrb[0].mxu0
      %v3086 = vadd.f32 0.0, %v3085
      %v3087 = vpop.f32.mrb[0].mxu0
      %3088 = vmatprep.mubr.f32.mxu0 0.0
      %3089 = vmatmul.mubr.f32.gmra.mrb[0].mxu0 %v657
      %v3090 = vpop.f32.mrb[0].mxu0
      %v3091 = vadd.f32 0.0, %v3090
      %v3092 = vpop.f32.mrb[0].mxu0
      %3093 = vmatprep.mubr.f32.mxu0 0.0
      %3094 = vmatmul.mubr.f32.gmra.mrb[0].mxu0 %v659
      %v3095 = vpop.f32.mrb[0].mxu0
      %v3096 = vadd.f32 0.0, %v3095
      %v3097 = vpop.f32.mrb[0].mxu0
      %3098 = vmatprep.mubr.f32.mxu0 0.0
      %3099 = vmatmul.mubr.f32.gmra.mrb[0].mxu0 %v661
      %v3100 = vpop.f32.mrb[0].mxu0
      %v3101 = vadd.f32 0.0, %v3100
      %v3102 = vpop.f32.mrb[0].mxu0
      %3103 = vmatprep.mubr.f32.mxu0 0.0
      %3104 = vmatmul.mubr.f32.gmra.mrb[0].mxu0 %v663
      %v3105 = vpop.f32.mrb[0].mxu0
      %v3106 = vadd.f32 0.0, %v3105
      %v3107 = vpop.f32.mrb[0].mxu0
      %3108 = vmatprep.mubr.f32.mxu0 0.0
      %3109 = vmatmul.mubr.f32.gmra.mrb[0].mxu0 %v665
      %v3110 = vpop.f32.mrb[0].mxu0
      %v3111 = vadd.f32 0.0, %v3110
      %v3112 = vpop.f32.mrb[0].mxu0
      %3113 = vmatprep.mubr.f32.mxu0 0.0
      %3114 = vmatmul.mubr.f32.gmra.mrb[0].mxu0 %v667
      %v3115 = vpop.f32.mrb[0].mxu0
      %v3116 = vadd.f32 0.0, %v3115
      %v3117 = vpop.f32.mrb[0].mxu0
      %3118 = vmatprep.mubr.f32.mxu0 0.0
      %3119 = vmatmul.mubr.f32.gmra.mrb[0].mxu0 %v669
      %v3120 = vpop.f32.mrb[0].mxu0
      %v3121 = vadd.f32 0.0, %v3120
      %v3122 = vpop.f32.mrb[0].mxu0
      %3123 = vmatprep.mubr.f32.mxu0 0.0
      %3124 = vmatmul.mubr.f32.gmra.mrb[0].mxu0 %v671
      %v3125 = vpop.f32.mrb[0].mxu0
      %v3126 = vadd.f32 0.0, %v3125
      %v3127 = vpop.f32.mrb[0].mxu0
      %3128 = vmatprep.mubr.f32.mxu0 0.0
      %3129 = vmatmul.mubr.f32.gmra.mrb[0].mxu0 %v673
      %v3130 = vpop.f32.mrb[0].mxu0
      %v3131 = vadd.f32 0.0, %v3130
      %v3132 = vpop.f32.mrb[0].mxu0
      %3133 = vmatprep.mubr.f32.mxu0 0.0
      %3134 = vmatmul.mubr.f32.gmra.mrb[0].mxu0 %v675
      %v3135 = vpop.f32.mrb[0].mxu0
      %v3136 = vadd.f32 0.0, %v3135
      %v3137 = vpop.f32.mrb[0].mxu0
      %3138 = vmatprep.mubr.f32.mxu0 0.0
      %3139 = vmatmul.mubr.f32.gmra.mrb[0].mxu0 %v1466
      %v3140 = vpop.f32.mrb[0].mxu0
      %v3141 = vadd.f32 0.0, %v3140
      %v3142 = vpop.f32.mrb[0].mxu0
      %3143 = vmatprep.mubr.f32.mxu0 0.0
      %3144 = vmatmul.mubr.f32.gmra.mrb[0].mxu0 %v1468
      %v3145 = vpop.f32.mrb[0].mxu0
      %v3146 = vadd.f32 0.0, %v3145
      %v3147 = vpop.f32.mrb[0].mxu0
      %3148 = vdwg.mxu0
      %v3150 = vsel %vm677, %v2918, 0
      %3152 = vmatprep.subr.mxu0 0.0
      %3153 = vmatpush1.msra.mxu0 %v3150
      %3154 = vmatprep.subr.mxu0 0.0
      %3155 = vmatpush1.msra.mxu0 0.0
      %3156 = vmatprep.subr.mxu0 0.0
      %3157 = vmatpush1.msra.mxu0 0.0
      %3158 = vmatprep.subr.mxu0 0.0
      %3159 = vmatpush1.msra.mxu0 0.0
      %3160 = vmatprep.subr.mxu0 0.0
      %3161 = vmatpush1.msra.mxu0 0.0
      %3162 = vmatprep.subr.mxu0 0.0
      %3163 = vmatpush1.msra.mxu0 0.0
      %3164 = vmatprep.subr.mxu0 0.0
      %3165 = vmatpush1.msra.mxu0 0.0
      %3166 = vmatprep.subr.mxu0 0.0
      %3167 = vmatpush1.msra.mxu0 0.0
      %3168 = vmatprep.subr.mxu0 0.0
      %3169 = vmatpush1.msra.mxu0 0.0
      %3170 = vmatprep.subr.mxu0 0.0
      %3171 = vmatpush1.msra.mxu0 0.0
      %3172 = vmatprep.subr.mxu0 0.0
      %3173 = vmatpush1.msra.mxu0 0.0
      %3174 = vmatprep.subr.mxu0 0.0
      %3175 = vmatpush1.msra.mxu0 0.0
      %3176 = vmatprep.subr.mxu0 0.0
      %3177 = vmatpush1.msra.mxu0 0.0
      %3178 = vmatprep.subr.mxu0 0.0
      %3179 = vmatpush1.msra.mxu0 0.0
      %3180 = vmatprep.subr.mxu0 0.0
      %3181 = vmatpush1.msra.mxu0 0.0
      %3182 = vmatprep.subr.mxu0 0.0
      %3183 = vmatpush1.msra.mxu0 0.0
      %3184 = vmatprep.subr.mxu0 0.0
      %3185 = vmatpush1.msra.mxu0 0.0
      %3186 = vmatprep.subr.mxu0 0.0
      %3187 = vmatpush1.msra.mxu0 0.0
      %3188 = vmatprep.subr.mxu0 0.0
      %3189 = vmatpush1.msra.mxu0 0.0
      %3190 = vmatprep.subr.mxu0 0.0
      %3191 = vmatpush1.msra.mxu0 0.0
      %3192 = vmatprep.subr.mxu0 0.0
      %3193 = vmatpush1.msra.mxu0 0.0
      %3194 = vmatprep.subr.mxu0 0.0
      %3195 = vmatpush1.msra.mxu0 0.0
      %3196 = vmatprep.subr.mxu0 0.0
      %3197 = vmatpush1.msra.mxu0 0.0
      %3198 = vmatprep.subr.mxu0 0.0
      %3199 = vmatpush1.msra.mxu0 0.0
      %3200 = vmatprep.subr.mxu0 0.0
      %3201 = vmatpush1.msra.mxu0 0.0
      %3202 = vmatprep.subr.mxu0 0.0
      %3203 = vmatpush1.msra.mxu0 0.0
      %3204 = vmatprep.subr.mxu0 0.0
      %3205 = vmatpush1.msra.mxu0 0.0
      %3206 = vmatprep.subr.mxu0 0.0
      %3207 = vmatpush1.msra.mxu0 0.0
      %3208 = vmatprep.subr.mxu0 0.0
      %3209 = vmatpush1.msra.mxu0 0.0
      %3210 = vmatprep.subr.mxu0 0.0
      %3211 = vmatpush1.msra.mxu0 0.0
      %3212 = vmatprep.subr.mxu0 0.0
      %3213 = vmatpush1.msra.mxu0 0.0
      %3214 = vmatprep.subr.mxu0 0.0
      %3215 = vmatpush1.msra.mxu0 0.0
      %3216 = vmatprep.mubr.f32.mxu0 0.0
      %3217 = vmatmul.mubr.f32.gmra.mrb[0].mxu0 %v910
      %v3218 = vpop.f32.mrb[0].mxu0
      %v3219 = vadd.f32 %v2991, %v3218
      %v3220 = vpop.f32.mrb[0].mxu0
      %3221 = vmatprep.mubr.f32.mxu0 0.0
      %3222 = vmatmul.mubr.f32.gmra.mrb[0].mxu0 %v912
      %v3223 = vpop.f32.mrb[0].mxu0
      %v3224 = vadd.f32 %v2996, %v3223
      %v3225 = vpop.f32.mrb[0].mxu0
      %3226 = vmatprep.mubr.f32.mxu0 0.0
      %3227 = vmatmul.mubr.f32.gmra.mrb[0].mxu0 %v914
      %v3228 = vpop.f32.mrb[0].mxu0
      %v3229 = vadd.f32 %v3001, %v3228
      %v3230 = vpop.f32.mrb[0].mxu0
      %3231 = vmatprep.mubr.f32.mxu0 0.0
      %3232 = vmatmul.mubr.f32.gmra.mrb[0].mxu0 %v916
      %v3233 = vpop.f32.mrb[0].mxu0
      %v3234 = vadd.f32 %v3006, %v3233
      %v3235 = vpop.f32.mrb[0].mxu0
      %3236 = vmatprep.mubr.f32.mxu0 0.0
      %3237 = vmatmul.mubr.f32.gmra.mrb[0].mxu0 %v918
      %v3238 = vpop.f32.mrb[0].mxu0
      %v3239 = vadd.f32 %v3011, %v3238
      %v3240 = vpop.f32.mrb[0].mxu0
      %3241 = vmatprep.mubr.f32.mxu0 0.0
      %3242 = vmatmul.mubr.f32.gmra.mrb[0].mxu0 %v920
      %v3243 = vpop.f32.mrb[0].mxu0
      %v3244 = vadd.f32 %v3016, %v3243
      %v3245 = vpop.f32.mrb[0].mxu0
      %3246 = vmatprep.mubr.f32.mxu0 0.0
      %3247 = vmatmul.mubr.f32.gmra.mrb[0].mxu0 %v922
      %v3248 = vpop.f32.mrb[0].mxu0
      %v3249 = vadd.f32 %v3021, %v3248
      %v3250 = vpop.f32.mrb[0].mxu0
      %3251 = vmatprep.mubr.f32.mxu0 0.0
      %3252 = vmatmul.mubr.f32.gmra.mrb[0].mxu0 %v924
      %v3253 = vpop.f32.mrb[0].mxu0
      %v3254 = vadd.f32 %v3026, %v3253
      %v3255 = vpop.f32.mrb[0].mxu0
      %3256 = vmatprep.mubr.f32.mxu0 0.0
      %3257 = vmatmul.mubr.f32.gmra.mrb[0].mxu0 %v926
      %v3258 = vpop.f32.mrb[0].mxu0
      %v3259 = vadd.f32 %v3031, %v3258
      %v3260 = vpop.f32.mrb[0].mxu0
      %3261 = vmatprep.mubr.f32.mxu0 0.0
      %3262 = vmatmul.mubr.f32.gmra.mrb[0].mxu0 %v928
      %v3263 = vpop.f32.mrb[0].mxu0
      %v3264 = vadd.f32 %v3036, %v3263
      %v3265 = vpop.f32.mrb[0].mxu0
      %3266 = vmatprep.mubr.f32.mxu0 0.0
      %3267 = vmatmul.mubr.f32.gmra.mrb[0].mxu0 %v930
      %v3268 = vpop.f32.mrb[0].mxu0
      %v3269 = vadd.f32 %v3041, %v3268
      %v3270 = vpop.f32.mrb[0].mxu0
      %3271 = vmatprep.mubr.f32.mxu0 0.0
      %3272 = vmatmul.mubr.f32.gmra.mrb[0].mxu0 %v932
      %v3273 = vpop.f32.mrb[0].mxu0
      %v3274 = vadd.f32 %v3046, %v3273
      %v3275 = vpop.f32.mrb[0].mxu0
      %3276 = vmatprep.mubr.f32.mxu0 0.0
      %3277 = vmatmul.mubr.f32.gmra.mrb[0].mxu0 %v934
      %v3278 = vpop.f32.mrb[0].mxu0
      %v3279 = vadd.f32 %v3051, %v3278
      %v3280 = vpop.f32.mrb[0].mxu0
      %3281 = vmatprep.mubr.f32.mxu0 0.0
      %3282 = vmatmul.mubr.f32.gmra.mrb[0].mxu0 %v936
      %v3283 = vpop.f32.mrb[0].mxu0
      %v3284 = vadd.f32 %v3056, %v3283
      %v3285 = vpop.f32.mrb[0].mxu0
      %3286 = vmatprep.mubr.f32.mxu0 0.0
      %3287 = vmatmul.mubr.f32.gmra.mrb[0].mxu0 %v938
      %v3288 = vpop.f32.mrb[0].mxu0
      %v3289 = vadd.f32 %v3061, %v3288
      %v3290 = vpop.f32.mrb[0].mxu0
      %3291 = vmatprep.mubr.f32.mxu0 0.0
      %3292 = vmatmul.mubr.f32.gmra.mrb[0].mxu0 %v940
      %v3293 = vpop.f32.mrb[0].mxu0
      %v3294 = vadd.f32 %v3066, %v3293
      %v3295 = vpop.f32.mrb[0].mxu0
      %3296 = vmatprep.mubr.f32.mxu0 0.0
      %3297 = vmatmul.mubr.f32.gmra.mrb[0].mxu0 %v942
      %v3298 = vpop.f32.mrb[0].mxu0
      %v3299 = vadd.f32 %v3071, %v3298
      %v3300 = vpop.f32.mrb[0].mxu0
      %3301 = vmatprep.mubr.f32.mxu0 0.0
      %3302 = vmatmul.mubr.f32.gmra.mrb[0].mxu0 %v944
      %v3303 = vpop.f32.mrb[0].mxu0
      %v3304 = vadd.f32 %v3076, %v3303
      %v3305 = vpop.f32.mrb[0].mxu0
      %3306 = vmatprep.mubr.f32.mxu0 0.0
      %3307 = vmatmul.mubr.f32.gmra.mrb[0].mxu0 %v946
      %v3308 = vpop.f32.mrb[0].mxu0
      %v3309 = vadd.f32 %v3081, %v3308
      %v3310 = vpop.f32.mrb[0].mxu0
      %3311 = vmatprep.mubr.f32.mxu0 0.0
      %3312 = vmatmul.mubr.f32.gmra.mrb[0].mxu0 %v948
      %v3313 = vpop.f32.mrb[0].mxu0
      %v3314 = vadd.f32 %v3086, %v3313
      %v3315 = vpop.f32.mrb[0].mxu0
      %3316 = vmatprep.mubr.f32.mxu0 0.0
      %3317 = vmatmul.mubr.f32.gmra.mrb[0].mxu0 %v950
      %v3318 = vpop.f32.mrb[0].mxu0
      %v3319 = vadd.f32 %v3091, %v3318
      %v3320 = vpop.f32.mrb[0].mxu0
      %3321 = vmatprep.mubr.f32.mxu0 0.0
      %3322 = vmatmul.mubr.f32.gmra.mrb[0].mxu0 %v952
      %v3323 = vpop.f32.mrb[0].mxu0
      %v3324 = vadd.f32 %v3096, %v3323
      %v3325 = vpop.f32.mrb[0].mxu0
      %3326 = vmatprep.mubr.f32.mxu0 0.0
      %3327 = vmatmul.mubr.f32.gmra.mrb[0].mxu0 %v954
      %v3328 = vpop.f32.mrb[0].mxu0
      %v3329 = vadd.f32 %v3101, %v3328
      %v3330 = vpop.f32.mrb[0].mxu0
      %3331 = vmatprep.mubr.f32.mxu0 0.0
      %3332 = vmatmul.mubr.f32.gmra.mrb[0].mxu0 %v956
      %v3333 = vpop.f32.mrb[0].mxu0
      %v3334 = vadd.f32 %v3106, %v3333
      %v3335 = vpop.f32.mrb[0].mxu0
      %3336 = vmatprep.mubr.f32.mxu0 0.0
      %3337 = vmatmul.mubr.f32.gmra.mrb[0].mxu0 %v958
      %v3338 = vpop.f32.mrb[0].mxu0
      %v3339 = vadd.f32 %v3111, %v3338
      %v3340 = vpop.f32.mrb[0].mxu0
      %3341 = vmatprep.mubr.f32.mxu0 0.0
      %3342 = vmatmul.mubr.f32.gmra.mrb[0].mxu0 %v960
      %v3343 = vpop.f32.mrb[0].mxu0
      %v3344 = vadd.f32 %v3116, %v3343
      %v3345 = vpop.f32.mrb[0].mxu0
      %3346 = vmatprep.mubr.f32.mxu0 0.0
      %3347 = vmatmul.mubr.f32.gmra.mrb[0].mxu0 %v962
      %v3348 = vpop.f32.mrb[0].mxu0
      %v3349 = vadd.f32 %v3121, %v3348
      %v3350 = vpop.f32.mrb[0].mxu0
      %3351 = vmatprep.mubr.f32.mxu0 0.0
      %3352 = vmatmul.mubr.f32.gmra.mrb[0].mxu0 %v964
      %v3353 = vpop.f32.mrb[0].mxu0
      %v3354 = vadd.f32 %v3126, %v3353
      %v3355 = vpop.f32.mrb[0].mxu0
      %3356 = vmatprep.mubr.f32.mxu0 0.0
      %3357 = vmatmul.mubr.f32.gmra.mrb[0].mxu0 %v966
      %v3358 = vpop.f32.mrb[0].mxu0
      %v3359 = vadd.f32 %v3131, %v3358
      %v3360 = vpop.f32.mrb[0].mxu0
      %3361 = vmatprep.mubr.f32.mxu0 0.0
      %3362 = vmatmul.mubr.f32.gmra.mrb[0].mxu0 %v968
      %v3363 = vpop.f32.mrb[0].mxu0
      %v3364 = vadd.f32 %v3136, %v3363
      %v3365 = vpop.f32.mrb[0].mxu0
      %3366 = vmatprep.mubr.f32.mxu0 0.0
      %3367 = vmatmul.mubr.f32.gmra.mrb[0].mxu0 %v1200
      %v3368 = vpop.f32.mrb[0].mxu0
      %v3369 = vadd.f32 %v3141, %v3368
      %v3370 = vpop.f32.mrb[0].mxu0
      %3371 = vmatprep.mubr.f32.mxu0 0.0
      %3372 = vmatmul.mubr.f32.gmra.mrb[0].mxu0 %v1202
      %v3373 = vpop.f32.mrb[0].mxu0
      %v3374 = vadd.f32 %v3146, %v3373
      %v3375 = vpop.f32.mrb[0].mxu0
      %3376 = vdwg.mxu0
      %s3377 = scalar_lea.vmem %s2, 40
      %v3378 = vld [vmem:[%s3377] sm:$0xf]
      %v3379 = vsel %vm612, %v369, 0
      %v3381 = vsel %vm612, %v370, 0
      %v3384 = vsel %vm677, %v3378, 0
      %3386 = vmatprep.subr.mxu0 0.0
      %3387 = vmatpush1.msra.mxu0 %v3384
      %3388 = vmatprep.subr.mxu0 0.0
      %3389 = vmatpush1.msra.mxu0 0.0
      %3390 = vmatprep.subr.mxu0 0.0
      %3391 = vmatpush1.msra.mxu0 0.0
      %3392 = vmatprep.subr.mxu0 0.0
      %3393 = vmatpush1.msra.mxu0 0.0
      %3394 = vmatprep.subr.mxu0 0.0
      %3395 = vmatpush1.msra.mxu0 0.0
      %3396 = vmatprep.subr.mxu0 0.0
      %3397 = vmatpush1.msra.mxu0 0.0
      %3398 = vmatprep.subr.mxu0 0.0
      %3399 = vmatpush1.msra.mxu0 0.0
      %3400 = vmatprep.subr.mxu0 0.0
      %3401 = vmatpush1.msra.mxu0 0.0
      %3402 = vmatprep.subr.mxu0 0.0
      %3403 = vmatpush1.msra.mxu0 0.0
      %3404 = vmatprep.subr.mxu0 0.0
      %3405 = vmatpush1.msra.mxu0 0.0
      %3406 = vmatprep.subr.mxu0 0.0
      %3407 = vmatpush1.msra.mxu0 0.0
      %3408 = vmatprep.subr.mxu0 0.0
      %3409 = vmatpush1.msra.mxu0 0.0
      %3410 = vmatprep.subr.mxu0 0.0
      %3411 = vmatpush1.msra.mxu0 0.0
      %3412 = vmatprep.subr.mxu0 0.0
      %3413 = vmatpush1.msra.mxu0 0.0
      %3414 = vmatprep.subr.mxu0 0.0
      %3415 = vmatpush1.msra.mxu0 0.0
      %3416 = vmatprep.subr.mxu0 0.0
      %3417 = vmatpush1.msra.mxu0 0.0
      %3418 = vmatprep.subr.mxu0 0.0
      %3419 = vmatpush1.msra.mxu0 0.0
      %3420 = vmatprep.subr.mxu0 0.0
      %3421 = vmatpush1.msra.mxu0 0.0
      %3422 = vmatprep.subr.mxu0 0.0
      %3423 = vmatpush1.msra.mxu0 0.0
      %3424 = vmatprep.subr.mxu0 0.0
      %3425 = vmatpush1.msra.mxu0 0.0
      %3426 = vmatprep.subr.mxu0 0.0
      %3427 = vmatpush1.msra.mxu0 0.0
      %3428 = vmatprep.subr.mxu0 0.0
      %3429 = vmatpush1.msra.mxu0 0.0
      %3430 = vmatprep.subr.mxu0 0.0
      %3431 = vmatpush1.msra.mxu0 0.0
      %3432 = vmatprep.subr.mxu0 0.0
      %3433 = vmatpush1.msra.mxu0 0.0
      %3434 = vmatprep.subr.mxu0 0.0
      %3435 = vmatpush1.msra.mxu0 0.0
      %3436 = vmatprep.subr.mxu0 0.0
      %3437 = vmatpush1.msra.mxu0 0.0
      %3438 = vmatprep.subr.mxu0 0.0
      %3439 = vmatpush1.msra.mxu0 0.0
      %3440 = vmatprep.subr.mxu0 0.0
      %3441 = vmatpush1.msra.mxu0 0.0
      %3442 = vmatprep.subr.mxu0 0.0
      %3443 = vmatpush1.msra.mxu0 0.0
      %3444 = vmatprep.subr.mxu0 0.0
      %3445 = vmatpush1.msra.mxu0 0.0
      %3446 = vmatprep.subr.mxu0 0.0
      %3447 = vmatpush1.msra.mxu0 0.0
      %3448 = vmatprep.subr.mxu0 0.0
      %3449 = vmatpush1.msra.mxu0 0.0
      %3450 = vmatprep.mubr.f32.mxu0 0.0
      %3451 = vmatmul.mubr.f32.gmra.mrb[0].mxu0 %v914
      %v3452 = vpop.f32.mrb[0].mxu0
      %v3453 = vadd.f32 0.0, %v3452
      %v3454 = vpop.f32.mrb[0].mxu0
      %3455 = vmatprep.mubr.f32.mxu0 0.0
      %3456 = vmatmul.mubr.f32.gmra.mrb[0].mxu0 %v916
      %v3457 = vpop.f32.mrb[0].mxu0
      %v3458 = vadd.f32 0.0, %v3457
      %v3459 = vpop.f32.mrb[0].mxu0
      %3460 = vmatprep.mubr.f32.mxu0 0.0
      %3461 = vmatmul.mubr.f32.gmra.mrb[0].mxu0 %v918
      %v3462 = vpop.f32.mrb[0].mxu0
      %v3463 = vadd.f32 0.0, %v3462
      %v3464 = vpop.f32.mrb[0].mxu0
      %3465 = vmatprep.mubr.f32.mxu0 0.0
      %3466 = vmatmul.mubr.f32.gmra.mrb[0].mxu0 %v920
      %v3467 = vpop.f32.mrb[0].mxu0
      %v3468 = vadd.f32 0.0, %v3467
      %v3469 = vpop.f32.mrb[0].mxu0
      %3470 = vmatprep.mubr.f32.mxu0 0.0
      %3471 = vmatmul.mubr.f32.gmra.mrb[0].mxu0 %v922
      %v3472 = vpop.f32.mrb[0].mxu0
      %v3473 = vadd.f32 0.0, %v3472
      %v3474 = vpop.f32.mrb[0].mxu0
      %3475 = vmatprep.mubr.f32.mxu0 0.0
      %3476 = vmatmul.mubr.f32.gmra.mrb[0].mxu0 %v924
      %v3477 = vpop.f32.mrb[0].mxu0
      %v3478 = vadd.f32 0.0, %v3477
      %v3479 = vpop.f32.mrb[0].mxu0
      %3480 = vmatprep.mubr.f32.mxu0 0.0
      %3481 = vmatmul.mubr.f32.gmra.mrb[0].mxu0 %v926
      %v3482 = vpop.f32.mrb[0].mxu0
      %v3483 = vadd.f32 0.0, %v3482
      %v3484 = vpop.f32.mrb[0].mxu0
      %3485 = vmatprep.mubr.f32.mxu0 0.0
      %3486 = vmatmul.mubr.f32.gmra.mrb[0].mxu0 %v928
      %v3487 = vpop.f32.mrb[0].mxu0
      %v3488 = vadd.f32 0.0, %v3487
      %v3489 = vpop.f32.mrb[0].mxu0
      %3490 = vmatprep.mubr.f32.mxu0 0.0
      %3491 = vmatmul.mubr.f32.gmra.mrb[0].mxu0 %v930
      %v3492 = vpop.f32.mrb[0].mxu0
      %v3493 = vadd.f32 0.0, %v3492
      %v3494 = vpop.f32.mrb[0].mxu0
      %3495 = vmatprep.mubr.f32.mxu0 0.0
      %3496 = vmatmul.mubr.f32.gmra.mrb[0].mxu0 %v932
      %v3497 = vpop.f32.mrb[0].mxu0
      %v3498 = vadd.f32 0.0, %v3497
      %v3499 = vpop.f32.mrb[0].mxu0
      %3500 = vmatprep.mubr.f32.mxu0 0.0
      %3501 = vmatmul.mubr.f32.gmra.mrb[0].mxu0 %v934
      %v3502 = vpop.f32.mrb[0].mxu0
      %v3503 = vadd.f32 0.0, %v3502
      %v3504 = vpop.f32.mrb[0].mxu0
      %3505 = vmatprep.mubr.f32.mxu0 0.0
      %3506 = vmatmul.mubr.f32.gmra.mrb[0].mxu0 %v936
      %v3507 = vpop.f32.mrb[0].mxu0
      %v3508 = vadd.f32 0.0, %v3507
      %v3509 = vpop.f32.mrb[0].mxu0
      %3510 = vmatprep.mubr.f32.mxu0 0.0
      %3511 = vmatmul.mubr.f32.gmra.mrb[0].mxu0 %v938
      %v3512 = vpop.f32.mrb[0].mxu0
      %v3513 = vadd.f32 0.0, %v3512
      %v3514 = vpop.f32.mrb[0].mxu0
      %3515 = vmatprep.mubr.f32.mxu0 0.0
      %3516 = vmatmul.mubr.f32.gmra.mrb[0].mxu0 %v940
      %v3517 = vpop.f32.mrb[0].mxu0
      %v3518 = vadd.f32 0.0, %v3517
      %v3519 = vpop.f32.mrb[0].mxu0
      %3520 = vmatprep.mubr.f32.mxu0 0.0
      %3521 = vmatmul.mubr.f32.gmra.mrb[0].mxu0 %v942
      %v3522 = vpop.f32.mrb[0].mxu0
      %v3523 = vadd.f32 0.0, %v3522
      %v3524 = vpop.f32.mrb[0].mxu0
      %3525 = vmatprep.mubr.f32.mxu0 0.0
      %3526 = vmatmul.mubr.f32.gmra.mrb[0].mxu0 %v944
      %v3527 = vpop.f32.mrb[0].mxu0
      %v3528 = vadd.f32 0.0, %v3527
      %v3529 = vpop.f32.mrb[0].mxu0
      %3530 = vmatprep.mubr.f32.mxu0 0.0
      %3531 = vmatmul.mubr.f32.gmra.mrb[0].mxu0 %v946
      %v3532 = vpop.f32.mrb[0].mxu0
      %v3533 = vadd.f32 0.0, %v3532
      %v3534 = vpop.f32.mrb[0].mxu0
      %3535 = vmatprep.mubr.f32.mxu0 0.0
      %3536 = vmatmul.mubr.f32.gmra.mrb[0].mxu0 %v948
      %v3537 = vpop.f32.mrb[0].mxu0
      %v3538 = vadd.f32 0.0, %v3537
      %v3539 = vpop.f32.mrb[0].mxu0
      %3540 = vmatprep.mubr.f32.mxu0 0.0
      %3541 = vmatmul.mubr.f32.gmra.mrb[0].mxu0 %v950
      %v3542 = vpop.f32.mrb[0].mxu0
      %v3543 = vadd.f32 0.0, %v3542
      %v3544 = vpop.f32.mrb[0].mxu0
      %3545 = vmatprep.mubr.f32.mxu0 0.0
      %3546 = vmatmul.mubr.f32.gmra.mrb[0].mxu0 %v952
      %v3547 = vpop.f32.mrb[0].mxu0
      %v3548 = vadd.f32 0.0, %v3547
      %v3549 = vpop.f32.mrb[0].mxu0
      %3550 = vmatprep.mubr.f32.mxu0 0.0
      %3551 = vmatmul.mubr.f32.gmra.mrb[0].mxu0 %v954
      %v3552 = vpop.f32.mrb[0].mxu0
      %v3553 = vadd.f32 0.0, %v3552
      %v3554 = vpop.f32.mrb[0].mxu0
      %3555 = vmatprep.mubr.f32.mxu0 0.0
      %3556 = vmatmul.mubr.f32.gmra.mrb[0].mxu0 %v956
      %v3557 = vpop.f32.mrb[0].mxu0
      %v3558 = vadd.f32 0.0, %v3557
      %v3559 = vpop.f32.mrb[0].mxu0
      %3560 = vmatprep.mubr.f32.mxu0 0.0
      %3561 = vmatmul.mubr.f32.gmra.mrb[0].mxu0 %v958
      %v3562 = vpop.f32.mrb[0].mxu0
      %v3563 = vadd.f32 0.0, %v3562
      %v3564 = vpop.f32.mrb[0].mxu0
      %3565 = vmatprep.mubr.f32.mxu0 0.0
      %3566 = vmatmul.mubr.f32.gmra.mrb[0].mxu0 %v960
      %v3567 = vpop.f32.mrb[0].mxu0
      %v3568 = vadd.f32 0.0, %v3567
      %v3569 = vpop.f32.mrb[0].mxu0
      %3570 = vmatprep.mubr.f32.mxu0 0.0
      %3571 = vmatmul.mubr.f32.gmra.mrb[0].mxu0 %v962
      %v3572 = vpop.f32.mrb[0].mxu0
      %v3573 = vadd.f32 0.0, %v3572
      %v3574 = vpop.f32.mrb[0].mxu0
      %3575 = vmatprep.mubr.f32.mxu0 0.0
      %3576 = vmatmul.mubr.f32.gmra.mrb[0].mxu0 %v964
      %v3577 = vpop.f32.mrb[0].mxu0
      %v3578 = vadd.f32 0.0, %v3577
      %v3579 = vpop.f32.mrb[0].mxu0
      %3580 = vmatprep.mubr.f32.mxu0 0.0
      %3581 = vmatmul.mubr.f32.gmra.mrb[0].mxu0 %v966
      %v3582 = vpop.f32.mrb[0].mxu0
      %v3583 = vadd.f32 0.0, %v3582
      %v3584 = vpop.f32.mrb[0].mxu0
      %3585 = vmatprep.mubr.f32.mxu0 0.0
      %3586 = vmatmul.mubr.f32.gmra.mrb[0].mxu0 %v968
      %v3587 = vpop.f32.mrb[0].mxu0
      %v3588 = vadd.f32 0.0, %v3587
      %v3589 = vpop.f32.mrb[0].mxu0
      %3590 = vmatprep.mubr.f32.mxu0 0.0
      %3591 = vmatmul.mubr.f32.gmra.mrb[0].mxu0 %v1200
      %v3592 = vpop.f32.mrb[0].mxu0
      %v3593 = vadd.f32 0.0, %v3592
      %v3594 = vpop.f32.mrb[0].mxu0
      %3595 = vmatprep.mubr.f32.mxu0 0.0
      %3596 = vmatmul.mubr.f32.gmra.mrb[0].mxu0 %v1202
      %v3597 = vpop.f32.mrb[0].mxu0
      %v3598 = vadd.f32 0.0, %v3597
      %v3599 = vpop.f32.mrb[0].mxu0
      %3600 = vmatprep.mubr.f32.mxu0 0.0
      %3601 = vmatmul.mubr.f32.gmra.mrb[0].mxu0 %v3379
      %v3602 = vpop.f32.mrb[0].mxu0
      %v3603 = vadd.f32 0.0, %v3602
      %v3604 = vpop.f32.mrb[0].mxu0
      %3605 = vmatprep.mubr.f32.mxu0 0.0
      %3606 = vmatmul.mubr.f32.gmra.mrb[0].mxu0 %v3381
      %v3607 = vpop.f32.mrb[0].mxu0
      %v3608 = vadd.f32 0.0, %v3607
      %v3609 = vpop.f32.mrb[0].mxu0
      %3610 = vdwg.mxu0
      %v3611 = vadd.f32 %v3219, %v3453
      %v3612 = vadd.f32 %v3224, %v3458
      %v3613 = vadd.f32 %v3229, %v3463
      %v3614 = vadd.f32 %v3234, %v3468
      %v3615 = vadd.f32 %v3239, %v3473
      %v3616 = vadd.f32 %v3244, %v3478
      %v3617 = vadd.f32 %v3249, %v3483
      %v3618 = vadd.f32 %v3254, %v3488
      %v3619 = vadd.f32 %v3259, %v3493
      %v3620 = vadd.f32 %v3264, %v3498
      %v3621 = vadd.f32 %v3269, %v3503
      %v3622 = vadd.f32 %v3274, %v3508
      %v3623 = vadd.f32 %v3279, %v3513
      %v3624 = vadd.f32 %v3284, %v3518
      %v3625 = vadd.f32 %v3289, %v3523
      %v3626 = vadd.f32 %v3294, %v3528
      %v3627 = vadd.f32 %v3299, %v3533
      %v3628 = vadd.f32 %v3304, %v3538
      %v3629 = vadd.f32 %v3309, %v3543
      %v3630 = vadd.f32 %v3314, %v3548
      %v3631 = vadd.f32 %v3319, %v3553
      %v3632 = vadd.f32 %v3324, %v3558
      %v3633 = vadd.f32 %v3329, %v3563
      %v3634 = vadd.f32 %v3334, %v3568
      %v3635 = vadd.f32 %v3339, %v3573
      %v3636 = vadd.f32 %v3344, %v3578
      %v3637 = vadd.f32 %v3349, %v3583
      %v3638 = vadd.f32 %v3354, %v3588
      %v3639 = vadd.f32 %v3359, %v3593
      %v3640 = vadd.f32 %v3364, %v3598
      %v3641 = vadd.f32 %v3369, %v3603
      %v3642 = vadd.f32 %v3374, %v3608
      %s3643 = scalar_lea.vmem %s2, 44
      %v3644 = vld [vmem:[%s3643] sm:$0xf]
      %v3645 = vsel %vm612, %v601, 0
      %v3647 = vsel %vm612, %v603, 0
      %v3650 = vsel %vm677, %v3644, 0
      %3652 = vmatprep.subr.mxu0 0.0
      %3653 = vmatpush1.msra.mxu0 %v3650
      %3654 = vmatprep.subr.mxu0 0.0
      %3655 = vmatpush1.msra.mxu0 0.0
      %3656 = vmatprep.subr.mxu0 0.0
      %3657 = vmatpush1.msra.mxu0 0.0
      %3658 = vmatprep.subr.mxu0 0.0
      %3659 = vmatpush1.msra.mxu0 0.0
      %3660 = vmatprep.subr.mxu0 0.0
      %3661 = vmatpush1.msra.mxu0 0.0
      %3662 = vmatprep.subr.mxu0 0.0
      %3663 = vmatpush1.msra.mxu0 0.0
      %3664 = vmatprep.subr.mxu0 0.0
      %3665 = vmatpush1.msra.mxu0 0.0
      %3666 = vmatprep.subr.mxu0 0.0
      %3667 = vmatpush1.msra.mxu0 0.0
      %3668 = vmatprep.subr.mxu0 0.0
      %3669 = vmatpush1.msra.mxu0 0.0
      %3670 = vmatprep.subr.mxu0 0.0
      %3671 = vmatpush1.msra.mxu0 0.0
      %3672 = vmatprep.subr.mxu0 0.0
      %3673 = vmatpush1.msra.mxu0 0.0
      %3674 = vmatprep.subr.mxu0 0.0
      %3675 = vmatpush1.msra.mxu0 0.0
      %3676 = vmatprep.subr.mxu0 0.0
      %3677 = vmatpush1.msra.mxu0 0.0
      %3678 = vmatprep.subr.mxu0 0.0
      %3679 = vmatpush1.msra.mxu0 0.0
      %3680 = vmatprep.subr.mxu0 0.0
      %3681 = vmatpush1.msra.mxu0 0.0
      %3682 = vmatprep.subr.mxu0 0.0
      %3683 = vmatpush1.msra.mxu0 0.0
      %3684 = vmatprep.subr.mxu0 0.0
      %3685 = vmatpush1.msra.mxu0 0.0
      %3686 = vmatprep.subr.mxu0 0.0
      %3687 = vmatpush1.msra.mxu0 0.0
      %3688 = vmatprep.subr.mxu0 0.0
      %3689 = vmatpush1.msra.mxu0 0.0
      %3690 = vmatprep.subr.mxu0 0.0
      %3691 = vmatpush1.msra.mxu0 0.0
      %3692 = vmatprep.subr.mxu0 0.0
      %3693 = vmatpush1.msra.mxu0 0.0
      %3694 = vmatprep.subr.mxu0 0.0
      %3695 = vmatpush1.msra.mxu0 0.0
      %3696 = vmatprep.subr.mxu0 0.0
      %3697 = vmatpush1.msra.mxu0 0.0
      %3698 = vmatprep.subr.mxu0 0.0
      %3699 = vmatpush1.msra.mxu0 0.0
      %3700 = vmatprep.subr.mxu0 0.0
      %3701 = vmatpush1.msra.mxu0 0.0
      %3702 = vmatprep.subr.mxu0 0.0
      %3703 = vmatpush1.msra.mxu0 0.0
      %3704 = vmatprep.subr.mxu0 0.0
      %3705 = vmatpush1.msra.mxu0 0.0
      %3706 = vmatprep.subr.mxu0 0.0
      %3707 = vmatpush1.msra.mxu0 0.0
      %3708 = vmatprep.subr.mxu0 0.0
      %3709 = vmatpush1.msra.mxu0 0.0
      %3710 = vmatprep.subr.mxu0 0.0
      %3711 = vmatpush1.msra.mxu0 0.0
      %3712 = vmatprep.subr.mxu0 0.0
      %3713 = vmatpush1.msra.mxu0 0.0
      %3714 = vmatprep.subr.mxu0 0.0
      %3715 = vmatpush1.msra.mxu0 0.0
      %3716 = vmatprep.mubr.f32.mxu0 0.0
      %3717 = vmatmul.mubr.f32.gmra.mrb[0].mxu0 %v621
      %v3718 = vpop.f32.mrb[0].mxu0
      %v3719 = vadd.f32 0.0, %v3718
      %v3720 = vpop.f32.mrb[0].mxu0
      %3721 = vmatprep.mubr.f32.mxu0 0.0
      %3722 = vmatmul.mubr.f32.gmra.mrb[0].mxu0 %v623
      %v3723 = vpop.f32.mrb[0].mxu0
      %v3724 = vadd.f32 0.0, %v3723
      %v3725 = vpop.f32.mrb[0].mxu0
      %3726 = vmatprep.mubr.f32.mxu0 0.0
      %3727 = vmatmul.mubr.f32.gmra.mrb[0].mxu0 %v625
      %v3728 = vpop.f32.mrb[0].mxu0
      %v3729 = vadd.f32 0.0, %v3728
      %v3730 = vpop.f32.mrb[0].mxu0
      %3731 = vmatprep.mubr.f32.mxu0 0.0
      %3732 = vmatmul.mubr.f32.gmra.mrb[0].mxu0 %v627
      %v3733 = vpop.f32.mrb[0].mxu0
      %v3734 = vadd.f32 0.0, %v3733
      %v3735 = vpop.f32.mrb[0].mxu0
      %3736 = vmatprep.mubr.f32.mxu0 0.0
      %3737 = vmatmul.mubr.f32.gmra.mrb[0].mxu0 %v629
      %v3738 = vpop.f32.mrb[0].mxu0
      %v3739 = vadd.f32 0.0, %v3738
      %v3740 = vpop.f32.mrb[0].mxu0
      %3741 = vmatprep.mubr.f32.mxu0 0.0
      %3742 = vmatmul.mubr.f32.gmra.mrb[0].mxu0 %v631
      %v3743 = vpop.f32.mrb[0].mxu0
      %v3744 = vadd.f32 0.0, %v3743
      %v3745 = vpop.f32.mrb[0].mxu0
      %3746 = vmatprep.mubr.f32.mxu0 0.0
      %3747 = vmatmul.mubr.f32.gmra.mrb[0].mxu0 %v633
      %v3748 = vpop.f32.mrb[0].mxu0
      %v3749 = vadd.f32 0.0, %v3748
      %v3750 = vpop.f32.mrb[0].mxu0
      %3751 = vmatprep.mubr.f32.mxu0 0.0
      %3752 = vmatmul.mubr.f32.gmra.mrb[0].mxu0 %v635
      %v3753 = vpop.f32.mrb[0].mxu0
      %v3754 = vadd.f32 0.0, %v3753
      %v3755 = vpop.f32.mrb[0].mxu0
      %3756 = vmatprep.mubr.f32.mxu0 0.0
      %3757 = vmatmul.mubr.f32.gmra.mrb[0].mxu0 %v637
      %v3758 = vpop.f32.mrb[0].mxu0
      %v3759 = vadd.f32 0.0, %v3758
      %v3760 = vpop.f32.mrb[0].mxu0
      %3761 = vmatprep.mubr.f32.mxu0 0.0
      %3762 = vmatmul.mubr.f32.gmra.mrb[0].mxu0 %v639
      %v3763 = vpop.f32.mrb[0].mxu0
      %v3764 = vadd.f32 0.0, %v3763
      %v3765 = vpop.f32.mrb[0].mxu0
      %3766 = vmatprep.mubr.f32.mxu0 0.0
      %3767 = vmatmul.mubr.f32.gmra.mrb[0].mxu0 %v641
      %v3768 = vpop.f32.mrb[0].mxu0
      %v3769 = vadd.f32 0.0, %v3768
      %v3770 = vpop.f32.mrb[0].mxu0
      %3771 = vmatprep.mubr.f32.mxu0 0.0
      %3772 = vmatmul.mubr.f32.gmra.mrb[0].mxu0 %v643
      %v3773 = vpop.f32.mrb[0].mxu0
      %v3774 = vadd.f32 0.0, %v3773
      %v3775 = vpop.f32.mrb[0].mxu0
      %3776 = vmatprep.mubr.f32.mxu0 0.0
      %3777 = vmatmul.mubr.f32.gmra.mrb[0].mxu0 %v645
      %v3778 = vpop.f32.mrb[0].mxu0
      %v3779 = vadd.f32 0.0, %v3778
      %v3780 = vpop.f32.mrb[0].mxu0
      %3781 = vmatprep.mubr.f32.mxu0 0.0
      %3782 = vmatmul.mubr.f32.gmra.mrb[0].mxu0 %v647
      %v3783 = vpop.f32.mrb[0].mxu0
      %v3784 = vadd.f32 0.0, %v3783
      %v3785 = vpop.f32.mrb[0].mxu0
      %3786 = vmatprep.mubr.f32.mxu0 0.0
      %3787 = vmatmul.mubr.f32.gmra.mrb[0].mxu0 %v649
      %v3788 = vpop.f32.mrb[0].mxu0
      %v3789 = vadd.f32 0.0, %v3788
      %v3790 = vpop.f32.mrb[0].mxu0
      %3791 = vmatprep.mubr.f32.mxu0 0.0
      %3792 = vmatmul.mubr.f32.gmra.mrb[0].mxu0 %v651
      %v3793 = vpop.f32.mrb[0].mxu0
      %v3794 = vadd.f32 0.0, %v3793
      %v3795 = vpop.f32.mrb[0].mxu0
      %3796 = vmatprep.mubr.f32.mxu0 0.0
      %3797 = vmatmul.mubr.f32.gmra.mrb[0].mxu0 %v653
      %v3798 = vpop.f32.mrb[0].mxu0
      %v3799 = vadd.f32 0.0, %v3798
      %v3800 = vpop.f32.mrb[0].mxu0
      %3801 = vmatprep.mubr.f32.mxu0 0.0
      %3802 = vmatmul.mubr.f32.gmra.mrb[0].mxu0 %v655
      %v3803 = vpop.f32.mrb[0].mxu0
      %v3804 = vadd.f32 0.0, %v3803
      %v3805 = vpop.f32.mrb[0].mxu0
      %3806 = vmatprep.mubr.f32.mxu0 0.0
      %3807 = vmatmul.mubr.f32.gmra.mrb[0].mxu0 %v657
      %v3808 = vpop.f32.mrb[0].mxu0
      %v3809 = vadd.f32 0.0, %v3808
      %v3810 = vpop.f32.mrb[0].mxu0
      %3811 = vmatprep.mubr.f32.mxu0 0.0
      %3812 = vmatmul.mubr.f32.gmra.mrb[0].mxu0 %v659
      %v3813 = vpop.f32.mrb[0].mxu0
      %v3814 = vadd.f32 0.0, %v3813
      %v3815 = vpop.f32.mrb[0].mxu0
      %3816 = vmatprep.mubr.f32.mxu0 0.0
      %3817 = vmatmul.mubr.f32.gmra.mrb[0].mxu0 %v661
      %v3818 = vpop.f32.mrb[0].mxu0
      %v3819 = vadd.f32 0.0, %v3818
      %v3820 = vpop.f32.mrb[0].mxu0
      %3821 = vmatprep.mubr.f32.mxu0 0.0
      %3822 = vmatmul.mubr.f32.gmra.mrb[0].mxu0 %v663
      %v3823 = vpop.f32.mrb[0].mxu0
      %v3824 = vadd.f32 0.0, %v3823
      %v3825 = vpop.f32.mrb[0].mxu0
      %3826 = vmatprep.mubr.f32.mxu0 0.0
      %3827 = vmatmul.mubr.f32.gmra.mrb[0].mxu0 %v665
      %v3828 = vpop.f32.mrb[0].mxu0
      %v3829 = vadd.f32 0.0, %v3828
      %v3830 = vpop.f32.mrb[0].mxu0
      %3831 = vmatprep.mubr.f32.mxu0 0.0
      %3832 = vmatmul.mubr.f32.gmra.mrb[0].mxu0 %v667
      %v3833 = vpop.f32.mrb[0].mxu0
      %v3834 = vadd.f32 0.0, %v3833
      %v3835 = vpop.f32.mrb[0].mxu0
      %3836 = vmatprep.mubr.f32.mxu0 0.0
      %3837 = vmatmul.mubr.f32.gmra.mrb[0].mxu0 %v669
      %v3838 = vpop.f32.mrb[0].mxu0
      %v3839 = vadd.f32 0.0, %v3838
      %v3840 = vpop.f32.mrb[0].mxu0
      %3841 = vmatprep.mubr.f32.mxu0 0.0
      %3842 = vmatmul.mubr.f32.gmra.mrb[0].mxu0 %v671
      %v3843 = vpop.f32.mrb[0].mxu0
      %v3844 = vadd.f32 0.0, %v3843
      %v3845 = vpop.f32.mrb[0].mxu0
      %3846 = vmatprep.mubr.f32.mxu0 0.0
      %3847 = vmatmul.mubr.f32.gmra.mrb[0].mxu0 %v673
      %v3848 = vpop.f32.mrb[0].mxu0
      %v3849 = vadd.f32 0.0, %v3848
      %v3850 = vpop.f32.mrb[0].mxu0
      %3851 = vmatprep.mubr.f32.mxu0 0.0
      %3852 = vmatmul.mubr.f32.gmra.mrb[0].mxu0 %v675
      %v3853 = vpop.f32.mrb[0].mxu0
      %v3854 = vadd.f32 0.0, %v3853
      %v3855 = vpop.f32.mrb[0].mxu0
      %3856 = vmatprep.mubr.f32.mxu0 0.0
      %3857 = vmatmul.mubr.f32.gmra.mrb[0].mxu0 %v1466
      %v3858 = vpop.f32.mrb[0].mxu0
      %v3859 = vadd.f32 0.0, %v3858
      %v3860 = vpop.f32.mrb[0].mxu0
      %3861 = vmatprep.mubr.f32.mxu0 0.0
      %3862 = vmatmul.mubr.f32.gmra.mrb[0].mxu0 %v1468
      %v3863 = vpop.f32.mrb[0].mxu0
      %v3864 = vadd.f32 0.0, %v3863
      %v3865 = vpop.f32.mrb[0].mxu0
      %3866 = vmatprep.mubr.f32.mxu0 0.0
      %3867 = vmatmul.mubr.f32.gmra.mrb[0].mxu0 %v3645
      %v3868 = vpop.f32.mrb[0].mxu0
      %v3869 = vadd.f32 0.0, %v3868
      %v3870 = vpop.f32.mrb[0].mxu0
      %3871 = vmatprep.mubr.f32.mxu0 0.0
      %3872 = vmatmul.mubr.f32.gmra.mrb[0].mxu0 %v3647
      %v3873 = vpop.f32.mrb[0].mxu0
      %v3874 = vadd.f32 0.0, %v3873
      %v3875 = vpop.f32.mrb[0].mxu0
      %3876 = vdwg.mxu0
      %v3877 = vadd.f32 %v3611, %v3719
      %v3878 = vadd.f32 %v3612, %v3724
      %v3879 = vadd.f32 %v3613, %v3729
      %v3880 = vadd.f32 %v3614, %v3734
      %v3881 = vadd.f32 %v3615, %v3739
      %v3882 = vadd.f32 %v3616, %v3744
      %v3883 = vadd.f32 %v3617, %v3749
      %v3884 = vadd.f32 %v3618, %v3754
      %v3885 = vadd.f32 %v3619, %v3759
      %v3886 = vadd.f32 %v3620, %v3764
      %v3887 = vadd.f32 %v3621, %v3769
      %v3888 = vadd.f32 %v3622, %v3774
      %v3889 = vadd.f32 %v3623, %v3779
      %v3890 = vadd.f32 %v3624, %v3784
      %v3891 = vadd.f32 %v3625, %v3789
      %v3892 = vadd.f32 %v3626, %v3794
      %v3893 = vadd.f32 %v3627, %v3799
      %v3894 = vadd.f32 %v3628, %v3804
      %v3895 = vadd.f32 %v3629, %v3809
      %v3896 = vadd.f32 %v3630, %v3814
      %v3897 = vadd.f32 %v3631, %v3819
      %v3898 = vadd.f32 %v3632, %v3824
      %v3899 = vadd.f32 %v3633, %v3829
      %v3900 = vadd.f32 %v3634, %v3834
      %v3901 = vadd.f32 %v3635, %v3839
      %v3902 = vadd.f32 %v3636, %v3844
      %v3903 = vadd.f32 %v3637, %v3849
      %v3904 = vadd.f32 %v3638, %v3854
      %v3905 = vadd.f32 %v3639, %v3859
      %v3906 = vadd.f32 %v3640, %v3864
      %v3907 = vadd.f32 %v3641, %v3869
      %v3908 = vadd.f32 %v3642, %v3874
      %v3909 = vadd.f32 %v3877, %v1734
      %v3910 = vadd.f32 %v3878, %v1734
      %v3911 = vadd.f32 %v3879, %v1734
      %v3912 = vadd.f32 %v3880, %v1734
      %v3913 = vadd.f32 %v3881, %v1734
      %v3914 = vadd.f32 %v3882, %v1734
      %v3915 = vadd.f32 %v3883, %v1734
      %v3916 = vadd.f32 %v3884, %v1734
      %v3917 = vadd.f32 %v3885, %v1734
      %v3918 = vadd.f32 %v3886, %v1734
      %v3919 = vadd.f32 %v3887, %v1734
      %v3920 = vadd.f32 %v3888, %v1734
      %v3921 = vadd.f32 %v3889, %v1734
      %v3922 = vadd.f32 %v3890, %v1734
      %v3923 = vadd.f32 %v3891, %v1734
      %v3924 = vadd.f32 %v3892, %v1734
      %v3925 = vadd.f32 %v3893, %v1734
      %v3926 = vadd.f32 %v3894, %v1734
      %v3927 = vadd.f32 %v3895, %v1734
      %v3928 = vadd.f32 %v3896, %v1734
      %v3929 = vadd.f32 %v3897, %v1734
      %v3930 = vadd.f32 %v3898, %v1734
      %v3931 = vadd.f32 %v3899, %v1734
      %v3932 = vadd.f32 %v3900, %v1734
      %v3933 = vadd.f32 %v3901, %v1734
      %v3934 = vadd.f32 %v3902, %v1734
      %v3935 = vadd.f32 %v3903, %v1734
      %v3936 = vadd.f32 %v3904, %v1734
      %v3937 = vadd.f32 %v3905, %v1734
      %v3938 = vadd.f32 %v3906, %v1734
      %v3939 = vadd.f32 %v3907, %v1734
      %v3940 = vadd.f32 %v3908, %v1734
      %s3941 = scalar_lea.vmem %s316, 512
      %3942 = vst.msk [vmem:[%s3941] sm:$0xff] %vm612, %v3909
      %3943 = vst.msk [vmem:[%s3941 + $0x8] sm:$0xff] %vm612, %v3910
      %3944 = vst.msk [vmem:[%s3941 + $0x10] sm:$0xff] %vm612, %v3911
      %3945 = vst.msk [vmem:[%s3941 + $0x18] sm:$0xff] %vm612, %v3912
      %3946 = vst.msk [vmem:[%s3941 + $0x20] sm:$0xff] %vm612, %v3913
      %3947 = vst.msk [vmem:[%s3941 + $0x28] sm:$0xff] %vm612, %v3914
      %3948 = vst.msk [vmem:[%s3941 + $0x30] sm:$0xff] %vm612, %v3915
      %3949 = vst.msk [vmem:[%s3941 + $0x38] sm:$0xff] %vm612, %v3916
      %3950 = vst.msk [vmem:[%s3941 + $0x40] sm:$0xff] %vm612, %v3917
      %3951 = vst.msk [vmem:[%s3941 + $0x48] sm:$0xff] %vm612, %v3918
      %3952 = vst.msk [vmem:[%s3941 + $0x50] sm:$0xff] %vm612, %v3919
      %3953 = vst.msk [vmem:[%s3941 + $0x58] sm:$0xff] %vm612, %v3920
      %3954 = vst.msk [vmem:[%s3941 + $0x60] sm:$0xff] %vm612, %v3921
      %3955 = vst.msk [vmem:[%s3941 + $0x68] sm:$0xff] %vm612, %v3922
      %3956 = vst.msk [vmem:[%s3941 + $0x70] sm:$0xff] %vm612, %v3923
      %3957 = vst.msk [vmem:[%s3941 + $0x78] sm:$0xff] %vm612, %v3924
      %3958 = vst.msk [vmem:[%s3941 + $0x80] sm:$0xff] %vm612, %v3925
      %3959 = vst.msk [vmem:[%s3941 + $0x88] sm:$0xff] %vm612, %v3926
      %3960 = vst.msk [vmem:[%s3941 + $0x90] sm:$0xff] %vm612, %v3927
      %3961 = vst.msk [vmem:[%s3941 + $0x98] sm:$0xff] %vm612, %v3928
      %3962 = vst.msk [vmem:[%s3941 + $0xa0] sm:$0xff] %vm612, %v3929
      %3963 = vst.msk [vmem:[%s3941 + $0xa8] sm:$0xff] %vm612, %v3930
      %3964 = vst.msk [vmem:[%s3941 + $0xb0] sm:$0xff] %vm612, %v3931
      %3965 = vst.msk [vmem:[%s3941 + $0xb8] sm:$0xff] %vm612, %v3932
      %3966 = vst.msk [vmem:[%s3941 + $0xc0] sm:$0xff] %vm612, %v3933
      %3967 = vst.msk [vmem:[%s3941 + $0xc8] sm:$0xff] %vm612, %v3934
      %3968 = vst.msk [vmem:[%s3941 + $0xd0] sm:$0xff] %vm612, %v3935
      %3969 = vst.msk [vmem:[%s3941 + $0xd8] sm:$0xff] %vm612, %v3936
      %3970 = vst.msk [vmem:[%s3941 + $0xe0] sm:$0xff] %vm612, %v3937
      %3971 = vst.msk [vmem:[%s3941 + $0xe8] sm:$0xff] %vm612, %v3938
      %3972 = vst.msk [vmem:[%s3941 + $0xf0] sm:$0xff] %vm612, %v3939
      %3973 = vst.msk [vmem:[%s3941 + $0xf8] sm:$0xff] %vm612, %v3940
      %s3974 = scalar_lea.vmem %s2, 48
      %v3975 = vld [vmem:[%s3974] sm:$0xf]
      %s3976 = scalar_lea.vmem %s2, 52
      %v3977 = vld [vmem:[%s3976] sm:$0xf]
      %v3979 = vsel %vm677, %v3977, 0
      %3981 = vmatprep.subr.mxu0 0.0
      %3982 = vmatpush1.msra.mxu0 %v3979
      %3983 = vmatprep.subr.mxu0 0.0
      %3984 = vmatpush1.msra.mxu0 0.0
      %3985 = vmatprep.subr.mxu0 0.0
      %3986 = vmatpush1.msra.mxu0 0.0
      %3987 = vmatprep.subr.mxu0 0.0
      %3988 = vmatpush1.msra.mxu0 0.0
      %3989 = vmatprep.subr.mxu0 0.0
      %3990 = vmatpush1.msra.mxu0 0.0
      %3991 = vmatprep.subr.mxu0 0.0
      %3992 = vmatpush1.msra.mxu0 0.0
      %3993 = vmatprep.subr.mxu0 0.0
      %3994 = vmatpush1.msra.mxu0 0.0
      %3995 = vmatprep.subr.mxu0 0.0
      %3996 = vmatpush1.msra.mxu0 0.0
      %3997 = vmatprep.subr.mxu0 0.0
      %3998 = vmatpush1.msra.mxu0 0.0
      %3999 = vmatprep.subr.mxu0 0.0
      %4000 = vmatpush1.msra.mxu0 0.0
      %4001 = vmatprep.subr.mxu0 0.0
      %4002 = vmatpush1.msra.mxu0 0.0
      %4003 = vmatprep.subr.mxu0 0.0
      %4004 = vmatpush1.msra.mxu0 0.0
      %4005 = vmatprep.subr.mxu0 0.0
      %4006 = vmatpush1.msra.mxu0 0.0
      %4007 = vmatprep.subr.mxu0 0.0
      %4008 = vmatpush1.msra.mxu0 0.0
      %4009 = vmatprep.subr.mxu0 0.0
      %4010 = vmatpush1.msra.mxu0 0.0
      %4011 = vmatprep.subr.mxu0 0.0
      %4012 = vmatpush1.msra.mxu0 0.0
      %4013 = vmatprep.subr.mxu0 0.0
      %4014 = vmatpush1.msra.mxu0 0.0
      %4015 = vmatprep.subr.mxu0 0.0
      %4016 = vmatpush1.msra.mxu0 0.0
      %4017 = vmatprep.subr.mxu0 0.0
      %4018 = vmatpush1.msra.mxu0 0.0
      %4019 = vmatprep.subr.mxu0 0.0
      %4020 = vmatpush1.msra.mxu0 0.0
      %4021 = vmatprep.subr.mxu0 0.0
      %4022 = vmatpush1.msra.mxu0 0.0
      %4023 = vmatprep.subr.mxu0 0.0
      %4024 = vmatpush1.msra.mxu0 0.0
      %4025 = vmatprep.subr.mxu0 0.0
      %4026 = vmatpush1.msra.mxu0 0.0
      %4027 = vmatprep.subr.mxu0 0.0
      %4028 = vmatpush1.msra.mxu0 0.0
      %4029 = vmatprep.subr.mxu0 0.0
      %4030 = vmatpush1.msra.mxu0 0.0
      %4031 = vmatprep.subr.mxu0 0.0
      %4032 = vmatpush1.msra.mxu0 0.0
      %4033 = vmatprep.subr.mxu0 0.0
      %4034 = vmatpush1.msra.mxu0 0.0
      %4035 = vmatprep.subr.mxu0 0.0
      %4036 = vmatpush1.msra.mxu0 0.0
      %4037 = vmatprep.subr.mxu0 0.0
      %4038 = vmatpush1.msra.mxu0 0.0
      %4039 = vmatprep.subr.mxu0 0.0
      %4040 = vmatpush1.msra.mxu0 0.0
      %4041 = vmatprep.subr.mxu0 0.0
      %4042 = vmatpush1.msra.mxu0 0.0
      %4043 = vmatprep.subr.mxu0 0.0
      %4044 = vmatpush1.msra.mxu0 0.0
      %4045 = vmatprep.mubr.f32.mxu0 0.0
      %4046 = vmatmul.mubr.f32.gmra.mrb[0].mxu0 %v1808
      %v4047 = vpop.f32.mrb[0].mxu0
      %v4048 = vadd.f32 0.0, %v4047
      %v4049 = vpop.f32.mrb[0].mxu0
      %4050 = vmatprep.mubr.f32.mxu0 0.0
      %4051 = vmatmul.mubr.f32.gmra.mrb[0].mxu0 %v1810
      %v4052 = vpop.f32.mrb[0].mxu0
      %v4053 = vadd.f32 0.0, %v4052
      %v4054 = vpop.f32.mrb[0].mxu0
      %4055 = vmatprep.mubr.f32.mxu0 0.0
      %4056 = vmatmul.mubr.f32.gmra.mrb[0].mxu0 %v1812
      %v4057 = vpop.f32.mrb[0].mxu0
      %v4058 = vadd.f32 0.0, %v4057
      %v4059 = vpop.f32.mrb[0].mxu0
      %4060 = vmatprep.mubr.f32.mxu0 0.0
      %4061 = vmatmul.mubr.f32.gmra.mrb[0].mxu0 %v1814
      %v4062 = vpop.f32.mrb[0].mxu0
      %v4063 = vadd.f32 0.0, %v4062
      %v4064 = vpop.f32.mrb[0].mxu0
      %4065 = vmatprep.mubr.f32.mxu0 0.0
      %4066 = vmatmul.mubr.f32.gmra.mrb[0].mxu0 %v1816
      %v4067 = vpop.f32.mrb[0].mxu0
      %v4068 = vadd.f32 0.0, %v4067
      %v4069 = vpop.f32.mrb[0].mxu0
      %4070 = vmatprep.mubr.f32.mxu0 0.0
      %4071 = vmatmul.mubr.f32.gmra.mrb[0].mxu0 %v1818
      %v4072 = vpop.f32.mrb[0].mxu0
      %v4073 = vadd.f32 0.0, %v4072
      %v4074 = vpop.f32.mrb[0].mxu0
      %4075 = vmatprep.mubr.f32.mxu0 0.0
      %4076 = vmatmul.mubr.f32.gmra.mrb[0].mxu0 %v1820
      %v4077 = vpop.f32.mrb[0].mxu0
      %v4078 = vadd.f32 0.0, %v4077
      %v4079 = vpop.f32.mrb[0].mxu0
      %4080 = vmatprep.mubr.f32.mxu0 0.0
      %4081 = vmatmul.mubr.f32.gmra.mrb[0].mxu0 %v1822
      %v4082 = vpop.f32.mrb[0].mxu0
      %v4083 = vadd.f32 0.0, %v4082
      %v4084 = vpop.f32.mrb[0].mxu0
      %4085 = vmatprep.mubr.f32.mxu0 0.0
      %4086 = vmatmul.mubr.f32.gmra.mrb[0].mxu0 %v1824
      %v4087 = vpop.f32.mrb[0].mxu0
      %v4088 = vadd.f32 0.0, %v4087
      %v4089 = vpop.f32.mrb[0].mxu0
      %4090 = vmatprep.mubr.f32.mxu0 0.0
      %4091 = vmatmul.mubr.f32.gmra.mrb[0].mxu0 %v1826
      %v4092 = vpop.f32.mrb[0].mxu0
      %v4093 = vadd.f32 0.0, %v4092
      %v4094 = vpop.f32.mrb[0].mxu0
      %4095 = vmatprep.mubr.f32.mxu0 0.0
      %4096 = vmatmul.mubr.f32.gmra.mrb[0].mxu0 %v1828
      %v4097 = vpop.f32.mrb[0].mxu0
      %v4098 = vadd.f32 0.0, %v4097
      %v4099 = vpop.f32.mrb[0].mxu0
      %4100 = vmatprep.mubr.f32.mxu0 0.0
      %4101 = vmatmul.mubr.f32.gmra.mrb[0].mxu0 %v1830
      %v4102 = vpop.f32.mrb[0].mxu0
      %v4103 = vadd.f32 0.0, %v4102
      %v4104 = vpop.f32.mrb[0].mxu0
      %4105 = vmatprep.mubr.f32.mxu0 0.0
      %4106 = vmatmul.mubr.f32.gmra.mrb[0].mxu0 %v1832
      %v4107 = vpop.f32.mrb[0].mxu0
      %v4108 = vadd.f32 0.0, %v4107
      %v4109 = vpop.f32.mrb[0].mxu0
      %4110 = vmatprep.mubr.f32.mxu0 0.0
      %4111 = vmatmul.mubr.f32.gmra.mrb[0].mxu0 %v1834
      %v4112 = vpop.f32.mrb[0].mxu0
      %v4113 = vadd.f32 0.0, %v4112
      %v4114 = vpop.f32.mrb[0].mxu0
      %4115 = vmatprep.mubr.f32.mxu0 0.0
      %4116 = vmatmul.mubr.f32.gmra.mrb[0].mxu0 %v1836
      %v4117 = vpop.f32.mrb[0].mxu0
      %v4118 = vadd.f32 0.0, %v4117
      %v4119 = vpop.f32.mrb[0].mxu0
      %4120 = vmatprep.mubr.f32.mxu0 0.0
      %4121 = vmatmul.mubr.f32.gmra.mrb[0].mxu0 %v1838
      %v4122 = vpop.f32.mrb[0].mxu0
      %v4123 = vadd.f32 0.0, %v4122
      %v4124 = vpop.f32.mrb[0].mxu0
      %4125 = vmatprep.mubr.f32.mxu0 0.0
      %4126 = vmatmul.mubr.f32.gmra.mrb[0].mxu0 %v1840
      %v4127 = vpop.f32.mrb[0].mxu0
      %v4128 = vadd.f32 0.0, %v4127
      %v4129 = vpop.f32.mrb[0].mxu0
      %4130 = vmatprep.mubr.f32.mxu0 0.0
      %4131 = vmatmul.mubr.f32.gmra.mrb[0].mxu0 %v1842
      %v4132 = vpop.f32.mrb[0].mxu0
      %v4133 = vadd.f32 0.0, %v4132
      %v4134 = vpop.f32.mrb[0].mxu0
      %4135 = vmatprep.mubr.f32.mxu0 0.0
      %4136 = vmatmul.mubr.f32.gmra.mrb[0].mxu0 %v1844
      %v4137 = vpop.f32.mrb[0].mxu0
      %v4138 = vadd.f32 0.0, %v4137
      %v4139 = vpop.f32.mrb[0].mxu0
      %4140 = vmatprep.mubr.f32.mxu0 0.0
      %4141 = vmatmul.mubr.f32.gmra.mrb[0].mxu0 %v1846
      %v4142 = vpop.f32.mrb[0].mxu0
      %v4143 = vadd.f32 0.0, %v4142
      %v4144 = vpop.f32.mrb[0].mxu0
      %4145 = vmatprep.mubr.f32.mxu0 0.0
      %4146 = vmatmul.mubr.f32.gmra.mrb[0].mxu0 %v1848
      %v4147 = vpop.f32.mrb[0].mxu0
      %v4148 = vadd.f32 0.0, %v4147
      %v4149 = vpop.f32.mrb[0].mxu0
      %4150 = vmatprep.mubr.f32.mxu0 0.0
      %4151 = vmatmul.mubr.f32.gmra.mrb[0].mxu0 %v1850
      %v4152 = vpop.f32.mrb[0].mxu0
      %v4153 = vadd.f32 0.0, %v4152
      %v4154 = vpop.f32.mrb[0].mxu0
      %4155 = vmatprep.mubr.f32.mxu0 0.0
      %4156 = vmatmul.mubr.f32.gmra.mrb[0].mxu0 %v1852
      %v4157 = vpop.f32.mrb[0].mxu0
      %v4158 = vadd.f32 0.0, %v4157
      %v4159 = vpop.f32.mrb[0].mxu0
      %4160 = vmatprep.mubr.f32.mxu0 0.0
      %4161 = vmatmul.mubr.f32.gmra.mrb[0].mxu0 %v1854
      %v4162 = vpop.f32.mrb[0].mxu0
      %v4163 = vadd.f32 0.0, %v4162
      %v4164 = vpop.f32.mrb[0].mxu0
      %4165 = vmatprep.mubr.f32.mxu0 0.0
      %4166 = vmatmul.mubr.f32.gmra.mrb[0].mxu0 %v1856
      %v4167 = vpop.f32.mrb[0].mxu0
      %v4168 = vadd.f32 0.0, %v4167
      %v4169 = vpop.f32.mrb[0].mxu0
      %4170 = vmatprep.mubr.f32.mxu0 0.0
      %4171 = vmatmul.mubr.f32.gmra.mrb[0].mxu0 %v1858
      %v4172 = vpop.f32.mrb[0].mxu0
      %v4173 = vadd.f32 0.0, %v4172
      %v4174 = vpop.f32.mrb[0].mxu0
      %4175 = vmatprep.mubr.f32.mxu0 0.0
      %4176 = vmatmul.mubr.f32.gmra.mrb[0].mxu0 %v1860
      %v4177 = vpop.f32.mrb[0].mxu0
      %v4178 = vadd.f32 0.0, %v4177
      %v4179 = vpop.f32.mrb[0].mxu0
      %4180 = vmatprep.mubr.f32.mxu0 0.0
      %4181 = vmatmul.mubr.f32.gmra.mrb[0].mxu0 %v1862
      %v4182 = vpop.f32.mrb[0].mxu0
      %v4183 = vadd.f32 0.0, %v4182
      %v4184 = vpop.f32.mrb[0].mxu0
      %4185 = vmatprep.mubr.f32.mxu0 0.0
      %4186 = vmatmul.mubr.f32.gmra.mrb[0].mxu0 %v1864
      %v4187 = vpop.f32.mrb[0].mxu0
      %v4188 = vadd.f32 0.0, %v4187
      %v4189 = vpop.f32.mrb[0].mxu0
      %4190 = vmatprep.mubr.f32.mxu0 0.0
      %4191 = vmatmul.mubr.f32.gmra.mrb[0].mxu0 %v1866
      %v4192 = vpop.f32.mrb[0].mxu0
      %v4193 = vadd.f32 0.0, %v4192
      %v4194 = vpop.f32.mrb[0].mxu0
      %4195 = vmatprep.mubr.f32.mxu0 0.0
      %4196 = vmatmul.mubr.f32.gmra.mrb[0].mxu0 %v2588
      %v4197 = vpop.f32.mrb[0].mxu0
      %v4198 = vadd.f32 0.0, %v4197
      %v4199 = vpop.f32.mrb[0].mxu0
      %4200 = vmatprep.mubr.f32.mxu0 0.0
      %4201 = vmatmul.mubr.f32.gmra.mrb[0].mxu0 %v2590
      %v4202 = vpop.f32.mrb[0].mxu0
      %v4203 = vadd.f32 0.0, %v4202
      %v4204 = vpop.f32.mrb[0].mxu0
      %4205 = vdwg.mxu0
      %v4207 = vsel %vm677, %v3975, 0
      %4209 = vmatprep.subr.mxu0 0.0
      %4210 = vmatpush1.msra.mxu0 %v4207
      %4211 = vmatprep.subr.mxu0 0.0
      %4212 = vmatpush1.msra.mxu0 0.0
      %4213 = vmatprep.subr.mxu0 0.0
      %4214 = vmatpush1.msra.mxu0 0.0
      %4215 = vmatprep.subr.mxu0 0.0
      %4216 = vmatpush1.msra.mxu0 0.0
      %4217 = vmatprep.subr.mxu0 0.0
      %4218 = vmatpush1.msra.mxu0 0.0
      %4219 = vmatprep.subr.mxu0 0.0
      %4220 = vmatpush1.msra.mxu0 0.0
      %4221 = vmatprep.subr.mxu0 0.0
      %4222 = vmatpush1.msra.mxu0 0.0
      %4223 = vmatprep.subr.mxu0 0.0
      %4224 = vmatpush1.msra.mxu0 0.0
      %4225 = vmatprep.subr.mxu0 0.0
      %4226 = vmatpush1.msra.mxu0 0.0
      %4227 = vmatprep.subr.mxu0 0.0
      %4228 = vmatpush1.msra.mxu0 0.0
      %4229 = vmatprep.subr.mxu0 0.0
      %4230 = vmatpush1.msra.mxu0 0.0
      %4231 = vmatprep.subr.mxu0 0.0
      %4232 = vmatpush1.msra.mxu0 0.0
      %4233 = vmatprep.subr.mxu0 0.0
      %4234 = vmatpush1.msra.mxu0 0.0
      %4235 = vmatprep.subr.mxu0 0.0
      %4236 = vmatpush1.msra.mxu0 0.0
      %4237 = vmatprep.subr.mxu0 0.0
      %4238 = vmatpush1.msra.mxu0 0.0
      %4239 = vmatprep.subr.mxu0 0.0
      %4240 = vmatpush1.msra.mxu0 0.0
      %4241 = vmatprep.subr.mxu0 0.0
      %4242 = vmatpush1.msra.mxu0 0.0
      %4243 = vmatprep.subr.mxu0 0.0
      %4244 = vmatpush1.msra.mxu0 0.0
      %4245 = vmatprep.subr.mxu0 0.0
      %4246 = vmatpush1.msra.mxu0 0.0
      %4247 = vmatprep.subr.mxu0 0.0
      %4248 = vmatpush1.msra.mxu0 0.0
      %4249 = vmatprep.subr.mxu0 0.0
      %4250 = vmatpush1.msra.mxu0 0.0
      %4251 = vmatprep.subr.mxu0 0.0
      %4252 = vmatpush1.msra.mxu0 0.0
      %4253 = vmatprep.subr.mxu0 0.0
      %4254 = vmatpush1.msra.mxu0 0.0
      %4255 = vmatprep.subr.mxu0 0.0
      %4256 = vmatpush1.msra.mxu0 0.0
      %4257 = vmatprep.subr.mxu0 0.0
      %4258 = vmatpush1.msra.mxu0 0.0
      %4259 = vmatprep.subr.mxu0 0.0
      %4260 = vmatpush1.msra.mxu0 0.0
      %4261 = vmatprep.subr.mxu0 0.0
      %4262 = vmatpush1.msra.mxu0 0.0
      %4263 = vmatprep.subr.mxu0 0.0
      %4264 = vmatpush1.msra.mxu0 0.0
      %4265 = vmatprep.subr.mxu0 0.0
      %4266 = vmatpush1.msra.mxu0 0.0
      %4267 = vmatprep.subr.mxu0 0.0
      %4268 = vmatpush1.msra.mxu0 0.0
      %4269 = vmatprep.subr.mxu0 0.0
      %4270 = vmatpush1.msra.mxu0 0.0
      %4271 = vmatprep.subr.mxu0 0.0
      %4272 = vmatpush1.msra.mxu0 0.0
      %4273 = vmatprep.mubr.f32.mxu0 0.0
      %4274 = vmatmul.mubr.f32.gmra.mrb[0].mxu0 %v617
      %v4275 = vpop.f32.mrb[0].mxu0
      %v4276 = vadd.f32 %v4048, %v4275
      %v4277 = vpop.f32.mrb[0].mxu0
      %4278 = vmatprep.mubr.f32.mxu0 0.0
      %4279 = vmatmul.mubr.f32.gmra.mrb[0].mxu0 %v619
      %v4280 = vpop.f32.mrb[0].mxu0
      %v4281 = vadd.f32 %v4053, %v4280
      %v4282 = vpop.f32.mrb[0].mxu0
      %4283 = vmatprep.mubr.f32.mxu0 0.0
      %4284 = vmatmul.mubr.f32.gmra.mrb[0].mxu0 %v621
      %v4285 = vpop.f32.mrb[0].mxu0
      %v4286 = vadd.f32 %v4058, %v4285
      %v4287 = vpop.f32.mrb[0].mxu0
      %4288 = vmatprep.mubr.f32.mxu0 0.0
      %4289 = vmatmul.mubr.f32.gmra.mrb[0].mxu0 %v623
      %v4290 = vpop.f32.mrb[0].mxu0
      %v4291 = vadd.f32 %v4063, %v4290
      %v4292 = vpop.f32.mrb[0].mxu0
      %4293 = vmatprep.mubr.f32.mxu0 0.0
      %4294 = vmatmul.mubr.f32.gmra.mrb[0].mxu0 %v625
      %v4295 = vpop.f32.mrb[0].mxu0
      %v4296 = vadd.f32 %v4068, %v4295
      %v4297 = vpop.f32.mrb[0].mxu0
      %4298 = vmatprep.mubr.f32.mxu0 0.0
      %4299 = vmatmul.mubr.f32.gmra.mrb[0].mxu0 %v627
      %v4300 = vpop.f32.mrb[0].mxu0
      %v4301 = vadd.f32 %v4073, %v4300
      %v4302 = vpop.f32.mrb[0].mxu0
      %4303 = vmatprep.mubr.f32.mxu0 0.0
      %4304 = vmatmul.mubr.f32.gmra.mrb[0].mxu0 %v629
      %v4305 = vpop.f32.mrb[0].mxu0
      %v4306 = vadd.f32 %v4078, %v4305
      %v4307 = vpop.f32.mrb[0].mxu0
      %4308 = vmatprep.mubr.f32.mxu0 0.0
      %4309 = vmatmul.mubr.f32.gmra.mrb[0].mxu0 %v631
      %v4310 = vpop.f32.mrb[0].mxu0
      %v4311 = vadd.f32 %v4083, %v4310
      %v4312 = vpop.f32.mrb[0].mxu0
      %4313 = vmatprep.mubr.f32.mxu0 0.0
      %4314 = vmatmul.mubr.f32.gmra.mrb[0].mxu0 %v633
      %v4315 = vpop.f32.mrb[0].mxu0
      %v4316 = vadd.f32 %v4088, %v4315
      %v4317 = vpop.f32.mrb[0].mxu0
      %4318 = vmatprep.mubr.f32.mxu0 0.0
      %4319 = vmatmul.mubr.f32.gmra.mrb[0].mxu0 %v635
      %v4320 = vpop.f32.mrb[0].mxu0
      %v4321 = vadd.f32 %v4093, %v4320
      %v4322 = vpop.f32.mrb[0].mxu0
      %4323 = vmatprep.mubr.f32.mxu0 0.0
      %4324 = vmatmul.mubr.f32.gmra.mrb[0].mxu0 %v637
      %v4325 = vpop.f32.mrb[0].mxu0
      %v4326 = vadd.f32 %v4098, %v4325
      %v4327 = vpop.f32.mrb[0].mxu0
      %4328 = vmatprep.mubr.f32.mxu0 0.0
      %4329 = vmatmul.mubr.f32.gmra.mrb[0].mxu0 %v639
      %v4330 = vpop.f32.mrb[0].mxu0
      %v4331 = vadd.f32 %v4103, %v4330
      %v4332 = vpop.f32.mrb[0].mxu0
      %4333 = vmatprep.mubr.f32.mxu0 0.0
      %4334 = vmatmul.mubr.f32.gmra.mrb[0].mxu0 %v641
      %v4335 = vpop.f32.mrb[0].mxu0
      %v4336 = vadd.f32 %v4108, %v4335
      %v4337 = vpop.f32.mrb[0].mxu0
      %4338 = vmatprep.mubr.f32.mxu0 0.0
      %4339 = vmatmul.mubr.f32.gmra.mrb[0].mxu0 %v643
      %v4340 = vpop.f32.mrb[0].mxu0
      %v4341 = vadd.f32 %v4113, %v4340
      %v4342 = vpop.f32.mrb[0].mxu0
      %4343 = vmatprep.mubr.f32.mxu0 0.0
      %4344 = vmatmul.mubr.f32.gmra.mrb[0].mxu0 %v645
      %v4345 = vpop.f32.mrb[0].mxu0
      %v4346 = vadd.f32 %v4118, %v4345
      %v4347 = vpop.f32.mrb[0].mxu0
      %4348 = vmatprep.mubr.f32.mxu0 0.0
      %4349 = vmatmul.mubr.f32.gmra.mrb[0].mxu0 %v647
      %v4350 = vpop.f32.mrb[0].mxu0
      %v4351 = vadd.f32 %v4123, %v4350
      %v4352 = vpop.f32.mrb[0].mxu0
      %4353 = vmatprep.mubr.f32.mxu0 0.0
      %4354 = vmatmul.mubr.f32.gmra.mrb[0].mxu0 %v649
      %v4355 = vpop.f32.mrb[0].mxu0
      %v4356 = vadd.f32 %v4128, %v4355
      %v4357 = vpop.f32.mrb[0].mxu0
      %4358 = vmatprep.mubr.f32.mxu0 0.0
      %4359 = vmatmul.mubr.f32.gmra.mrb[0].mxu0 %v651
      %v4360 = vpop.f32.mrb[0].mxu0
      %v4361 = vadd.f32 %v4133, %v4360
      %v4362 = vpop.f32.mrb[0].mxu0
      %4363 = vmatprep.mubr.f32.mxu0 0.0
      %4364 = vmatmul.mubr.f32.gmra.mrb[0].mxu0 %v653
      %v4365 = vpop.f32.mrb[0].mxu0
      %v4366 = vadd.f32 %v4138, %v4365
      %v4367 = vpop.f32.mrb[0].mxu0
      %4368 = vmatprep.mubr.f32.mxu0 0.0
      %4369 = vmatmul.mubr.f32.gmra.mrb[0].mxu0 %v655
      %v4370 = vpop.f32.mrb[0].mxu0
      %v4371 = vadd.f32 %v4143, %v4370
      %v4372 = vpop.f32.mrb[0].mxu0
      %4373 = vmatprep.mubr.f32.mxu0 0.0
      %4374 = vmatmul.mubr.f32.gmra.mrb[0].mxu0 %v657
      %v4375 = vpop.f32.mrb[0].mxu0
      %v4376 = vadd.f32 %v4148, %v4375
      %v4377 = vpop.f32.mrb[0].mxu0
      %4378 = vmatprep.mubr.f32.mxu0 0.0
      %4379 = vmatmul.mubr.f32.gmra.mrb[0].mxu0 %v659
      %v4380 = vpop.f32.mrb[0].mxu0
      %v4381 = vadd.f32 %v4153, %v4380
      %v4382 = vpop.f32.mrb[0].mxu0
      %4383 = vmatprep.mubr.f32.mxu0 0.0
      %4384 = vmatmul.mubr.f32.gmra.mrb[0].mxu0 %v661
      %v4385 = vpop.f32.mrb[0].mxu0
      %v4386 = vadd.f32 %v4158, %v4385
      %v4387 = vpop.f32.mrb[0].mxu0
      %4388 = vmatprep.mubr.f32.mxu0 0.0
      %4389 = vmatmul.mubr.f32.gmra.mrb[0].mxu0 %v663
      %v4390 = vpop.f32.mrb[0].mxu0
      %v4391 = vadd.f32 %v4163, %v4390
      %v4392 = vpop.f32.mrb[0].mxu0
      %4393 = vmatprep.mubr.f32.mxu0 0.0
      %4394 = vmatmul.mubr.f32.gmra.mrb[0].mxu0 %v665
      %v4395 = vpop.f32.mrb[0].mxu0
      %v4396 = vadd.f32 %v4168, %v4395
      %v4397 = vpop.f32.mrb[0].mxu0
      %4398 = vmatprep.mubr.f32.mxu0 0.0
      %4399 = vmatmul.mubr.f32.gmra.mrb[0].mxu0 %v667
      %v4400 = vpop.f32.mrb[0].mxu0
      %v4401 = vadd.f32 %v4173, %v4400
      %v4402 = vpop.f32.mrb[0].mxu0
      %4403 = vmatprep.mubr.f32.mxu0 0.0
      %4404 = vmatmul.mubr.f32.gmra.mrb[0].mxu0 %v669
      %v4405 = vpop.f32.mrb[0].mxu0
      %v4406 = vadd.f32 %v4178, %v4405
      %v4407 = vpop.f32.mrb[0].mxu0
      %4408 = vmatprep.mubr.f32.mxu0 0.0
      %4409 = vmatmul.mubr.f32.gmra.mrb[0].mxu0 %v671
      %v4410 = vpop.f32.mrb[0].mxu0
      %v4411 = vadd.f32 %v4183, %v4410
      %v4412 = vpop.f32.mrb[0].mxu0
      %4413 = vmatprep.mubr.f32.mxu0 0.0
      %4414 = vmatmul.mubr.f32.gmra.mrb[0].mxu0 %v673
      %v4415 = vpop.f32.mrb[0].mxu0
      %v4416 = vadd.f32 %v4188, %v4415
      %v4417 = vpop.f32.mrb[0].mxu0
      %4418 = vmatprep.mubr.f32.mxu0 0.0
      %4419 = vmatmul.mubr.f32.gmra.mrb[0].mxu0 %v675
      %v4420 = vpop.f32.mrb[0].mxu0
      %v4421 = vadd.f32 %v4193, %v4420
      %v4422 = vpop.f32.mrb[0].mxu0
      %4423 = vmatprep.mubr.f32.mxu0 0.0
      %4424 = vmatmul.mubr.f32.gmra.mrb[0].mxu0 %v1466
      %v4425 = vpop.f32.mrb[0].mxu0
      %v4426 = vadd.f32 %v4198, %v4425
      %v4427 = vpop.f32.mrb[0].mxu0
      %4428 = vmatprep.mubr.f32.mxu0 0.0
      %4429 = vmatmul.mubr.f32.gmra.mrb[0].mxu0 %v1468
      %v4430 = vpop.f32.mrb[0].mxu0
      %v4431 = vadd.f32 %v4203, %v4430
      %v4432 = vpop.f32.mrb[0].mxu0
      %4433 = vdwg.mxu0
      %s4434 = scalar_lea.vmem %s2, 56
      %v4435 = vld [vmem:[%s4434] sm:$0xf]
      %v4437 = vsel %vm677, %v4435, 0
      %4439 = vmatprep.subr.mxu0 0.0
      %4440 = vmatpush1.msra.mxu0 %v4437
      %4441 = vmatprep.subr.mxu0 0.0
      %4442 = vmatpush1.msra.mxu0 0.0
      %4443 = vmatprep.subr.mxu0 0.0
      %4444 = vmatpush1.msra.mxu0 0.0
      %4445 = vmatprep.subr.mxu0 0.0
      %4446 = vmatpush1.msra.mxu0 0.0
      %4447 = vmatprep.subr.mxu0 0.0
      %4448 = vmatpush1.msra.mxu0 0.0
      %4449 = vmatprep.subr.mxu0 0.0
      %4450 = vmatpush1.msra.mxu0 0.0
      %4451 = vmatprep.subr.mxu0 0.0
      %4452 = vmatpush1.msra.mxu0 0.0
      %4453 = vmatprep.subr.mxu0 0.0
      %4454 = vmatpush1.msra.mxu0 0.0
      %4455 = vmatprep.subr.mxu0 0.0
      %4456 = vmatpush1.msra.mxu0 0.0
      %4457 = vmatprep.subr.mxu0 0.0
      %4458 = vmatpush1.msra.mxu0 0.0
      %4459 = vmatprep.subr.mxu0 0.0
      %4460 = vmatpush1.msra.mxu0 0.0
      %4461 = vmatprep.subr.mxu0 0.0
      %4462 = vmatpush1.msra.mxu0 0.0
      %4463 = vmatprep.subr.mxu0 0.0
      %4464 = vmatpush1.msra.mxu0 0.0
      %4465 = vmatprep.subr.mxu0 0.0
      %4466 = vmatpush1.msra.mxu0 0.0
      %4467 = vmatprep.subr.mxu0 0.0
      %4468 = vmatpush1.msra.mxu0 0.0
      %4469 = vmatprep.subr.mxu0 0.0
      %4470 = vmatpush1.msra.mxu0 0.0
      %4471 = vmatprep.subr.mxu0 0.0
      %4472 = vmatpush1.msra.mxu0 0.0
      %4473 = vmatprep.subr.mxu0 0.0
      %4474 = vmatpush1.msra.mxu0 0.0
      %4475 = vmatprep.subr.mxu0 0.0
      %4476 = vmatpush1.msra.mxu0 0.0
      %4477 = vmatprep.subr.mxu0 0.0
      %4478 = vmatpush1.msra.mxu0 0.0
      %4479 = vmatprep.subr.mxu0 0.0
      %4480 = vmatpush1.msra.mxu0 0.0
      %4481 = vmatprep.subr.mxu0 0.0
      %4482 = vmatpush1.msra.mxu0 0.0
      %4483 = vmatprep.subr.mxu0 0.0
      %4484 = vmatpush1.msra.mxu0 0.0
      %4485 = vmatprep.subr.mxu0 0.0
      %4486 = vmatpush1.msra.mxu0 0.0
      %4487 = vmatprep.subr.mxu0 0.0
      %4488 = vmatpush1.msra.mxu0 0.0
      %4489 = vmatprep.subr.mxu0 0.0
      %4490 = vmatpush1.msra.mxu0 0.0
      %4491 = vmatprep.subr.mxu0 0.0
      %4492 = vmatpush1.msra.mxu0 0.0
      %4493 = vmatprep.subr.mxu0 0.0
      %4494 = vmatpush1.msra.mxu0 0.0
      %4495 = vmatprep.subr.mxu0 0.0
      %4496 = vmatpush1.msra.mxu0 0.0
      %4497 = vmatprep.subr.mxu0 0.0
      %4498 = vmatpush1.msra.mxu0 0.0
      %4499 = vmatprep.subr.mxu0 0.0
      %4500 = vmatpush1.msra.mxu0 0.0
      %4501 = vmatprep.subr.mxu0 0.0
      %4502 = vmatpush1.msra.mxu0 0.0
      %4503 = vmatprep.mubr.f32.mxu0 0.0
      %4504 = vmatmul.mubr.f32.gmra.mrb[0].mxu0 %v621
      %v4505 = vpop.f32.mrb[0].mxu0
      %v4506 = vadd.f32 0.0, %v4505
      %v4507 = vpop.f32.mrb[0].mxu0
      %4508 = vmatprep.mubr.f32.mxu0 0.0
      %4509 = vmatmul.mubr.f32.gmra.mrb[0].mxu0 %v623
      %v4510 = vpop.f32.mrb[0].mxu0
      %v4511 = vadd.f32 0.0, %v4510
      %v4512 = vpop.f32.mrb[0].mxu0
      %4513 = vmatprep.mubr.f32.mxu0 0.0
      %4514 = vmatmul.mubr.f32.gmra.mrb[0].mxu0 %v625
      %v4515 = vpop.f32.mrb[0].mxu0
      %v4516 = vadd.f32 0.0, %v4515
      %v4517 = vpop.f32.mrb[0].mxu0
      %4518 = vmatprep.mubr.f32.mxu0 0.0
      %4519 = vmatmul.mubr.f32.gmra.mrb[0].mxu0 %v627
      %v4520 = vpop.f32.mrb[0].mxu0
      %v4521 = vadd.f32 0.0, %v4520
      %v4522 = vpop.f32.mrb[0].mxu0
      %4523 = vmatprep.mubr.f32.mxu0 0.0
      %4524 = vmatmul.mubr.f32.gmra.mrb[0].mxu0 %v629
      %v4525 = vpop.f32.mrb[0].mxu0
      %v4526 = vadd.f32 0.0, %v4525
      %v4527 = vpop.f32.mrb[0].mxu0
      %4528 = vmatprep.mubr.f32.mxu0 0.0
      %4529 = vmatmul.mubr.f32.gmra.mrb[0].mxu0 %v631
      %v4530 = vpop.f32.mrb[0].mxu0
      %v4531 = vadd.f32 0.0, %v4530
      %v4532 = vpop.f32.mrb[0].mxu0
      %4533 = vmatprep.mubr.f32.mxu0 0.0
      %4534 = vmatmul.mubr.f32.gmra.mrb[0].mxu0 %v633
      %v4535 = vpop.f32.mrb[0].mxu0
      %v4536 = vadd.f32 0.0, %v4535
      %v4537 = vpop.f32.mrb[0].mxu0
      %4538 = vmatprep.mubr.f32.mxu0 0.0
      %4539 = vmatmul.mubr.f32.gmra.mrb[0].mxu0 %v635
      %v4540 = vpop.f32.mrb[0].mxu0
      %v4541 = vadd.f32 0.0, %v4540
      %v4542 = vpop.f32.mrb[0].mxu0
      %4543 = vmatprep.mubr.f32.mxu0 0.0
      %4544 = vmatmul.mubr.f32.gmra.mrb[0].mxu0 %v637
      %v4545 = vpop.f32.mrb[0].mxu0
      %v4546 = vadd.f32 0.0, %v4545
      %v4547 = vpop.f32.mrb[0].mxu0
      %4548 = vmatprep.mubr.f32.mxu0 0.0
      %4549 = vmatmul.mubr.f32.gmra.mrb[0].mxu0 %v639
      %v4550 = vpop.f32.mrb[0].mxu0
      %v4551 = vadd.f32 0.0, %v4550
      %v4552 = vpop.f32.mrb[0].mxu0
      %4553 = vmatprep.mubr.f32.mxu0 0.0
      %4554 = vmatmul.mubr.f32.gmra.mrb[0].mxu0 %v641
      %v4555 = vpop.f32.mrb[0].mxu0
      %v4556 = vadd.f32 0.0, %v4555
      %v4557 = vpop.f32.mrb[0].mxu0
      %4558 = vmatprep.mubr.f32.mxu0 0.0
      %4559 = vmatmul.mubr.f32.gmra.mrb[0].mxu0 %v643
      %v4560 = vpop.f32.mrb[0].mxu0
      %v4561 = vadd.f32 0.0, %v4560
      %v4562 = vpop.f32.mrb[0].mxu0
      %4563 = vmatprep.mubr.f32.mxu0 0.0
      %4564 = vmatmul.mubr.f32.gmra.mrb[0].mxu0 %v645
      %v4565 = vpop.f32.mrb[0].mxu0
      %v4566 = vadd.f32 0.0, %v4565
      %v4567 = vpop.f32.mrb[0].mxu0
      %4568 = vmatprep.mubr.f32.mxu0 0.0
      %4569 = vmatmul.mubr.f32.gmra.mrb[0].mxu0 %v647
      %v4570 = vpop.f32.mrb[0].mxu0
      %v4571 = vadd.f32 0.0, %v4570
      %v4572 = vpop.f32.mrb[0].mxu0
      %4573 = vmatprep.mubr.f32.mxu0 0.0
      %4574 = vmatmul.mubr.f32.gmra.mrb[0].mxu0 %v649
      %v4575 = vpop.f32.mrb[0].mxu0
      %v4576 = vadd.f32 0.0, %v4575
      %v4577 = vpop.f32.mrb[0].mxu0
      %4578 = vmatprep.mubr.f32.mxu0 0.0
      %4579 = vmatmul.mubr.f32.gmra.mrb[0].mxu0 %v651
      %v4580 = vpop.f32.mrb[0].mxu0
      %v4581 = vadd.f32 0.0, %v4580
      %v4582 = vpop.f32.mrb[0].mxu0
      %4583 = vmatprep.mubr.f32.mxu0 0.0
      %4584 = vmatmul.mubr.f32.gmra.mrb[0].mxu0 %v653
      %v4585 = vpop.f32.mrb[0].mxu0
      %v4586 = vadd.f32 0.0, %v4585
      %v4587 = vpop.f32.mrb[0].mxu0
      %4588 = vmatprep.mubr.f32.mxu0 0.0
      %4589 = vmatmul.mubr.f32.gmra.mrb[0].mxu0 %v655
      %v4590 = vpop.f32.mrb[0].mxu0
      %v4591 = vadd.f32 0.0, %v4590
      %v4592 = vpop.f32.mrb[0].mxu0
      %4593 = vmatprep.mubr.f32.mxu0 0.0
      %4594 = vmatmul.mubr.f32.gmra.mrb[0].mxu0 %v657
      %v4595 = vpop.f32.mrb[0].mxu0
      %v4596 = vadd.f32 0.0, %v4595
      %v4597 = vpop.f32.mrb[0].mxu0
      %4598 = vmatprep.mubr.f32.mxu0 0.0
      %4599 = vmatmul.mubr.f32.gmra.mrb[0].mxu0 %v659
      %v4600 = vpop.f32.mrb[0].mxu0
      %v4601 = vadd.f32 0.0, %v4600
      %v4602 = vpop.f32.mrb[0].mxu0
      %4603 = vmatprep.mubr.f32.mxu0 0.0
      %4604 = vmatmul.mubr.f32.gmra.mrb[0].mxu0 %v661
      %v4605 = vpop.f32.mrb[0].mxu0
      %v4606 = vadd.f32 0.0, %v4605
      %v4607 = vpop.f32.mrb[0].mxu0
      %4608 = vmatprep.mubr.f32.mxu0 0.0
      %4609 = vmatmul.mubr.f32.gmra.mrb[0].mxu0 %v663
      %v4610 = vpop.f32.mrb[0].mxu0
      %v4611 = vadd.f32 0.0, %v4610
      %v4612 = vpop.f32.mrb[0].mxu0
      %4613 = vmatprep.mubr.f32.mxu0 0.0
      %4614 = vmatmul.mubr.f32.gmra.mrb[0].mxu0 %v665
      %v4615 = vpop.f32.mrb[0].mxu0
      %v4616 = vadd.f32 0.0, %v4615
      %v4617 = vpop.f32.mrb[0].mxu0
      %4618 = vmatprep.mubr.f32.mxu0 0.0
      %4619 = vmatmul.mubr.f32.gmra.mrb[0].mxu0 %v667
      %v4620 = vpop.f32.mrb[0].mxu0
      %v4621 = vadd.f32 0.0, %v4620
      %v4622 = vpop.f32.mrb[0].mxu0
      %4623 = vmatprep.mubr.f32.mxu0 0.0
      %4624 = vmatmul.mubr.f32.gmra.mrb[0].mxu0 %v669
      %v4625 = vpop.f32.mrb[0].mxu0
      %v4626 = vadd.f32 0.0, %v4625
      %v4627 = vpop.f32.mrb[0].mxu0
      %4628 = vmatprep.mubr.f32.mxu0 0.0
      %4629 = vmatmul.mubr.f32.gmra.mrb[0].mxu0 %v671
      %v4630 = vpop.f32.mrb[0].mxu0
      %v4631 = vadd.f32 0.0, %v4630
      %v4632 = vpop.f32.mrb[0].mxu0
      %4633 = vmatprep.mubr.f32.mxu0 0.0
      %4634 = vmatmul.mubr.f32.gmra.mrb[0].mxu0 %v673
      %v4635 = vpop.f32.mrb[0].mxu0
      %v4636 = vadd.f32 0.0, %v4635
      %v4637 = vpop.f32.mrb[0].mxu0
      %4638 = vmatprep.mubr.f32.mxu0 0.0
      %4639 = vmatmul.mubr.f32.gmra.mrb[0].mxu0 %v675
      %v4640 = vpop.f32.mrb[0].mxu0
      %v4641 = vadd.f32 0.0, %v4640
      %v4642 = vpop.f32.mrb[0].mxu0
      %4643 = vmatprep.mubr.f32.mxu0 0.0
      %4644 = vmatmul.mubr.f32.gmra.mrb[0].mxu0 %v1466
      %v4645 = vpop.f32.mrb[0].mxu0
      %v4646 = vadd.f32 0.0, %v4645
      %v4647 = vpop.f32.mrb[0].mxu0
      %4648 = vmatprep.mubr.f32.mxu0 0.0
      %4649 = vmatmul.mubr.f32.gmra.mrb[0].mxu0 %v1468
      %v4650 = vpop.f32.mrb[0].mxu0
      %v4651 = vadd.f32 0.0, %v4650
      %v4652 = vpop.f32.mrb[0].mxu0
      %4653 = vmatprep.mubr.f32.mxu0 0.0
      %4654 = vmatmul.mubr.f32.gmra.mrb[0].mxu0 %v3645
      %v4655 = vpop.f32.mrb[0].mxu0
      %v4656 = vadd.f32 0.0, %v4655
      %v4657 = vpop.f32.mrb[0].mxu0
      %4658 = vmatprep.mubr.f32.mxu0 0.0
      %4659 = vmatmul.mubr.f32.gmra.mrb[0].mxu0 %v3647
      %v4660 = vpop.f32.mrb[0].mxu0
      %v4661 = vadd.f32 0.0, %v4660
      %v4662 = vpop.f32.mrb[0].mxu0
      %4663 = vdwg.mxu0
      %v4664 = vadd.f32 %v4276, %v4506
      %v4665 = vadd.f32 %v4281, %v4511
      %v4666 = vadd.f32 %v4286, %v4516
      %v4667 = vadd.f32 %v4291, %v4521
      %v4668 = vadd.f32 %v4296, %v4526
      %v4669 = vadd.f32 %v4301, %v4531
      %v4670 = vadd.f32 %v4306, %v4536
      %v4671 = vadd.f32 %v4311, %v4541
      %v4672 = vadd.f32 %v4316, %v4546
      %v4673 = vadd.f32 %v4321, %v4551
      %v4674 = vadd.f32 %v4326, %v4556
      %v4675 = vadd.f32 %v4331, %v4561
      %v4676 = vadd.f32 %v4336, %v4566
      %v4677 = vadd.f32 %v4341, %v4571
      %v4678 = vadd.f32 %v4346, %v4576
      %v4679 = vadd.f32 %v4351, %v4581
      %v4680 = vadd.f32 %v4356, %v4586
      %v4681 = vadd.f32 %v4361, %v4591
      %v4682 = vadd.f32 %v4366, %v4596
      %v4683 = vadd.f32 %v4371, %v4601
      %v4684 = vadd.f32 %v4376, %v4606
      %v4685 = vadd.f32 %v4381, %v4611
      %v4686 = vadd.f32 %v4386, %v4616
      %v4687 = vadd.f32 %v4391, %v4621
      %v4688 = vadd.f32 %v4396, %v4626
      %v4689 = vadd.f32 %v4401, %v4631
      %v4690 = vadd.f32 %v4406, %v4636
      %v4691 = vadd.f32 %v4411, %v4641
      %v4692 = vadd.f32 %v4416, %v4646
      %v4693 = vadd.f32 %v4421, %v4651
      %v4694 = vadd.f32 %v4426, %v4656
      %v4695 = vadd.f32 %v4431, %v4661
      %s4696 = scalar_lea.vmem %s2, 60
      %v4697 = vld [vmem:[%s4696] sm:$0xf]
      %v4698 = vsel %vm612, %v606, 0
      %v4700 = vsel %vm612, %v608, 0
      %v4703 = vsel %vm677, %v4697, 0
      %4705 = vmatprep.subr.mxu0 0.0
      %4706 = vmatpush1.msra.mxu0 %v4703
      %4707 = vmatprep.subr.mxu0 0.0
      %4708 = vmatpush1.msra.mxu0 0.0
      %4709 = vmatprep.subr.mxu0 0.0
      %4710 = vmatpush1.msra.mxu0 0.0
      %4711 = vmatprep.subr.mxu0 0.0
      %4712 = vmatpush1.msra.mxu0 0.0
      %4713 = vmatprep.subr.mxu0 0.0
      %4714 = vmatpush1.msra.mxu0 0.0
      %4715 = vmatprep.subr.mxu0 0.0
      %4716 = vmatpush1.msra.mxu0 0.0
      %4717 = vmatprep.subr.mxu0 0.0
      %4718 = vmatpush1.msra.mxu0 0.0
      %4719 = vmatprep.subr.mxu0 0.0
      %4720 = vmatpush1.msra.mxu0 0.0
      %4721 = vmatprep.subr.mxu0 0.0
      %4722 = vmatpush1.msra.mxu0 0.0
      %4723 = vmatprep.subr.mxu0 0.0
      %4724 = vmatpush1.msra.mxu0 0.0
      %4725 = vmatprep.subr.mxu0 0.0
      %4726 = vmatpush1.msra.mxu0 0.0
      %4727 = vmatprep.subr.mxu0 0.0
      %4728 = vmatpush1.msra.mxu0 0.0
      %4729 = vmatprep.subr.mxu0 0.0
      %4730 = vmatpush1.msra.mxu0 0.0
      %4731 = vmatprep.subr.mxu0 0.0
      %4732 = vmatpush1.msra.mxu0 0.0
      %4733 = vmatprep.subr.mxu0 0.0
      %4734 = vmatpush1.msra.mxu0 0.0
      %4735 = vmatprep.subr.mxu0 0.0
      %4736 = vmatpush1.msra.mxu0 0.0
      %4737 = vmatprep.subr.mxu0 0.0
      %4738 = vmatpush1.msra.mxu0 0.0
      %4739 = vmatprep.subr.mxu0 0.0
      %4740 = vmatpush1.msra.mxu0 0.0
      %4741 = vmatprep.subr.mxu0 0.0
      %4742 = vmatpush1.msra.mxu0 0.0
      %4743 = vmatprep.subr.mxu0 0.0
      %4744 = vmatpush1.msra.mxu0 0.0
      %4745 = vmatprep.subr.mxu0 0.0
      %4746 = vmatpush1.msra.mxu0 0.0
      %4747 = vmatprep.subr.mxu0 0.0
      %4748 = vmatpush1.msra.mxu0 0.0
      %4749 = vmatprep.subr.mxu0 0.0
      %4750 = vmatpush1.msra.mxu0 0.0
      %4751 = vmatprep.subr.mxu0 0.0
      %4752 = vmatpush1.msra.mxu0 0.0
      %4753 = vmatprep.subr.mxu0 0.0
      %4754 = vmatpush1.msra.mxu0 0.0
      %4755 = vmatprep.subr.mxu0 0.0
      %4756 = vmatpush1.msra.mxu0 0.0
      %4757 = vmatprep.subr.mxu0 0.0
      %4758 = vmatpush1.msra.mxu0 0.0
      %4759 = vmatprep.subr.mxu0 0.0
      %4760 = vmatpush1.msra.mxu0 0.0
      %4761 = vmatprep.subr.mxu0 0.0
      %4762 = vmatpush1.msra.mxu0 0.0
      %4763 = vmatprep.subr.mxu0 0.0
      %4764 = vmatpush1.msra.mxu0 0.0
      %4765 = vmatprep.subr.mxu0 0.0
      %4766 = vmatpush1.msra.mxu0 0.0
      %4767 = vmatprep.subr.mxu0 0.0
      %4768 = vmatpush1.msra.mxu0 0.0
      %4769 = vmatprep.mubr.f32.mxu0 0.0
      %4770 = vmatmul.mubr.f32.gmra.mrb[0].mxu0 %v1812
      %v4771 = vpop.f32.mrb[0].mxu0
      %v4772 = vadd.f32 0.0, %v4771
      %v4773 = vpop.f32.mrb[0].mxu0
      %4774 = vmatprep.mubr.f32.mxu0 0.0
      %4775 = vmatmul.mubr.f32.gmra.mrb[0].mxu0 %v1814
      %v4776 = vpop.f32.mrb[0].mxu0
      %v4777 = vadd.f32 0.0, %v4776
      %v4778 = vpop.f32.mrb[0].mxu0
      %4779 = vmatprep.mubr.f32.mxu0 0.0
      %4780 = vmatmul.mubr.f32.gmra.mrb[0].mxu0 %v1816
      %v4781 = vpop.f32.mrb[0].mxu0
      %v4782 = vadd.f32 0.0, %v4781
      %v4783 = vpop.f32.mrb[0].mxu0
      %4784 = vmatprep.mubr.f32.mxu0 0.0
      %4785 = vmatmul.mubr.f32.gmra.mrb[0].mxu0 %v1818
      %v4786 = vpop.f32.mrb[0].mxu0
      %v4787 = vadd.f32 0.0, %v4786
      %v4788 = vpop.f32.mrb[0].mxu0
      %4789 = vmatprep.mubr.f32.mxu0 0.0
      %4790 = vmatmul.mubr.f32.gmra.mrb[0].mxu0 %v1820
      %v4791 = vpop.f32.mrb[0].mxu0
      %v4792 = vadd.f32 0.0, %v4791
      %v4793 = vpop.f32.mrb[0].mxu0
      %4794 = vmatprep.mubr.f32.mxu0 0.0
      %4795 = vmatmul.mubr.f32.gmra.mrb[0].mxu0 %v1822
      %v4796 = vpop.f32.mrb[0].mxu0
      %v4797 = vadd.f32 0.0, %v4796
      %v4798 = vpop.f32.mrb[0].mxu0
      %4799 = vmatprep.mubr.f32.mxu0 0.0
      %4800 = vmatmul.mubr.f32.gmra.mrb[0].mxu0 %v1824
      %v4801 = vpop.f32.mrb[0].mxu0
      %v4802 = vadd.f32 0.0, %v4801
      %v4803 = vpop.f32.mrb[0].mxu0
      %4804 = vmatprep.mubr.f32.mxu0 0.0
      %4805 = vmatmul.mubr.f32.gmra.mrb[0].mxu0 %v1826
      %v4806 = vpop.f32.mrb[0].mxu0
      %v4807 = vadd.f32 0.0, %v4806
      %v4808 = vpop.f32.mrb[0].mxu0
      %4809 = vmatprep.mubr.f32.mxu0 0.0
      %4810 = vmatmul.mubr.f32.gmra.mrb[0].mxu0 %v1828
      %v4811 = vpop.f32.mrb[0].mxu0
      %v4812 = vadd.f32 0.0, %v4811
      %v4813 = vpop.f32.mrb[0].mxu0
      %4814 = vmatprep.mubr.f32.mxu0 0.0
      %4815 = vmatmul.mubr.f32.gmra.mrb[0].mxu0 %v1830
      %v4816 = vpop.f32.mrb[0].mxu0
      %v4817 = vadd.f32 0.0, %v4816
      %v4818 = vpop.f32.mrb[0].mxu0
      %4819 = vmatprep.mubr.f32.mxu0 0.0
      %4820 = vmatmul.mubr.f32.gmra.mrb[0].mxu0 %v1832
      %v4821 = vpop.f32.mrb[0].mxu0
      %v4822 = vadd.f32 0.0, %v4821
      %v4823 = vpop.f32.mrb[0].mxu0
      %4824 = vmatprep.mubr.f32.mxu0 0.0
      %4825 = vmatmul.mubr.f32.gmra.mrb[0].mxu0 %v1834
      %v4826 = vpop.f32.mrb[0].mxu0
      %v4827 = vadd.f32 0.0, %v4826
      %v4828 = vpop.f32.mrb[0].mxu0
      %4829 = vmatprep.mubr.f32.mxu0 0.0
      %4830 = vmatmul.mubr.f32.gmra.mrb[0].mxu0 %v1836
      %v4831 = vpop.f32.mrb[0].mxu0
      %v4832 = vadd.f32 0.0, %v4831
      %v4833 = vpop.f32.mrb[0].mxu0
      %4834 = vmatprep.mubr.f32.mxu0 0.0
      %4835 = vmatmul.mubr.f32.gmra.mrb[0].mxu0 %v1838
      %v4836 = vpop.f32.mrb[0].mxu0
      %v4837 = vadd.f32 0.0, %v4836
      %v4838 = vpop.f32.mrb[0].mxu0
      %4839 = vmatprep.mubr.f32.mxu0 0.0
      %4840 = vmatmul.mubr.f32.gmra.mrb[0].mxu0 %v1840
      %v4841 = vpop.f32.mrb[0].mxu0
      %v4842 = vadd.f32 0.0, %v4841
      %v4843 = vpop.f32.mrb[0].mxu0
      %4844 = vmatprep.mubr.f32.mxu0 0.0
      %4845 = vmatmul.mubr.f32.gmra.mrb[0].mxu0 %v1842
      %v4846 = vpop.f32.mrb[0].mxu0
      %v4847 = vadd.f32 0.0, %v4846
      %v4848 = vpop.f32.mrb[0].mxu0
      %4849 = vmatprep.mubr.f32.mxu0 0.0
      %4850 = vmatmul.mubr.f32.gmra.mrb[0].mxu0 %v1844
      %v4851 = vpop.f32.mrb[0].mxu0
      %v4852 = vadd.f32 0.0, %v4851
      %v4853 = vpop.f32.mrb[0].mxu0
      %4854 = vmatprep.mubr.f32.mxu0 0.0
      %4855 = vmatmul.mubr.f32.gmra.mrb[0].mxu0 %v1846
      %v4856 = vpop.f32.mrb[0].mxu0
      %v4857 = vadd.f32 0.0, %v4856
      %v4858 = vpop.f32.mrb[0].mxu0
      %4859 = vmatprep.mubr.f32.mxu0 0.0
      %4860 = vmatmul.mubr.f32.gmra.mrb[0].mxu0 %v1848
      %v4861 = vpop.f32.mrb[0].mxu0
      %v4862 = vadd.f32 0.0, %v4861
      %v4863 = vpop.f32.mrb[0].mxu0
      %4864 = vmatprep.mubr.f32.mxu0 0.0
      %4865 = vmatmul.mubr.f32.gmra.mrb[0].mxu0 %v1850
      %v4866 = vpop.f32.mrb[0].mxu0
      %v4867 = vadd.f32 0.0, %v4866
      %v4868 = vpop.f32.mrb[0].mxu0
      %4869 = vmatprep.mubr.f32.mxu0 0.0
      %4870 = vmatmul.mubr.f32.gmra.mrb[0].mxu0 %v1852
      %v4871 = vpop.f32.mrb[0].mxu0
      %v4872 = vadd.f32 0.0, %v4871
      %v4873 = vpop.f32.mrb[0].mxu0
      %4874 = vmatprep.mubr.f32.mxu0 0.0
      %4875 = vmatmul.mubr.f32.gmra.mrb[0].mxu0 %v1854
      %v4876 = vpop.f32.mrb[0].mxu0
      %v4877 = vadd.f32 0.0, %v4876
      %v4878 = vpop.f32.mrb[0].mxu0
      %4879 = vmatprep.mubr.f32.mxu0 0.0
      %4880 = vmatmul.mubr.f32.gmra.mrb[0].mxu0 %v1856
      %v4881 = vpop.f32.mrb[0].mxu0
      %v4882 = vadd.f32 0.0, %v4881
      %v4883 = vpop.f32.mrb[0].mxu0
      %4884 = vmatprep.mubr.f32.mxu0 0.0
      %4885 = vmatmul.mubr.f32.gmra.mrb[0].mxu0 %v1858
      %v4886 = vpop.f32.mrb[0].mxu0
      %v4887 = vadd.f32 0.0, %v4886
      %v4888 = vpop.f32.mrb[0].mxu0
      %4889 = vmatprep.mubr.f32.mxu0 0.0
      %4890 = vmatmul.mubr.f32.gmra.mrb[0].mxu0 %v1860
      %v4891 = vpop.f32.mrb[0].mxu0
      %v4892 = vadd.f32 0.0, %v4891
      %v4893 = vpop.f32.mrb[0].mxu0
      %4894 = vmatprep.mubr.f32.mxu0 0.0
      %4895 = vmatmul.mubr.f32.gmra.mrb[0].mxu0 %v1862
      %v4896 = vpop.f32.mrb[0].mxu0
      %v4897 = vadd.f32 0.0, %v4896
      %v4898 = vpop.f32.mrb[0].mxu0
      %4899 = vmatprep.mubr.f32.mxu0 0.0
      %4900 = vmatmul.mubr.f32.gmra.mrb[0].mxu0 %v1864
      %v4901 = vpop.f32.mrb[0].mxu0
      %v4902 = vadd.f32 0.0, %v4901
      %v4903 = vpop.f32.mrb[0].mxu0
      %4904 = vmatprep.mubr.f32.mxu0 0.0
      %4905 = vmatmul.mubr.f32.gmra.mrb[0].mxu0 %v1866
      %v4906 = vpop.f32.mrb[0].mxu0
      %v4907 = vadd.f32 0.0, %v4906
      %v4908 = vpop.f32.mrb[0].mxu0
      %4909 = vmatprep.mubr.f32.mxu0 0.0
      %4910 = vmatmul.mubr.f32.gmra.mrb[0].mxu0 %v2588
      %v4911 = vpop.f32.mrb[0].mxu0
      %v4912 = vadd.f32 0.0, %v4911
      %v4913 = vpop.f32.mrb[0].mxu0
      %4914 = vmatprep.mubr.f32.mxu0 0.0
      %4915 = vmatmul.mubr.f32.gmra.mrb[0].mxu0 %v2590
      %v4916 = vpop.f32.mrb[0].mxu0
      %v4917 = vadd.f32 0.0, %v4916
      %v4918 = vpop.f32.mrb[0].mxu0
      %4919 = vmatprep.mubr.f32.mxu0 0.0
      %4920 = vmatmul.mubr.f32.gmra.mrb[0].mxu0 %v4698
      %v4921 = vpop.f32.mrb[0].mxu0
      %v4922 = vadd.f32 0.0, %v4921
      %v4923 = vpop.f32.mrb[0].mxu0
      %4924 = vmatprep.mubr.f32.mxu0 0.0
      %4925 = vmatmul.mubr.f32.gmra.mrb[0].mxu0 %v4700
      %v4926 = vpop.f32.mrb[0].mxu0
      %v4927 = vadd.f32 0.0, %v4926
      %v4928 = vpop.f32.mrb[0].mxu0
      %4929 = vdwg.mxu0
      %v4930 = vadd.f32 %v4664, %v4772
      %v4931 = vadd.f32 %v4665, %v4777
      %v4932 = vadd.f32 %v4666, %v4782
      %v4933 = vadd.f32 %v4667, %v4787
      %v4934 = vadd.f32 %v4668, %v4792
      %v4935 = vadd.f32 %v4669, %v4797
      %v4936 = vadd.f32 %v4670, %v4802
      %v4937 = vadd.f32 %v4671, %v4807
      %v4938 = vadd.f32 %v4672, %v4812
      %v4939 = vadd.f32 %v4673, %v4817
      %v4940 = vadd.f32 %v4674, %v4822
      %v4941 = vadd.f32 %v4675, %v4827
      %v4942 = vadd.f32 %v4676, %v4832
      %v4943 = vadd.f32 %v4677, %v4837
      %v4944 = vadd.f32 %v4678, %v4842
      %v4945 = vadd.f32 %v4679, %v4847
      %v4946 = vadd.f32 %v4680, %v4852
      %v4947 = vadd.f32 %v4681, %v4857
      %v4948 = vadd.f32 %v4682, %v4862
      %v4949 = vadd.f32 %v4683, %v4867
      %v4950 = vadd.f32 %v4684, %v4872
      %v4951 = vadd.f32 %v4685, %v4877
      %v4952 = vadd.f32 %v4686, %v4882
      %v4953 = vadd.f32 %v4687, %v4887
      %v4954 = vadd.f32 %v4688, %v4892
      %v4955 = vadd.f32 %v4689, %v4897
      %v4956 = vadd.f32 %v4690, %v4902
      %v4957 = vadd.f32 %v4691, %v4907
      %v4958 = vadd.f32 %v4692, %v4912
      %v4959 = vadd.f32 %v4693, %v4917
      %v4960 = vadd.f32 %v4694, %v4922
      %v4961 = vadd.f32 %v4695, %v4927
      %v4962 = vadd.f32 %v4930, %v1734
      %v4963 = vadd.f32 %v4931, %v1734
      %v4964 = vadd.f32 %v4932, %v1734
      %v4965 = vadd.f32 %v4933, %v1734
      %v4966 = vadd.f32 %v4934, %v1734
      %v4967 = vadd.f32 %v4935, %v1734
      %v4968 = vadd.f32 %v4936, %v1734
      %v4969 = vadd.f32 %v4937, %v1734
      %v4970 = vadd.f32 %v4938, %v1734
      %v4971 = vadd.f32 %v4939, %v1734
      %v4972 = vadd.f32 %v4940, %v1734
      %v4973 = vadd.f32 %v4941, %v1734
      %v4974 = vadd.f32 %v4942, %v1734
      %v4975 = vadd.f32 %v4943, %v1734
      %v4976 = vadd.f32 %v4944, %v1734
      %v4977 = vadd.f32 %v4945, %v1734
      %v4978 = vadd.f32 %v4946, %v1734
      %v4979 = vadd.f32 %v4947, %v1734
      %v4980 = vadd.f32 %v4948, %v1734
      %v4981 = vadd.f32 %v4949, %v1734
      %v4982 = vadd.f32 %v4950, %v1734
      %v4983 = vadd.f32 %v4951, %v1734
      %v4984 = vadd.f32 %v4952, %v1734
      %v4985 = vadd.f32 %v4953, %v1734
      %v4986 = vadd.f32 %v4954, %v1734
      %v4987 = vadd.f32 %v4955, %v1734
      %v4988 = vadd.f32 %v4956, %v1734
      %v4989 = vadd.f32 %v4957, %v1734
      %v4990 = vadd.f32 %v4958, %v1734
      %v4991 = vadd.f32 %v4959, %v1734
      %v4992 = vadd.f32 %v4960, %v1734
      %v4993 = vadd.f32 %v4961, %v1734
      %s4994 = scalar_lea.vmem %s316, 768
      %4995 = vst.msk [vmem:[%s4994] sm:$0xff] %vm612, %v4962
      %4996 = vst.msk [vmem:[%s4994 + $0x8] sm:$0xff] %vm612, %v4963
      %4997 = vst.msk [vmem:[%s4994 + $0x10] sm:$0xff] %vm612, %v4964
      %4998 = vst.msk [vmem:[%s4994 + $0x18] sm:$0xff] %vm612, %v4965
      %4999 = vst.msk [vmem:[%s4994 + $0x20] sm:$0xff] %vm612, %v4966
      %5000 = vst.msk [vmem:[%s4994 + $0x28] sm:$0xff] %vm612, %v4967
      %5001 = vst.msk [vmem:[%s4994 + $0x30] sm:$0xff] %vm612, %v4968
      %5002 = vst.msk [vmem:[%s4994 + $0x38] sm:$0xff] %vm612, %v4969
      %5003 = vst.msk [vmem:[%s4994 + $0x40] sm:$0xff] %vm612, %v4970
      %5004 = vst.msk [vmem:[%s4994 + $0x48] sm:$0xff] %vm612, %v4971
      %5005 = vst.msk [vmem:[%s4994 + $0x50] sm:$0xff] %vm612, %v4972
      %5006 = vst.msk [vmem:[%s4994 + $0x58] sm:$0xff] %vm612, %v4973
      %5007 = vst.msk [vmem:[%s4994 + $0x60] sm:$0xff] %vm612, %v4974
      %5008 = vst.msk [vmem:[%s4994 + $0x68] sm:$0xff] %vm612, %v4975
      %5009 = vst.msk [vmem:[%s4994 + $0x70] sm:$0xff] %vm612, %v4976
      %5010 = vst.msk [vmem:[%s4994 + $0x78] sm:$0xff] %vm612, %v4977
      %5011 = vst.msk [vmem:[%s4994 + $0x80] sm:$0xff] %vm612, %v4978
      %5012 = vst.msk [vmem:[%s4994 + $0x88] sm:$0xff] %vm612, %v4979
      %5013 = vst.msk [vmem:[%s4994 + $0x90] sm:$0xff] %vm612, %v4980
      %5014 = vst.msk [vmem:[%s4994 + $0x98] sm:$0xff] %vm612, %v4981
      %5015 = vst.msk [vmem:[%s4994 + $0xa0] sm:$0xff] %vm612, %v4982
      %5016 = vst.msk [vmem:[%s4994 + $0xa8] sm:$0xff] %vm612, %v4983
      %5017 = vst.msk [vmem:[%s4994 + $0xb0] sm:$0xff] %vm612, %v4984
      %5018 = vst.msk [vmem:[%s4994 + $0xb8] sm:$0xff] %vm612, %v4985
      %5019 = vst.msk [vmem:[%s4994 + $0xc0] sm:$0xff] %vm612, %v4986
      %5020 = vst.msk [vmem:[%s4994 + $0xc8] sm:$0xff] %vm612, %v4987
      %5021 = vst.msk [vmem:[%s4994 + $0xd0] sm:$0xff] %vm612, %v4988
      %5022 = vst.msk [vmem:[%s4994 + $0xd8] sm:$0xff] %vm612, %v4989
      %5023 = vst.msk [vmem:[%s4994 + $0xe0] sm:$0xff] %vm612, %v4990
      %5024 = vst.msk [vmem:[%s4994 + $0xe8] sm:$0xff] %vm612, %v4991
      %5025 = vst.msk [vmem:[%s4994 + $0xf0] sm:$0xff] %vm612, %v4992
      %5026 = vst.msk [vmem:[%s4994 + $0xf8] sm:$0xff] %vm612, %v4993
      %s5027 = smul.u32 32, %s20
      %p5028 = scmp.lt.s32.totalorder %s19, 1
      %s5029 = scalar_select %p5028, %s19, 1
      %p5030 = scmp.lt.s32.totalorder %s5027, 31
      %s5031 = scalar_select %p5030, %s5027, 31
      %s5032 = smul.addr %s5029, 128
      %s5033 = sadd.s32 %s5031, %s5032
      %s5034 = smul.addr %s5033, 8
      %s5035 = scalar_lea.vmem %s4, %s5034
      // Predicated region
      $region37: #{tpu_custom_call.1} parent=35 // pred_check
        %p5036 = pneg %p149
      $region38: #{tpu_custom_call.1} parent=35 // pred_check_branch
        %5038 = sbr.rel (%p5036) target = $region40
      $region39: #{tpu_custom_call.1} parent=35 // pred_region
        %s5039 = smul.u32 32, %s20
      $region40: #{tpu_custom_call.1} parent=35 // pred_fallthru
        _
    $region36: #{tpu_custom_call.1} parent=5 // pred_fallthru
      _
    %p5040 = scmp.le.s32.totalorder 2, %s10
    // Predicated region
    $region41: #{tpu_custom_call.1} parent=5 // pred_check
      %p5041 = pneg %p5040
    $region42: #{tpu_custom_call.1} parent=5 // pred_check_branch
      %5043 = sbr.rel (%p5041) target = $region44
    $region43: #{tpu_custom_call.1} parent=5 // pred_region
      %s5044 = ssub.s32 %s10, 2
      // Predicated region
      $region45: #{tpu_custom_call.1} parent=43 // pred_check
        %p5045 = pneg %p155
      $region46: #{tpu_custom_call.1} parent=43 // pred_check_branch
        %5047 = sbr.rel (%p5045) target = $region48
      $region47: #{tpu_custom_call.1} parent=43 // pred_region
        %s5048 = smul.u32 32, %s22
        %p5049 = scmp.lt.s32.totalorder %s21, 1
        %s5050 = scalar_select %p5049, %s21, 1
        %p5051 = scmp.lt.s32.totalorder %s5048, 31
        %s5052 = scalar_select %p5051, %s5048, 31
        %s5053 = smul.addr %s5050, 128
        %s5054 = sadd.s32 %s5052, %s5053
        %s5055 = smul.addr %s5054, 8
        %s5056 = scalar_lea.vmem %s4, %s5055
      $region48: #{tpu_custom_call.1} parent=43 // pred_fallthru
        _
    $region44: #{tpu_custom_call.1} parent=5 // pred_fallthru
      _
  $region6: #{tpu_custom_call.1} parent=0 // loop_footer
    %s14 = sadd.s32 1, %s10
  $region7: #{tpu_custom_call.1} parent=0 // loop_footer_branch
    %9 = sbr.rel target = $region3
  $region8: #{tpu_custom_call.1} parent=0 // loop_exit
    _

</llo_original>
